<compile_context>
chip_gen: v6e
topology: v6e:2x2x1
jax: 0.10.0
libtpu: 0.0.40
codegen_flags: <defaults>
</compile_context>

<pallas_src>
import functools

import jax
import jax.numpy as jnp
from jax.experimental import pallas as pl
from jax.experimental.pallas import tpu as pltpu

LANE = 128


def _round_up(n, m=LANE):
  return ((n + m - 1) // m) * m


def _encoder_kernel(x_ref, wp_ref, wqkv_ref, wo_ref, w1_ref, b1_ref, w2_ref,
                    wout_ref, bvec_ref, out_ref, *, num_heads, head_dim,
                    hidden, eps):
  f32 = jnp.float32
  bb, S, Dpin = x_ref.shape
  Dh = wp_ref.shape[1]
  Dpout = out_ref.shape[2]
  N = bb * S
  hdp = Dh // num_heads                     # padded per-head width (32)

  x = x_ref[...].reshape(N, Dpin).astype(f32)
  bvec = bvec_ref[...]                      # (16, Dh) packed biases/gains/mask
  bp, bq, bk, bv = bvec[0:1], bvec[1:2], bvec[2:3], bvec[3:4]
  bo, g1, be1, b2 = bvec[4:5], bvec[5:6], bvec[6:7], bvec[7:8]
  g2, be2 = bvec[8:9], bvec[9:10]
  bout = bvec[10:11, :Dpout]
  mask = bvec[11:12]                        # 1.0 on the real `hidden` lanes

  # ---- input projection (padded lanes of h stay exactly zero) -------------
  h = jnp.dot(x, wp_ref[...], preferred_element_type=f32) + bp        # (N,Dh)

  # ---- fused q/k/v projection ----------------------------------------------
  qkv = jnp.dot(h, wqkv_ref[...], preferred_element_type=f32)         # (N,3Dh)
  q = (qkv[:, :Dh] + bq).reshape(bb, S, Dh)
  k = (qkv[:, Dh:2 * Dh] + bk).reshape(bb, S, Dh)
  v = (qkv[:, 2 * Dh:] + bv).reshape(bb, S, Dh)

  # ---- multi-head self-attention --------------------------------------------
  # Heads live in aligned 32-lane blocks (real head_dim=8, remaining lanes 0),
  # so contracting over the padded 32 lanes equals the true head contraction.
  scale = 1.0 / (head_dim ** 0.5)
  wo = wo_ref[...]
  attn = jnp.zeros((N, Dh), f32)
  for hi in range(num_heads):               # static unroll; batched over bb
    sl = slice(hi * hdp, (hi + 1) * hdp)
    s = jnp.einsum('bqd,bkd->bqk', q[:, :, sl], k[:, :, sl],
                   preferred_element_type=f32) * scale                # (bb,S,S)
    s = s - jnp.max(s, axis=-1, keepdims=True)
    p = jnp.exp(s)
    p = p * pl.reciprocal(jnp.sum(p, axis=-1, keepdims=True), approx=True)
    ctx = jnp.einsum('bqk,bkd->bqd', p, v[:, :, sl],
                     preferred_element_type=f32)                      # (bb,S,hdp)
    # accumulate out-projection per head -> no lane concat / relayout needed
    attn = attn + jnp.dot(ctx.reshape(N, hdp), wo[sl, :],
                          preferred_element_type=f32)
  attn = attn + bo

  # ---- residual + LayerNorm (moments over the real `hidden` features only) --
  inv_h = 1.0 / float(hidden)

  def layer_norm(t, g, b):
    mu = jnp.sum(t, axis=-1, keepdims=True) * inv_h
    d = (t - mu) * mask                     # zero padded lanes before moments
    var = jnp.sum(d * d, axis=-1, keepdims=True) * inv_h
    return d * jax.lax.rsqrt(var + eps) * g + b

  y = layer_norm(h + attn, g1, be1)         # dropout = identity (eval mode)

  # ---- feed-forward (bf16-streamed weights, f32 accumulation) ---------------
  f = jnp.dot(y, w1_ref[...].astype(f32), preferred_element_type=f32)
  f = jnp.maximum(f + b1_ref[...], 0.0)
  f = jnp.dot(f, w2_ref[...].astype(f32), preferred_element_type=f32) + b2

  z = layer_norm(y + f, g2, be2)

  # ---- output projection (lane-dense padded store) --------------------------
  out = jnp.dot(z, wout_ref[...], preferred_element_type=f32) + bout
  out_ref[...] = out.reshape(bb, S, Dpout).astype(out_ref.dtype)


def _prepare_params(params, num_heads):
  """Zero-pad / permute the (in,out)-layout weights to lane-dense 128-wide
  layouts.  q/k/v columns (and wo rows) are placed head-major so each head
  owns an aligned 32-lane block; all padded lanes are zero."""
  f32 = jnp.float32
  wp = params["wp"].astype(f32)
  Din, H = wp.shape
  Dff = params["w1"].shape[1]
  Dout = params["wout"].shape[1]
  Dpin, Dh, Dpout = _round_up(Din), _round_up(H), _round_up(Dout)
  assert H % num_heads == 0 and Dh % num_heads == 0
  assert Dpout <= Dh, "packed bias row assumes output width <= padded hidden"
  hd, hdp = H // num_heads, Dh // num_heads
  j = jnp.arange(H)
  pos = (j // hd) * hdp + (j % hd)          # head-major padded column index

  def pad2(w, r, c):
    return jnp.zeros((r, c), f32).at[:w.shape[0], :w.shape[1]].set(
        w.astype(f32))

  wqkv = jnp.zeros((Dh, 3 * Dh), f32)
  wqkv = wqkv.at[:H, pos].set(params["wq"].astype(f32))
  wqkv = wqkv.at[:H, Dh + pos].set(params["wk"].astype(f32))
  wqkv = wqkv.at[:H, 2 * Dh + pos].set(params["wv"].astype(f32))
  wo = jnp.zeros((Dh, Dh), f32).at[pos, :H].set(params["wo"].astype(f32))

  bvec = jnp.zeros((16, Dh), f32)
  bvec = bvec.at[0, :H].set(params["bp"])
  bvec = bvec.at[1, pos].set(params["bq"])
  bvec = bvec.at[2, pos].set(params["bk"])
  bvec = bvec.at[3, pos].set(params["bv"])
  bvec = bvec.at[4, :H].set(params["bo"])
  bvec = bvec.at[5, :H].set(params["g1"])
  bvec = bvec.at[6, :H].set(params["be1"])
  bvec = bvec.at[7, :H].set(params["b2"])
  bvec = bvec.at[8, :H].set(params["g2"])
  bvec = bvec.at[9, :H].set(params["be2"])
  bvec = bvec.at[10, :Dout].set(params["bout"])
  bvec = bvec.at[11, :H].set(1.0)           # LayerNorm lane mask

  return dict(
      wp=pad2(wp, Dpin, Dh),
      wqkv=wqkv,
      wo=wo,
      w1=pad2(params["w1"], Dh, Dff).astype(jnp.bfloat16),
      b1=jnp.zeros((1, Dff), f32).at[0].set(params["b1"]),
      w2=pad2(params["w2"], Dff, Dh).astype(jnp.bfloat16),
      wout=pad2(params["wout"], Dh, Dpout),
      bvec=bvec,
      dims=(Din, H, Dff, Dout, Dpin, Dh, Dpout),
  )


def simple_transformer_encoder(x, params, *, num_heads=4, eps=1e-5,
                               batch_block=None):
  B, S, Din = x.shape
  prep = _prepare_params(params, num_heads)
  Din_, H, Dff, Dout, Dpin, Dh, Dpout = prep["dims"]
  assert Din == Din_
  hd = H // num_heads

  # Fully collapse the batch by default (fewest grid steps); on v7x pass
  # batch_block=B//2 to keep a 2-way "parallel" axis for the two TensorCores.
  bb = B if batch_block is None else batch_block
  assert B % bb == 0

  x_p = jnp.pad(x.astype(jnp.float32), ((0, 0), (0, 0), (0, Dpin - Din)))

  kernel = functools.partial(_encoder_kernel, num_heads=num_heads,
                             head_dim=hd, hidden=H, eps=eps)

  weights = [prep["wp"], prep["wqkv"], prep["wo"], prep["w1"], prep["b1"],
             prep["w2"], prep["wout"], prep["bvec"]]

  in_specs = [pl.BlockSpec((bb, S, Dpin), lambda i: (i, 0, 0))]
  in_specs += [pl.BlockSpec(w.shape, lambda i: (0, 0)) for w in weights]

  flops = (2 * B * S * (Dpin * Dh + 3 * Dh * Dh + Dh * Dh + 2 * Dh * Dff
                        + Dh * Dpout)
           + 4 * B * num_heads * S * S * (Dh // num_heads))
  bytes_accessed = int(x_p.size * 4
                       + sum(w.size * w.dtype.itemsize for w in weights)
                       + B * S * Dpout * 4)
  cost = pl.CostEstimate(flops=int(flops),
                         transcendentals=int(B * num_heads * S * S),
                         bytes_accessed=bytes_accessed)

  out_p = pl.pallas_call(
      kernel,
      out_shape=jax.ShapeDtypeStruct((B, S, Dpout), jnp.float32),
      grid=(B // bb,),
      in_specs=in_specs,
      out_specs=pl.BlockSpec((bb, S, Dpout), lambda i: (i, 0, 0)),
      compiler_params=pltpu.CompilerParams(
          dimension_semantics=("parallel",),
          vmem_limit_bytes=32 * 1024 * 1024),
      cost_estimate=cost,
  )(x_p, *weights)
  return out_p[:, :, :Dout]                 # drop lane padding outside kernel


def _init_params(key, input_dim, hidden_dim, dim_ff, output_dim):
  ks = jax.random.split(key, 12)
  std = 0.05
  f32 = jnp.float32
  return {
      "wp": jax.random.normal(ks[0], (input_dim, hidden_dim), f32) * std,
      "bp": jax.random.normal(ks[1], (hidden_dim,), f32) * std,
      "wq": jax.random.normal(ks[2], (hidden_dim, hidden_dim), f32) * std,
      "bq": jax.random.normal(ks[3], (hidden_dim,), f32) * std,
      "wk": jax.random.normal(ks[4], (hidden_dim, hidden_dim), f32) * std,
      "bk": jnp.zeros((hidden_dim,), f32),
      "wv": jax.random.normal(ks[5], (hidden_dim, hidden_dim), f32) * std,
      "bv": jnp.zeros((hidden_dim,), f32),
      "wo": jax.random.normal(ks[6], (hidden_dim, hidden_dim), f32) * std,
      "bo": jnp.zeros((hidden_dim,), f32),
      "g1": jnp.ones((hidden_dim,), f32),
      "be1": jnp.zeros((hidden_dim,), f32),
      "w1": jax.random.normal(ks[7], (hidden_dim, dim_ff), f32) * std,
      "b1": jax.random.normal(ks[8], (dim_ff,), f32) * std,
      "w2": jax.random.normal(ks[9], (dim_ff, hidden_dim), f32) * std,
      "b2": jnp.zeros((hidden_dim,), f32),
      "g2": jnp.ones((hidden_dim,), f32),
      "be2": jnp.zeros((hidden_dim,), f32),
      "wout": jax.random.normal(ks[10], (hidden_dim, output_dim), f32) * std,
      "bout": jnp.zeros((output_dim,), f32),
  }


def _reference(x, p, num_heads=4, eps=1e-5):
  """Pure-JAX reference mirroring PyTorch eval-mode semantics."""
  h = x @ p["wp"] + p["bp"]
  q = h @ p["wq"] + p["bq"]
  k = h @ p["wk"] + p["bk"]
  v = h @ p["wv"] + p["bv"]
  B, S, H = h.shape
  hd = H // num_heads
  qh = q.reshape(B, S, num_heads, hd).transpose(0, 2, 1, 3)
  kh = k.reshape(B, S, num_heads, hd).transpose(0, 2, 1, 3)
  vh = v.reshape(B, S, num_heads, hd).transpose(0, 2, 1, 3)
  s = jnp.einsum("bhqd,bhkd->bhqk", qh, kh) / (hd ** 0.5)
  pm = jax.nn.softmax(s, axis=-1)
  a = jnp.einsum("bhqk,bhkd->bhqd", pm, vh).transpose(0, 2, 1, 3).reshape(
      B, S, H)
  a = a @ p["wo"] + p["bo"]

  def ln(t, g, b):
    mu = jnp.mean(t, axis=-1, keepdims=True)
    var = jnp.mean((t - mu) ** 2, axis=-1, keepdims=True)
    return (t - mu) * jax.lax.rsqrt(var + eps) * g + b

  y = ln(h + a, p["g1"], p["be1"])
  f = jnp.maximum(y @ p["w1"] + p["b1"], 0.0) @ p["w2"] + p["b2"]
  z = ln(y + f, p["g2"], p["be2"])
  return z @ p["wout"] + p["bout"]


if __name__ == "__main__":
  # Small shapes consistent with the module's forward: (B, S, input_dim)
  B, S, D_IN = 2, 8, 16
  HIDDEN, HEADS, DIM_FF, D_OUT = 32, 4, 2048, 17   # PyTorch defaults: ff=2048

  key = jax.random.PRNGKey(0)
  k_param, k_x = jax.random.split(key)
  params = _init_params(k_param, D_IN, HIDDEN, DIM_FF, D_OUT)
  x = jax.random.normal(k_x, (B, S, D_IN), jnp.float32)

  out = simple_transformer_encoder(x, params, num_heads=HEADS)
  out = jax.block_until_ready(out)
  assert out.shape == (B, S, D_OUT), out.shape

  ref = _reference(x, params, num_heads=HEADS)
  max_err = float(jnp.max(jnp.abs(out - ref)))
  assert jnp.allclose(out, ref, atol=1e-2, rtol=1e-2), max_err

  # TODO(synk): dropout (p=0.1) is modeled in eval mode (identity), matching
  # inference-time semantics of the PyTorch module.
  print("KERNEL_OK")
</pallas_src>

<mosaic_0001>
module attributes {stable_mosaic.version = 11 : i64} {
  func.func @_encoder_kernel(%arg0: i32, %arg1: memref<2x8x128xf32, #tpu.memory_space<vmem>>, %arg2: memref<128x128xf32, #tpu.memory_space<vmem>>, %arg3: memref<128x384xf32, #tpu.memory_space<vmem>>, %arg4: memref<128x128xf32, #tpu.memory_space<vmem>>, %arg5: memref<128x2048xbf16, #tpu.memory_space<vmem>>, %arg6: memref<1x2048xf32, #tpu.memory_space<vmem>>, %arg7: memref<2048x128xbf16, #tpu.memory_space<vmem>>, %arg8: memref<128x128xf32, #tpu.memory_space<vmem>>, %arg9: memref<16x128xf32, #tpu.memory_space<vmem>>, %arg10: memref<2x8x128xf32, #tpu.memory_space<vmem>>) attributes {dimension_semantics = [#tpu.dimension_semantics<parallel>], iteration_bounds = array<i64: 1>, scalar_prefetch = 0 : i64, scratch_operands = 0 : i64, tpu.core_type = #tpu.core_type<tc>, window_params = [{transform_indices = @transform_0, window_bounds = array<i64: 2, 8, 128>}, {pipeline_mode = #tpu.pipeline_mode<synchronous>, transform_indices = @transform_1, window_bounds = array<i64: 128, 128>}, {pipeline_mode = #tpu.pipeline_mode<synchronous>, transform_indices = @transform_2, window_bounds = array<i64: 128, 384>}, {pipeline_mode = #tpu.pipeline_mode<synchronous>, transform_indices = @transform_3, window_bounds = array<i64: 128, 128>}, {pipeline_mode = #tpu.pipeline_mode<synchronous>, transform_indices = @transform_4, window_bounds = array<i64: 128, 2048>}, {pipeline_mode = #tpu.pipeline_mode<synchronous>, transform_indices = @transform_5, window_bounds = array<i64: 1, 2048>}, {pipeline_mode = #tpu.pipeline_mode<synchronous>, transform_indices = @transform_6, window_bounds = array<i64: 2048, 128>}, {pipeline_mode = #tpu.pipeline_mode<synchronous>, transform_indices = @transform_7, window_bounds = array<i64: 128, 128>}, {pipeline_mode = #tpu.pipeline_mode<synchronous>, transform_indices = @transform_8, window_bounds = array<i64: 16, 128>}, {transform_indices = @transform_9, window_bounds = array<i64: 2, 8, 128>}]} {
    %c0 = arith.constant 0 : index
    %c0_0 = arith.constant 0 : index
    %c0_1 = arith.constant 0 : index
    %0 = vector.load %arg1[%c0, %c0_0, %c0_1] : memref<2x8x128xf32, #tpu.memory_space<vmem>>, vector<2x8x128xf32>
    %1 = vector.shape_cast %0 : vector<2x8x128xf32> to vector<16x128xf32>
    %c0_2 = arith.constant 0 : index
    %c0_3 = arith.constant 0 : index
    %2 = vector.load %arg9[%c0_2, %c0_3] : memref<16x128xf32, #tpu.memory_space<vmem>>, vector<16x128xf32>
    %3 = vector.extract_strided_slice %2 {offsets = [0, 0], sizes = [1, 128], strides = [1, 1]} : vector<16x128xf32> to vector<1x128xf32>
    %4 = vector.extract_strided_slice %2 {offsets = [1, 0], sizes = [1, 128], strides = [1, 1]} : vector<16x128xf32> to vector<1x128xf32>
    %5 = vector.extract_strided_slice %2 {offsets = [2, 0], sizes = [1, 128], strides = [1, 1]} : vector<16x128xf32> to vector<1x128xf32>
    %6 = vector.extract_strided_slice %2 {offsets = [3, 0], sizes = [1, 128], strides = [1, 1]} : vector<16x128xf32> to vector<1x128xf32>
    %7 = vector.extract_strided_slice %2 {offsets = [4, 0], sizes = [1, 128], strides = [1, 1]} : vector<16x128xf32> to vector<1x128xf32>
    %8 = vector.extract_strided_slice %2 {offsets = [5, 0], sizes = [1, 128], strides = [1, 1]} : vector<16x128xf32> to vector<1x128xf32>
    %9 = vector.extract_strided_slice %2 {offsets = [6, 0], sizes = [1, 128], strides = [1, 1]} : vector<16x128xf32> to vector<1x128xf32>
    %10 = vector.extract_strided_slice %2 {offsets = [7, 0], sizes = [1, 128], strides = [1, 1]} : vector<16x128xf32> to vector<1x128xf32>
    %11 = vector.extract_strided_slice %2 {offsets = [8, 0], sizes = [1, 128], strides = [1, 1]} : vector<16x128xf32> to vector<1x128xf32>
    %12 = vector.extract_strided_slice %2 {offsets = [9, 0], sizes = [1, 128], strides = [1, 1]} : vector<16x128xf32> to vector<1x128xf32>
    %13 = vector.extract_strided_slice %2 {offsets = [10, 0], sizes = [1, 128], strides = [1, 1]} : vector<16x128xf32> to vector<1x128xf32>
    %14 = vector.extract_strided_slice %2 {offsets = [11, 0], sizes = [1, 128], strides = [1, 1]} : vector<16x128xf32> to vector<1x128xf32>
    %c0_4 = arith.constant 0 : index
    %c0_5 = arith.constant 0 : index
    %15 = vector.load %arg2[%c0_4, %c0_5] : memref<128x128xf32, #tpu.memory_space<vmem>>, vector<128x128xf32>
    %cst = arith.constant dense<0.000000e+00> : vector<16x128xf32>
    %16 = tpu.matmul %1, %15, %cst {dimension_numbers = #tpu.dot_dimension_numbers<[1], [0], [0], [1], [0, 0, 1, 1], [], []>} : vector<16x128xf32>, vector<128x128xf32>, vector<16x128xf32> -> vector<16x128xf32>
    %17 = vector.broadcast %3 : vector<1x128xf32> to vector<16x128xf32>
    %18 = arith.addf %16, %17 : vector<16x128xf32>
    %c0_6 = arith.constant 0 : index
    %c0_7 = arith.constant 0 : index
    %19 = vector.load %arg3[%c0_6, %c0_7] : memref<128x384xf32, #tpu.memory_space<vmem>>, vector<128x384xf32>
    %cst_8 = arith.constant dense<0.000000e+00> : vector<16x384xf32>
    %20 = tpu.matmul %18, %19, %cst_8 {dimension_numbers = #tpu.dot_dimension_numbers<[1], [0], [0], [1], [0, 0, 1, 1], [], []>} : vector<16x128xf32>, vector<128x384xf32>, vector<16x384xf32> -> vector<16x384xf32>
    %21 = vector.extract_strided_slice %20 {offsets = [0, 0], sizes = [16, 128], strides = [1, 1]} : vector<16x384xf32> to vector<16x128xf32>
    %22 = vector.broadcast %4 : vector<1x128xf32> to vector<16x128xf32>
    %23 = arith.addf %21, %22 : vector<16x128xf32>
    %24 = vector.shape_cast %23 : vector<16x128xf32> to vector<2x8x128xf32>
    %25 = vector.extract_strided_slice %20 {offsets = [0, 128], sizes = [16, 128], strides = [1, 1]} : vector<16x384xf32> to vector<16x128xf32>
    %26 = vector.broadcast %5 : vector<1x128xf32> to vector<16x128xf32>
    %27 = arith.addf %25, %26 : vector<16x128xf32>
    %28 = vector.shape_cast %27 : vector<16x128xf32> to vector<2x8x128xf32>
    %29 = vector.extract_strided_slice %20 {offsets = [0, 256], sizes = [16, 128], strides = [1, 1]} : vector<16x384xf32> to vector<16x128xf32>
    %30 = vector.broadcast %6 : vector<1x128xf32> to vector<16x128xf32>
    %31 = arith.addf %29, %30 : vector<16x128xf32>
    %32 = vector.shape_cast %31 : vector<16x128xf32> to vector<2x8x128xf32>
    %c0_9 = arith.constant 0 : index
    %c0_10 = arith.constant 0 : index
    %33 = vector.load %arg4[%c0_9, %c0_10] : memref<128x128xf32, #tpu.memory_space<vmem>>, vector<128x128xf32>
    %cst_11 = arith.constant 0.000000e+00 : f32
    %34 = vector.broadcast %cst_11 : f32 to vector<16x128xf32>
    %35 = vector.extract_strided_slice %24 {offsets = [0, 0, 0], sizes = [2, 8, 32], strides = [1, 1, 1]} : vector<2x8x128xf32> to vector<2x8x32xf32>
    %36 = vector.extract_strided_slice %28 {offsets = [0, 0, 0], sizes = [2, 8, 32], strides = [1, 1, 1]} : vector<2x8x128xf32> to vector<2x8x32xf32>
    "tpu.trace_start"() <{level = 10 : i32, message = "bqd,bkd->bqk"}> : () -> ()
    %cst_12 = arith.constant dense<0.000000e+00> : vector<2x8x8xf32>
    %37 = tpu.matmul %35, %36, %cst_12 {dimension_numbers = #tpu.dot_dimension_numbers<[2], [2], [1], [1], [0, 0, 0, 1, 1, 1], [0], [0]>} : vector<2x8x32xf32>, vector<2x8x32xf32>, vector<2x8x8xf32> -> vector<2x8x8xf32>
    "tpu.trace_stop"() : () -> ()
    %cst_13 = arith.constant 0.353553385 : f32
    %38 = vector.broadcast %cst_13 : f32 to vector<2x8x8xf32>
    %39 = arith.mulf %37, %38 : vector<2x8x8xf32>
    %cst_14 = arith.constant dense<0xFF800000> : vector<2x8xf32>
    %40 = vector.multi_reduction <maximumf>, %39, %cst_14 [2] : vector<2x8x8xf32> to vector<2x8xf32>
    %41 = vector.shape_cast %40 : vector<2x8xf32> to vector<2x8x1xf32>
    %42 = vector.broadcast %41 : vector<2x8x1xf32> to vector<2x8x8xf32>
    %43 = arith.subf %39, %42 : vector<2x8x8xf32>
    %44 = math.exp %43 : vector<2x8x8xf32>
    %cst_15 = arith.constant dense<0.000000e+00> : vector<2x8xf32>
    %45 = vector.multi_reduction <add>, %44, %cst_15 [2] : vector<2x8x8xf32> to vector<2x8xf32>
    %46 = vector.shape_cast %45 : vector<2x8xf32> to vector<2x8x1xf32>
    %47 = tpu.reciprocal %46 {approx = true} : vector<2x8x1xf32> -> vector<2x8x1xf32>
    %48 = vector.broadcast %47 : vector<2x8x1xf32> to vector<2x8x8xf32>
    %49 = arith.mulf %44, %48 : vector<2x8x8xf32>
    %50 = vector.extract_strided_slice %32 {offsets = [0, 0, 0], sizes = [2, 8, 32], strides = [1, 1, 1]} : vector<2x8x128xf32> to vector<2x8x32xf32>
    "tpu.trace_start"() <{level = 10 : i32, message = "bqk,bkd->bqd"}> : () -> ()
    %cst_16 = arith.constant dense<0.000000e+00> : vector<2x8x32xf32>
    %51 = tpu.matmul %49, %50, %cst_16 {dimension_numbers = #tpu.dot_dimension_numbers<[2], [1], [1], [2], [0, 0, 0, 1, 1, 2], [0], [0]>} : vector<2x8x8xf32>, vector<2x8x32xf32>, vector<2x8x32xf32> -> vector<2x8x32xf32>
    "tpu.trace_stop"() : () -> ()
    %52 = vector.shape_cast %51 : vector<2x8x32xf32> to vector<16x32xf32>
    %53 = vector.extract_strided_slice %33 {offsets = [0, 0], sizes = [32, 128], strides = [1, 1]} : vector<128x128xf32> to vector<32x128xf32>
    %cst_17 = arith.constant dense<0.000000e+00> : vector<16x128xf32>
    %54 = tpu.matmul %52, %53, %cst_17 {dimension_numbers = #tpu.dot_dimension_numbers<[1], [0], [0], [1], [0, 0, 1, 1], [], []>} : vector<16x32xf32>, vector<32x128xf32>, vector<16x128xf32> -> vector<16x128xf32>
    %55 = arith.addf %34, %54 : vector<16x128xf32>
    %56 = vector.extract_strided_slice %24 {offsets = [0, 0, 32], sizes = [2, 8, 32], strides = [1, 1, 1]} : vector<2x8x128xf32> to vector<2x8x32xf32>
    %57 = vector.extract_strided_slice %28 {offsets = [0, 0, 32], sizes = [2, 8, 32], strides = [1, 1, 1]} : vector<2x8x128xf32> to vector<2x8x32xf32>
    "tpu.trace_start"() <{level = 10 : i32, message = "bqd,bkd->bqk"}> : () -> ()
    %cst_18 = arith.constant dense<0.000000e+00> : vector<2x8x8xf32>
    %58 = tpu.matmul %56, %57, %cst_18 {dimension_numbers = #tpu.dot_dimension_numbers<[2], [2], [1], [1], [0, 0, 0, 1, 1, 1], [0], [0]>} : vector<2x8x32xf32>, vector<2x8x32xf32>, vector<2x8x8xf32> -> vector<2x8x8xf32>
    "tpu.trace_stop"() : () -> ()
    %cst_19 = arith.constant 0.353553385 : f32
    %59 = vector.broadcast %cst_19 : f32 to vector<2x8x8xf32>
    %60 = arith.mulf %58, %59 : vector<2x8x8xf32>
    %cst_20 = arith.constant dense<0xFF800000> : vector<2x8xf32>
    %61 = vector.multi_reduction <maximumf>, %60, %cst_20 [2] : vector<2x8x8xf32> to vector<2x8xf32>
    %62 = vector.shape_cast %61 : vector<2x8xf32> to vector<2x8x1xf32>
    %63 = vector.broadcast %62 : vector<2x8x1xf32> to vector<2x8x8xf32>
    %64 = arith.subf %60, %63 : vector<2x8x8xf32>
    %65 = math.exp %64 : vector<2x8x8xf32>
    %cst_21 = arith.constant dense<0.000000e+00> : vector<2x8xf32>
    %66 = vector.multi_reduction <add>, %65, %cst_21 [2] : vector<2x8x8xf32> to vector<2x8xf32>
    %67 = vector.shape_cast %66 : vector<2x8xf32> to vector<2x8x1xf32>
    %68 = tpu.reciprocal %67 {approx = true} : vector<2x8x1xf32> -> vector<2x8x1xf32>
    %69 = vector.broadcast %68 : vector<2x8x1xf32> to vector<2x8x8xf32>
    %70 = arith.mulf %65, %69 : vector<2x8x8xf32>
    %71 = vector.extract_strided_slice %32 {offsets = [0, 0, 32], sizes = [2, 8, 32], strides = [1, 1, 1]} : vector<2x8x128xf32> to vector<2x8x32xf32>
    "tpu.trace_start"() <{level = 10 : i32, message = "bqk,bkd->bqd"}> : () -> ()
    %cst_22 = arith.constant dense<0.000000e+00> : vector<2x8x32xf32>
    %72 = tpu.matmul %70, %71, %cst_22 {dimension_numbers = #tpu.dot_dimension_numbers<[2], [1], [1], [2], [0, 0, 0, 1, 1, 2], [0], [0]>} : vector<2x8x8xf32>, vector<2x8x32xf32>, vector<2x8x32xf32> -> vector<2x8x32xf32>
    "tpu.trace_stop"() : () -> ()
    %73 = vector.shape_cast %72 : vector<2x8x32xf32> to vector<16x32xf32>
    %74 = vector.extract_strided_slice %33 {offsets = [32, 0], sizes = [32, 128], strides = [1, 1]} : vector<128x128xf32> to vector<32x128xf32>
    %cst_23 = arith.constant dense<0.000000e+00> : vector<16x128xf32>
    %75 = tpu.matmul %73, %74, %cst_23 {dimension_numbers = #tpu.dot_dimension_numbers<[1], [0], [0], [1], [0, 0, 1, 1], [], []>} : vector<16x32xf32>, vector<32x128xf32>, vector<16x128xf32> -> vector<16x128xf32>
    %76 = arith.addf %55, %75 : vector<16x128xf32>
    %77 = vector.extract_strided_slice %24 {offsets = [0, 0, 64], sizes = [2, 8, 32], strides = [1, 1, 1]} : vector<2x8x128xf32> to vector<2x8x32xf32>
    %78 = vector.extract_strided_slice %28 {offsets = [0, 0, 64], sizes = [2, 8, 32], strides = [1, 1, 1]} : vector<2x8x128xf32> to vector<2x8x32xf32>
    "tpu.trace_start"() <{level = 10 : i32, message = "bqd,bkd->bqk"}> : () -> ()
    %cst_24 = arith.constant dense<0.000000e+00> : vector<2x8x8xf32>
    %79 = tpu.matmul %77, %78, %cst_24 {dimension_numbers = #tpu.dot_dimension_numbers<[2], [2], [1], [1], [0, 0, 0, 1, 1, 1], [0], [0]>} : vector<2x8x32xf32>, vector<2x8x32xf32>, vector<2x8x8xf32> -> vector<2x8x8xf32>
    "tpu.trace_stop"() : () -> ()
    %cst_25 = arith.constant 0.353553385 : f32
    %80 = vector.broadcast %cst_25 : f32 to vector<2x8x8xf32>
    %81 = arith.mulf %79, %80 : vector<2x8x8xf32>
    %cst_26 = arith.constant dense<0xFF800000> : vector<2x8xf32>
    %82 = vector.multi_reduction <maximumf>, %81, %cst_26 [2] : vector<2x8x8xf32> to vector<2x8xf32>
    %83 = vector.shape_cast %82 : vector<2x8xf32> to vector<2x8x1xf32>
    %84 = vector.broadcast %83 : vector<2x8x1xf32> to vector<2x8x8xf32>
    %85 = arith.subf %81, %84 : vector<2x8x8xf32>
    %86 = math.exp %85 : vector<2x8x8xf32>
    %cst_27 = arith.constant dense<0.000000e+00> : vector<2x8xf32>
    %87 = vector.multi_reduction <add>, %86, %cst_27 [2] : vector<2x8x8xf32> to vector<2x8xf32>
    %88 = vector.shape_cast %87 : vector<2x8xf32> to vector<2x8x1xf32>
    %89 = tpu.reciprocal %88 {approx = true} : vector<2x8x1xf32> -> vector<2x8x1xf32>
    %90 = vector.broadcast %89 : vector<2x8x1xf32> to vector<2x8x8xf32>
    %91 = arith.mulf %86, %90 : vector<2x8x8xf32>
    %92 = vector.extract_strided_slice %32 {offsets = [0, 0, 64], sizes = [2, 8, 32], strides = [1, 1, 1]} : vector<2x8x128xf32> to vector<2x8x32xf32>
    "tpu.trace_start"() <{level = 10 : i32, message = "bqk,bkd->bqd"}> : () -> ()
    %cst_28 = arith.constant dense<0.000000e+00> : vector<2x8x32xf32>
    %93 = tpu.matmul %91, %92, %cst_28 {dimension_numbers = #tpu.dot_dimension_numbers<[2], [1], [1], [2], [0, 0, 0, 1, 1, 2], [0], [0]>} : vector<2x8x8xf32>, vector<2x8x32xf32>, vector<2x8x32xf32> -> vector<2x8x32xf32>
    "tpu.trace_stop"() : () -> ()
    %94 = vector.shape_cast %93 : vector<2x8x32xf32> to vector<16x32xf32>
    %95 = vector.extract_strided_slice %33 {offsets = [64, 0], sizes = [32, 128], strides = [1, 1]} : vector<128x128xf32> to vector<32x128xf32>
    %cst_29 = arith.constant dense<0.000000e+00> : vector<16x128xf32>
    %96 = tpu.matmul %94, %95, %cst_29 {dimension_numbers = #tpu.dot_dimension_numbers<[1], [0], [0], [1], [0, 0, 1, 1], [], []>} : vector<16x32xf32>, vector<32x128xf32>, vector<16x128xf32> -> vector<16x128xf32>
    %97 = arith.addf %76, %96 : vector<16x128xf32>
    %98 = vector.extract_strided_slice %24 {offsets = [0, 0, 96], sizes = [2, 8, 32], strides = [1, 1, 1]} : vector<2x8x128xf32> to vector<2x8x32xf32>
    %99 = vector.extract_strided_slice %28 {offsets = [0, 0, 96], sizes = [2, 8, 32], strides = [1, 1, 1]} : vector<2x8x128xf32> to vector<2x8x32xf32>
    "tpu.trace_start"() <{level = 10 : i32, message = "bqd,bkd->bqk"}> : () -> ()
    %cst_30 = arith.constant dense<0.000000e+00> : vector<2x8x8xf32>
    %100 = tpu.matmul %98, %99, %cst_30 {dimension_numbers = #tpu.dot_dimension_numbers<[2], [2], [1], [1], [0, 0, 0, 1, 1, 1], [0], [0]>} : vector<2x8x32xf32>, vector<2x8x32xf32>, vector<2x8x8xf32> -> vector<2x8x8xf32>
    "tpu.trace_stop"() : () -> ()
    %cst_31 = arith.constant 0.353553385 : f32
    %101 = vector.broadcast %cst_31 : f32 to vector<2x8x8xf32>
    %102 = arith.mulf %100, %101 : vector<2x8x8xf32>
    %cst_32 = arith.constant dense<0xFF800000> : vector<2x8xf32>
    %103 = vector.multi_reduction <maximumf>, %102, %cst_32 [2] : vector<2x8x8xf32> to vector<2x8xf32>
    %104 = vector.shape_cast %103 : vector<2x8xf32> to vector<2x8x1xf32>
    %105 = vector.broadcast %104 : vector<2x8x1xf32> to vector<2x8x8xf32>
    %106 = arith.subf %102, %105 : vector<2x8x8xf32>
    %107 = math.exp %106 : vector<2x8x8xf32>
    %cst_33 = arith.constant dense<0.000000e+00> : vector<2x8xf32>
    %108 = vector.multi_reduction <add>, %107, %cst_33 [2] : vector<2x8x8xf32> to vector<2x8xf32>
    %109 = vector.shape_cast %108 : vector<2x8xf32> to vector<2x8x1xf32>
    %110 = tpu.reciprocal %109 {approx = true} : vector<2x8x1xf32> -> vector<2x8x1xf32>
    %111 = vector.broadcast %110 : vector<2x8x1xf32> to vector<2x8x8xf32>
    %112 = arith.mulf %107, %111 : vector<2x8x8xf32>
    %113 = vector.extract_strided_slice %32 {offsets = [0, 0, 96], sizes = [2, 8, 32], strides = [1, 1, 1]} : vector<2x8x128xf32> to vector<2x8x32xf32>
    "tpu.trace_start"() <{level = 10 : i32, message = "bqk,bkd->bqd"}> : () -> ()
    %cst_34 = arith.constant dense<0.000000e+00> : vector<2x8x32xf32>
    %114 = tpu.matmul %112, %113, %cst_34 {dimension_numbers = #tpu.dot_dimension_numbers<[2], [1], [1], [2], [0, 0, 0, 1, 1, 2], [0], [0]>} : vector<2x8x8xf32>, vector<2x8x32xf32>, vector<2x8x32xf32> -> vector<2x8x32xf32>
    "tpu.trace_stop"() : () -> ()
    %115 = vector.shape_cast %114 : vector<2x8x32xf32> to vector<16x32xf32>
    %116 = vector.extract_strided_slice %33 {offsets = [96, 0], sizes = [32, 128], strides = [1, 1]} : vector<128x128xf32> to vector<32x128xf32>
    %cst_35 = arith.constant dense<0.000000e+00> : vector<16x128xf32>
    %117 = tpu.matmul %115, %116, %cst_35 {dimension_numbers = #tpu.dot_dimension_numbers<[1], [0], [0], [1], [0, 0, 1, 1], [], []>} : vector<16x32xf32>, vector<32x128xf32>, vector<16x128xf32> -> vector<16x128xf32>
    %118 = arith.addf %97, %117 : vector<16x128xf32>
    %119 = vector.broadcast %7 : vector<1x128xf32> to vector<16x128xf32>
    %120 = arith.addf %118, %119 : vector<16x128xf32>
    %121 = arith.addf %18, %120 : vector<16x128xf32>
    %cst_36 = arith.constant dense<0.000000e+00> : vector<16xf32>
    %122 = vector.multi_reduction <add>, %121, %cst_36 [1] : vector<16x128xf32> to vector<16xf32>
    %123 = vector.shape_cast %122 : vector<16xf32> to vector<16x1xf32>
    %cst_37 = arith.constant 3.125000e-02 : f32
    %124 = vector.broadcast %cst_37 : f32 to vector<16x1xf32>
    %125 = arith.mulf %123, %124 : vector<16x1xf32>
    %126 = vector.broadcast %125 : vector<16x1xf32> to vector<16x128xf32>
    %127 = arith.subf %121, %126 : vector<16x128xf32>
    %128 = vector.broadcast %14 : vector<1x128xf32> to vector<16x128xf32>
    %129 = arith.mulf %127, %128 : vector<16x128xf32>
    %130 = arith.mulf %129, %129 : vector<16x128xf32>
    %cst_38 = arith.constant dense<0.000000e+00> : vector<16xf32>
    %131 = vector.multi_reduction <add>, %130, %cst_38 [1] : vector<16x128xf32> to vector<16xf32>
    %132 = vector.shape_cast %131 : vector<16xf32> to vector<16x1xf32>
    %cst_39 = arith.constant 3.125000e-02 : f32
    %133 = vector.broadcast %cst_39 : f32 to vector<16x1xf32>
    %134 = arith.mulf %132, %133 : vector<16x1xf32>
    %cst_40 = arith.constant 9.99999974E-6 : f32
    %135 = vector.broadcast %cst_40 : f32 to vector<16x1xf32>
    %136 = arith.addf %134, %135 : vector<16x1xf32>
    %137 = math.rsqrt %136 : vector<16x1xf32>
    %138 = vector.broadcast %137 : vector<16x1xf32> to vector<16x128xf32>
    %139 = arith.mulf %129, %138 : vector<16x128xf32>
    %140 = vector.broadcast %8 : vector<1x128xf32> to vector<16x128xf32>
    %141 = arith.mulf %139, %140 : vector<16x128xf32>
    %142 = vector.broadcast %9 : vector<1x128xf32> to vector<16x128xf32>
    %143 = arith.addf %141, %142 : vector<16x128xf32>
    %c0_41 = arith.constant 0 : index
    %c0_42 = arith.constant 0 : index
    %144 = vector.load %arg5[%c0_41, %c0_42] : memref<128x2048xbf16, #tpu.memory_space<vmem>>, vector<128x2048xbf16>
    %145 = arith.extf %144 : vector<128x2048xbf16> to vector<128x2048xf32>
    %cst_43 = arith.constant dense<0.000000e+00> : vector<16x2048xf32>
    %146 = tpu.matmul %143, %145, %cst_43 {dimension_numbers = #tpu.dot_dimension_numbers<[1], [0], [0], [1], [0, 0, 1, 1], [], []>} : vector<16x128xf32>, vector<128x2048xf32>, vector<16x2048xf32> -> vector<16x2048xf32>
    %c0_44 = arith.constant 0 : index
    %c0_45 = arith.constant 0 : index
    %147 = vector.load %arg6[%c0_44, %c0_45] : memref<1x2048xf32, #tpu.memory_space<vmem>>, vector<1x2048xf32>
    %148 = vector.broadcast %147 : vector<1x2048xf32> to vector<16x2048xf32>
    %149 = arith.addf %146, %148 : vector<16x2048xf32>
    %cst_46 = arith.constant 0.000000e+00 : f32
    %150 = vector.broadcast %cst_46 : f32 to vector<16x2048xf32>
    %151 = arith.maximumf %149, %150 : vector<16x2048xf32>
    %c0_47 = arith.constant 0 : index
    %c0_48 = arith.constant 0 : index
    %152 = vector.load %arg7[%c0_47, %c0_48] : memref<2048x128xbf16, #tpu.memory_space<vmem>>, vector<2048x128xbf16>
    %153 = arith.extf %152 : vector<2048x128xbf16> to vector<2048x128xf32>
    %cst_49 = arith.constant dense<0.000000e+00> : vector<16x128xf32>
    %154 = tpu.matmul %151, %153, %cst_49 {dimension_numbers = #tpu.dot_dimension_numbers<[1], [0], [0], [1], [0, 0, 1, 1], [], []>} : vector<16x2048xf32>, vector<2048x128xf32>, vector<16x128xf32> -> vector<16x128xf32>
    %155 = vector.broadcast %10 : vector<1x128xf32> to vector<16x128xf32>
    %156 = arith.addf %154, %155 : vector<16x128xf32>
    %157 = arith.addf %143, %156 : vector<16x128xf32>
    %cst_50 = arith.constant dense<0.000000e+00> : vector<16xf32>
    %158 = vector.multi_reduction <add>, %157, %cst_50 [1] : vector<16x128xf32> to vector<16xf32>
    %159 = vector.shape_cast %158 : vector<16xf32> to vector<16x1xf32>
    %cst_51 = arith.constant 3.125000e-02 : f32
    %160 = vector.broadcast %cst_51 : f32 to vector<16x1xf32>
    %161 = arith.mulf %159, %160 : vector<16x1xf32>
    %162 = vector.broadcast %161 : vector<16x1xf32> to vector<16x128xf32>
    %163 = arith.subf %157, %162 : vector<16x128xf32>
    %164 = vector.broadcast %14 : vector<1x128xf32> to vector<16x128xf32>
    %165 = arith.mulf %163, %164 : vector<16x128xf32>
    %166 = arith.mulf %165, %165 : vector<16x128xf32>
    %cst_52 = arith.constant dense<0.000000e+00> : vector<16xf32>
    %167 = vector.multi_reduction <add>, %166, %cst_52 [1] : vector<16x128xf32> to vector<16xf32>
    %168 = vector.shape_cast %167 : vector<16xf32> to vector<16x1xf32>
    %cst_53 = arith.constant 3.125000e-02 : f32
    %169 = vector.broadcast %cst_53 : f32 to vector<16x1xf32>
    %170 = arith.mulf %168, %169 : vector<16x1xf32>
    %cst_54 = arith.constant 9.99999974E-6 : f32
    %171 = vector.broadcast %cst_54 : f32 to vector<16x1xf32>
    %172 = arith.addf %170, %171 : vector<16x1xf32>
    %173 = math.rsqrt %172 : vector<16x1xf32>
    %174 = vector.broadcast %173 : vector<16x1xf32> to vector<16x128xf32>
    %175 = arith.mulf %165, %174 : vector<16x128xf32>
    %176 = vector.broadcast %11 : vector<1x128xf32> to vector<16x128xf32>
    %177 = arith.mulf %175, %176 : vector<16x128xf32>
    %178 = vector.broadcast %12 : vector<1x128xf32> to vector<16x128xf32>
    %179 = arith.addf %177, %178 : vector<16x128xf32>
    %c0_55 = arith.constant 0 : index
    %c0_56 = arith.constant 0 : index
    %180 = vector.load %arg8[%c0_55, %c0_56] : memref<128x128xf32, #tpu.memory_space<vmem>>, vector<128x128xf32>
    %cst_57 = arith.constant dense<0.000000e+00> : vector<16x128xf32>
    %181 = tpu.matmul %179, %180, %cst_57 {dimension_numbers = #tpu.dot_dimension_numbers<[1], [0], [0], [1], [0, 0, 1, 1], [], []>} : vector<16x128xf32>, vector<128x128xf32>, vector<16x128xf32> -> vector<16x128xf32>
    %182 = vector.broadcast %13 : vector<1x128xf32> to vector<16x128xf32>
    %183 = arith.addf %181, %182 : vector<16x128xf32>
    %184 = vector.shape_cast %183 : vector<16x128xf32> to vector<2x8x128xf32>
    %c0_58 = arith.constant 0 : index
    %c0_59 = arith.constant 0 : index
    %c0_60 = arith.constant 0 : index
    %185 = vector.load %arg10[%c0_58, %c0_59, %c0_60] : memref<2x8x128xf32, #tpu.memory_space<vmem>>, vector<2x8x128xf32>
    tpu.vector_store %arg10[%c0_58, %c0_59, %c0_60], %184 {strides = array<i32>} : memref<2x8x128xf32, #tpu.memory_space<vmem>>, vector<2x8x128xf32>,
    return
  }
  func.func @transform_0(%arg0: i32) -> (i32, i32, i32) {
    %c0_i32 = arith.constant 0 : i32
    %c0_i32_0 = arith.constant 0 : i32
    %c0_i32_1 = arith.constant 0 : i32
    return %arg0, %c0_i32, %c0_i32_0 : i32, i32, i32
  }
  func.func @transform_1(%arg0: i32) -> (i32, i32) {
    %c0_i32 = arith.constant 0 : i32
    %c0_i32_0 = arith.constant 0 : i32
    %c0_i32_1 = arith.constant 0 : i32
    return %c0_i32, %c0_i32_0 : i32, i32
  }
  func.func @transform_2(%arg0: i32) -> (i32, i32) {
    %c0_i32 = arith.constant 0 : i32
    %c0_i32_0 = arith.constant 0 : i32
    %c0_i32_1 = arith.constant 0 : i32
    return %c0_i32, %c0_i32_0 : i32, i32
  }
  func.func @transform_3(%arg0: i32) -> (i32, i32) {
    %c0_i32 = arith.constant 0 : i32
    %c0_i32_0 = arith.constant 0 : i32
    %c0_i32_1 = arith.constant 0 : i32
    return %c0_i32, %c0_i32_0 : i32, i32
  }
  func.func @transform_4(%arg0: i32) -> (i32, i32) {
    %c0_i32 = arith.constant 0 : i32
    %c0_i32_0 = arith.constant 0 : i32
    %c0_i32_1 = arith.constant 0 : i32
    return %c0_i32, %c0_i32_0 : i32, i32
  }
  func.func @transform_5(%arg0: i32) -> (i32, i32) {
    %c0_i32 = arith.constant 0 : i32
    %c0_i32_0 = arith.constant 0 : i32
    %c0_i32_1 = arith.constant 0 : i32
    return %c0_i32, %c0_i32_0 : i32, i32
  }
  func.func @transform_6(%arg0: i32) -> (i32, i32) {
    %c0_i32 = arith.constant 0 : i32
    %c0_i32_0 = arith.constant 0 : i32
    %c0_i32_1 = arith.constant 0 : i32
    return %c0_i32, %c0_i32_0 : i32, i32
  }
  func.func @transform_7(%arg0: i32) -> (i32, i32) {
    %c0_i32 = arith.constant 0 : i32
    %c0_i32_0 = arith.constant 0 : i32
    %c0_i32_1 = arith.constant 0 : i32
    return %c0_i32, %c0_i32_0 : i32, i32
  }
  func.func @transform_8(%arg0: i32) -> (i32, i32) {
    %c0_i32 = arith.constant 0 : i32
    %c0_i32_0 = arith.constant 0 : i32
    %c0_i32_1 = arith.constant 0 : i32
    return %c0_i32, %c0_i32_0 : i32, i32
  }
  func.func @transform_9(%arg0: i32) -> (i32, i32, i32) {
    %c0_i32 = arith.constant 0 : i32
    %c0_i32_0 = arith.constant 0 : i32
    %c0_i32_1 = arith.constant 0 : i32
    return %arg0, %c0_i32, %c0_i32_0 : i32, i32, i32
  }
}

</mosaic_0001>

<llo_original>
// kernel: tpu_custom_call.1
$region0: #{tpu_custom_call.1}
  #allocation0 [shape = 'u32[]', space=smem, size = 0x4, offset = 0x4, fixed_abs, tag = 'smem constant byte address 0x4 - core index']
  #allocation1 [shape = 'u32[144,128]{1,0:T(1,128)}', space=vmem, size = 0x12000, scoped, tag = 'internal scratch']
  %s0 = inlined_call_operand.hbm [shape: f32[2,8,128], index: 0, kind: input, shape index: {}]
  %s1 = inlined_call_operand.hbm [shape: f32[128,128], index: 1, kind: input, shape index: {}]
  %s2 = inlined_call_operand.hbm [shape: f32[128,384], index: 2, kind: input, shape index: {}]
  %s3 = inlined_call_operand.hbm [shape: f32[128,128], index: 3, kind: input, shape index: {}]
  %s4 = inlined_call_operand.hbm [shape: bf16[128,2048], index: 4, kind: input, shape index: {}]
  %s5 = inlined_call_operand.hbm [shape: f32[1,2048], index: 5, kind: input, shape index: {}]
  %s6 = inlined_call_operand.hbm [shape: bf16[2048,128], index: 6, kind: input, shape index: {}]
  %s7 = inlined_call_operand.hbm [shape: f32[128,128], index: 7, kind: input, shape index: {}]
  %s8 = inlined_call_operand.hbm [shape: f32[16,128], index: 8, kind: input, shape index: {}]
  %s9 = inlined_call_operand.hbm [shape: f32[2,8,128], index: 9, kind: output, shape index: {}]
  %s10 = sld [smem:[#allocation0]]
  $region82: #{tpu_custom_call.1} parent=0
    _
  %s12 = ssub.s32 1, %s10
  %s13 = scalar_select 0, %s12, %s10
  $region1: #{tpu_custom_call.1} parent=0
    #allocation2 [shape = 'u8[8192]{0}', space=vmem, size = 0x2000, scoped, tag = 'input window, operand 0, single buffered']
    #allocation3 [shape = 's32[1]{0}', space=sflag, size = 0x4, scoped, tag = 'scoped memory for tpu_custom_call.1']
    #allocation4 [shape = 's32[1]{0}', space=sflag, size = 0x4, scoped, tag = 'scoped memory for tpu_custom_call.1']
    #allocation5 [shape = 'u8[65536]{0}', space=vmem, size = 0x10000, scoped, tag = 'input window, operand 1, single buffered']
    #allocation6 [shape = 's32[1]{0}', space=sflag, size = 0x4, scoped, tag = 'scoped memory for tpu_custom_call.1']
    #allocation7 [shape = 'u8[196608]{0}', space=vmem, size = 0x30000, scoped, tag = 'input window, operand 2, single buffered']
    #allocation8 [shape = 'u8[65536]{0}', space=vmem, size = 0x10000, scoped, tag = 'input window, operand 3, single buffered']
    #allocation9 [shape = 's32[1]{0}', space=sflag, size = 0x4, scoped, tag = 'scoped memory for tpu_custom_call.1']
    #allocation10 [shape = 'u8[524288]{0}', space=vmem, size = 0x80000, scoped, tag = 'input window, operand 4, single buffered']
    #allocation11 [shape = 'u8[8192]{0}', space=vmem, size = 0x2000, scoped, tag = 'input window, operand 5, single buffered']
    #allocation12 [shape = 's32[1]{0}', space=sflag, size = 0x4, scoped, tag = 'scoped memory for tpu_custom_call.1']
    #allocation13 [shape = 'u8[524288]{0}', space=vmem, size = 0x80000, scoped, tag = 'input window, operand 6, single buffered']
    #allocation14 [shape = 'u8[65536]{0}', space=vmem, size = 0x10000, scoped, tag = 'input window, operand 7, single buffered']
    #allocation15 [shape = 's32[1]{0}', space=sflag, size = 0x4, scoped, tag = 'scoped memory for tpu_custom_call.1']
    #allocation16 [shape = 'u8[8192]{0}', space=vmem, size = 0x2000, scoped, tag = 'input window, operand 8, single buffered']
    #allocation17 [shape = 'u8[8192]{0}', space=vmem, size = 0x2000, scoped, tag = 'output window, operand 0, single buffered']
    %14 = vsyncpa [#allocation3], 0
    %15 = vsyncpa [#allocation6], 0
    %16 = vsyncpa [#allocation9], 0
    %17 = vsyncpa [#allocation12], 0
    %18 = vsyncpa [#allocation15], 0
    %19 = vsyncpa [#allocation4], 0
    // Predicated region
    $region2: #{tpu_custom_call.1} parent=1 // pred_check
      _
    $region3: #{tpu_custom_call.1} parent=1 // pred_check_branch
      %21 = sbr.rel (0) target = $region5
    $region4: #{tpu_custom_call.1} parent=1 // pred_region
      %s23 = ssub.s32 256, 256
      %24 = vsyncadd [#allocation3], %s23
      %s25 = sshll.u32 [#allocation2], 4
      %s26 = int_to_ptr.vmem [resolvable:$true] %s25
      %31 = dma.hbm_to_vmem [thread:$0]  %s0, 256, %s26, [#allocation3], 128, 128, 8
    $region5: #{tpu_custom_call.1} parent=1 // pred_fallthru
      _
    // Predicated region
    $region6: #{tpu_custom_call.1} parent=1 // pred_check
      _
    $region7: #{tpu_custom_call.1} parent=1 // pred_check_branch
      %33 = sbr.rel (0) target = $region9
    $region8: #{tpu_custom_call.1} parent=1 // pred_region
      %s35 = ssub.s32 2048, 2048
      %36 = vsyncadd [#allocation6], %s35
      %s37 = sshll.u32 [#allocation5], 4
      %s38 = int_to_ptr.vmem [resolvable:$true] %s37
      %43 = dma.hbm_to_vmem [thread:$0]  %s1, 2048, %s38, [#allocation6], 128, 128, 8
    $region9: #{tpu_custom_call.1} parent=1 // pred_fallthru
      _
    // Predicated region
    $region10: #{tpu_custom_call.1} parent=1 // pred_check
      _
    $region11: #{tpu_custom_call.1} parent=1 // pred_check_branch
      %45 = sbr.rel (0) target = $region13
    $region12: #{tpu_custom_call.1} parent=1 // pred_region
      %s47 = ssub.s32 6144, 6144
      %48 = vsyncadd [#allocation6], %s47
      %s49 = sshll.u32 [#allocation7], 4
      %s50 = int_to_ptr.vmem [resolvable:$true] %s49
      %55 = dma.hbm_to_vmem [thread:$0]  %s2, 6144, %s50, [#allocation6], 384, 384, 24
    $region13: #{tpu_custom_call.1} parent=1 // pred_fallthru
      _
    // Predicated region
    $region14: #{tpu_custom_call.1} parent=1 // pred_check
      _
    $region15: #{tpu_custom_call.1} parent=1 // pred_check_branch
      %57 = sbr.rel (0) target = $region17
    $region16: #{tpu_custom_call.1} parent=1 // pred_region
      %s59 = ssub.s32 2048, 2048
      %60 = vsyncadd [#allocation9], %s59
      %s61 = sshll.u32 [#allocation8], 4
      %s62 = int_to_ptr.vmem [resolvable:$true] %s61
      %67 = dma.hbm_to_vmem [thread:$0]  %s3, 2048, %s62, [#allocation9], 128, 128, 8
    $region17: #{tpu_custom_call.1} parent=1 // pred_fallthru
      _
    // Predicated region
    $region18: #{tpu_custom_call.1} parent=1 // pred_check
      _
    $region19: #{tpu_custom_call.1} parent=1 // pred_check_branch
      %69 = sbr.rel (0) target = $region21
    $region20: #{tpu_custom_call.1} parent=1 // pred_region
      %s71 = ssub.s32 16384, 16384
      %72 = vsyncadd [#allocation9], %s71
      %s73 = sshll.u32 [#allocation10], 4
      %s74 = int_to_ptr.vmem [resolvable:$true] %s73
      %79 = dma.hbm_to_vmem [thread:$0]  %s4, 16384, %s74, [#allocation9], 1024, 1024, 64
    $region21: #{tpu_custom_call.1} parent=1 // pred_fallthru
      _
    // Predicated region
    $region22: #{tpu_custom_call.1} parent=1 // pred_check
      _
    $region23: #{tpu_custom_call.1} parent=1 // pred_check_branch
      %81 = sbr.rel (0) target = $region25
    $region24: #{tpu_custom_call.1} parent=1 // pred_region
      %s83 = ssub.s32 256, 256
      %84 = vsyncadd [#allocation12], %s83
      %s86 = sshll.u32 [#allocation11], 4
      %s87 = int_to_ptr.vmem [resolvable:$true] %s86
      %89 = dma.hbm_to_vmem [thread:$0]  %s5, 256, %s87, [#allocation12]
    $region25: #{tpu_custom_call.1} parent=1 // pred_fallthru
      _
    // Predicated region
    $region26: #{tpu_custom_call.1} parent=1 // pred_check
      _
    $region27: #{tpu_custom_call.1} parent=1 // pred_check_branch
      %91 = sbr.rel (0) target = $region29
    $region28: #{tpu_custom_call.1} parent=1 // pred_region
      %s93 = ssub.s32 16384, 16384
      %94 = vsyncadd [#allocation12], %s93
      %s95 = sshll.u32 [#allocation13], 4
      %s96 = int_to_ptr.vmem [resolvable:$true] %s95
      %101 = dma.hbm_to_vmem [thread:$0]  %s6, 16384, %s96, [#allocation12], 64, 64, 4
    $region29: #{tpu_custom_call.1} parent=1 // pred_fallthru
      _
    // Predicated region
    $region30: #{tpu_custom_call.1} parent=1 // pred_check
      _
    $region31: #{tpu_custom_call.1} parent=1 // pred_check_branch
      %103 = sbr.rel (0) target = $region33
    $region32: #{tpu_custom_call.1} parent=1 // pred_region
      %s105 = ssub.s32 2048, 2048
      %106 = vsyncadd [#allocation15], %s105
      %s107 = sshll.u32 [#allocation14], 4
      %s108 = int_to_ptr.vmem [resolvable:$true] %s107
      %113 = dma.hbm_to_vmem [thread:$0]  %s7, 2048, %s108, [#allocation15], 128, 128, 8
    $region33: #{tpu_custom_call.1} parent=1 // pred_fallthru
      _
    // Predicated region
    $region34: #{tpu_custom_call.1} parent=1 // pred_check
      _
    $region35: #{tpu_custom_call.1} parent=1 // pred_check_branch
      %115 = sbr.rel (0) target = $region37
    $region36: #{tpu_custom_call.1} parent=1 // pred_region
      %s117 = ssub.s32 256, 256
      %118 = vsyncadd [#allocation15], %s117
      %s119 = sshll.u32 [#allocation16], 4
      %s120 = int_to_ptr.vmem [resolvable:$true] %s119
      %125 = dma.hbm_to_vmem [thread:$0]  %s8, 256, %s120, [#allocation15], 128, 128, 8
    $region37: #{tpu_custom_call.1} parent=1 // pred_fallthru
      _
    // Predicated region
    $region38: #{tpu_custom_call.1} parent=1 // pred_check
      _
    $region39: #{tpu_custom_call.1} parent=1 // pred_check_branch
      %127 = sbr.rel (0) target = $region41
    $region40: #{tpu_custom_call.1} parent=1 // pred_region
      %128 = dma.done [#allocation3], 256
    $region41: #{tpu_custom_call.1} parent=1 // pred_fallthru
      _
    // Predicated region
    $region42: #{tpu_custom_call.1} parent=1 // pred_check
      _
    $region43: #{tpu_custom_call.1} parent=1 // pred_check_branch
      %130 = sbr.rel (0) target = $region45
    $region44: #{tpu_custom_call.1} parent=1 // pred_region
      %131 = dma.done [#allocation6], 2048
    $region45: #{tpu_custom_call.1} parent=1 // pred_fallthru
      _
    // Predicated region
    $region46: #{tpu_custom_call.1} parent=1 // pred_check
      _
    $region47: #{tpu_custom_call.1} parent=1 // pred_check_branch
      %133 = sbr.rel (0) target = $region49
    $region48: #{tpu_custom_call.1} parent=1 // pred_region
      %134 = dma.done [#allocation6], 6144
    $region49: #{tpu_custom_call.1} parent=1 // pred_fallthru
      _
    // Predicated region
    $region50: #{tpu_custom_call.1} parent=1 // pred_check
      _
    $region51: #{tpu_custom_call.1} parent=1 // pred_check_branch
      %136 = sbr.rel (0) target = $region53
    $region52: #{tpu_custom_call.1} parent=1 // pred_region
      %137 = dma.done [#allocation9], 2048
    $region53: #{tpu_custom_call.1} parent=1 // pred_fallthru
      _
    // Predicated region
    $region54: #{tpu_custom_call.1} parent=1 // pred_check
      _
    $region55: #{tpu_custom_call.1} parent=1 // pred_check_branch
      %139 = sbr.rel (0) target = $region57
    $region56: #{tpu_custom_call.1} parent=1 // pred_region
      %140 = dma.done [#allocation9], 16384
    $region57: #{tpu_custom_call.1} parent=1 // pred_fallthru
      _
    // Predicated region
    $region58: #{tpu_custom_call.1} parent=1 // pred_check
      _
    $region59: #{tpu_custom_call.1} parent=1 // pred_check_branch
      %142 = sbr.rel (0) target = $region61
    $region60: #{tpu_custom_call.1} parent=1 // pred_region
      %143 = dma.done [#allocation12], 256
    $region61: #{tpu_custom_call.1} parent=1 // pred_fallthru
      _
    // Predicated region
    $region62: #{tpu_custom_call.1} parent=1 // pred_check
      _
    $region63: #{tpu_custom_call.1} parent=1 // pred_check_branch
      %145 = sbr.rel (0) target = $region65
    $region64: #{tpu_custom_call.1} parent=1 // pred_region
      %146 = dma.done [#allocation12], 16384
    $region65: #{tpu_custom_call.1} parent=1 // pred_fallthru
      _
    // Predicated region
    $region66: #{tpu_custom_call.1} parent=1 // pred_check
      _
    $region67: #{tpu_custom_call.1} parent=1 // pred_check_branch
      %148 = sbr.rel (0) target = $region69
    $region68: #{tpu_custom_call.1} parent=1 // pred_region
      %149 = dma.done [#allocation15], 2048
    $region69: #{tpu_custom_call.1} parent=1 // pred_fallthru
      _
    // Predicated region
    $region70: #{tpu_custom_call.1} parent=1 // pred_check
      _
    $region71: #{tpu_custom_call.1} parent=1 // pred_check_branch
      %151 = sbr.rel (0) target = $region73
    $region72: #{tpu_custom_call.1} parent=1 // pred_region
      %152 = dma.done [#allocation15], 256
    $region73: #{tpu_custom_call.1} parent=1 // pred_fallthru
      _
    %v153 = vld [vmem:[#allocation2] sm:$0xff]
    %v154 = vld [vmem:[#allocation2 + $0x8] sm:$0xff]
    %v155 = vld [vmem:[#allocation16] sm:$0xff]
    %v156 = vld [vmem:[#allocation16 + $0x8] sm:$0xff]
    %v157 = vld [vmem:[#allocation5] sm:$0xff]
    %v158 = vld [vmem:[#allocation5 + $0x8] sm:$0xff]
    %v159 = vld [vmem:[#allocation5 + $0x10] sm:$0xff]
    %v160 = vld [vmem:[#allocation5 + $0x18] sm:$0xff]
    %v161 = vld [vmem:[#allocation5 + $0x20] sm:$0xff]
    %v162 = vld [vmem:[#allocation5 + $0x28] sm:$0xff]
    %v163 = vld [vmem:[#allocation5 + $0x30] sm:$0xff]
    %v164 = vld [vmem:[#allocation5 + $0x38] sm:$0xff]
    %v165 = vld [vmem:[#allocation5 + $0x40] sm:$0xff]
    %v166 = vld [vmem:[#allocation5 + $0x48] sm:$0xff]
    %v167 = vld [vmem:[#allocation5 + $0x50] sm:$0xff]
    %v168 = vld [vmem:[#allocation5 + $0x58] sm:$0xff]
    %v169 = vld [vmem:[#allocation5 + $0x60] sm:$0xff]
    %v170 = vld [vmem:[#allocation5 + $0x68] sm:$0xff]
    %v171 = vld [vmem:[#allocation5 + $0x70] sm:$0xff]
    %v172 = vld [vmem:[#allocation5 + $0x78] sm:$0xff]
    %v173 = vlaneseq
    %v174 = vshrl.u32 %v173, 7
    %v175 = vsub.s32 0, %v174
    %v176 = vrot.slane %v155, %v175
    %177 = vmatprep.subr.mxu0 0.0
    %178 = vmatpush1.msra.mxu0 %v172
    %179 = vmatprep.subr.mxu0 0.0
    %180 = vmatpush1.msra.mxu0 %v171
    %181 = vmatprep.subr.mxu0 0.0
    %182 = vmatpush1.msra.mxu0 %v170
    %183 = vmatprep.subr.mxu0 0.0
    %184 = vmatpush1.msra.mxu0 %v169
    %185 = vmatprep.subr.mxu0 0.0
    %186 = vmatpush1.msra.mxu0 %v168
    %187 = vmatprep.subr.mxu0 0.0
    %188 = vmatpush1.msra.mxu0 %v167
    %189 = vmatprep.subr.mxu0 0.0
    %190 = vmatpush1.msra.mxu0 %v166
    %191 = vmatprep.subr.mxu0 0.0
    %192 = vmatpush1.msra.mxu0 %v165
    %193 = vmatprep.subr.mxu0 0.0
    %194 = vmatpush1.msra.mxu0 %v164
    %195 = vmatprep.subr.mxu0 0.0
    %196 = vmatpush1.msra.mxu0 %v163
    %197 = vmatprep.subr.mxu0 0.0
    %198 = vmatpush1.msra.mxu0 %v162
    %199 = vmatprep.subr.mxu0 0.0
    %200 = vmatpush1.msra.mxu0 %v161
    %201 = vmatprep.subr.mxu0 0.0
    %202 = vmatpush1.msra.mxu0 %v160
    %203 = vmatprep.subr.mxu0 0.0
    %204 = vmatpush1.msra.mxu0 %v159
    %205 = vmatprep.subr.mxu0 0.0
    %206 = vmatpush1.msra.mxu0 %v158
    %207 = vmatprep.subr.mxu0 0.0
    %208 = vmatpush1.msra.mxu0 %v157
    %209 = vmatprep.subr.mxu0 0.0
    %210 = vmatpush2.msra.mxu0 0.0
    %211 = vmatprep.subr.mxu0 0.0
    %212 = vmatpush2.msra.mxu0 0.0
    %213 = vmatprep.subr.mxu0 0.0
    %214 = vmatpush2.msra.mxu0 0.0
    %215 = vmatprep.subr.mxu0 0.0
    %216 = vmatpush2.msra.mxu0 0.0
    %217 = vmatprep.subr.mxu0 0.0
    %218 = vmatpush2.msra.mxu0 0.0
    %219 = vmatprep.subr.mxu0 0.0
    %220 = vmatpush2.msra.mxu0 0.0
    %221 = vmatprep.subr.mxu0 0.0
    %222 = vmatpush2.msra.mxu0 0.0
    %223 = vmatprep.subr.mxu0 0.0
    %224 = vmatpush2.msra.mxu0 0.0
    %225 = vmatprep.subr.mxu0 0.0
    %226 = vmatpush2.msra.mxu0 0.0
    %227 = vmatprep.subr.mxu0 0.0
    %228 = vmatpush2.msra.mxu0 0.0
    %229 = vmatprep.subr.mxu0 0.0
    %230 = vmatpush2.msra.mxu0 0.0
    %231 = vmatprep.subr.mxu0 0.0
    %232 = vmatpush2.msra.mxu0 0.0
    %233 = vmatprep.subr.mxu0 0.0
    %234 = vmatpush2.msra.mxu0 0.0
    %235 = vmatprep.subr.mxu0 0.0
    %236 = vmatpush2.msra.mxu0 0.0
    %237 = vmatprep.subr.mxu0 0.0
    %238 = vmatpush2.msra.mxu0 0.0
    %239 = vmatprep.subr.mxu0 0.0
    %240 = vmatpush2.msra.mxu0 0.0
    %241 = vmatprep.mubr.f32.mxu0 0.0
    %242 = vmatmul.mubr.f32.gmra.mxu0 %v153
    %v243 = vpop.f32.mrf.mxu0
    %v244 = vadd.f32 %v176, %v243
    %v245 = vpop.f32.mrf.mxu0
    %246 = vmatprep.mubr.f32.mxu0 0.0
    %247 = vmatmul.mubr.f32.gmra.mxu0 %v154
    %v248 = vpop.f32.mrf.mxu0
    %v249 = vadd.f32 %v176, %v248
    %v250 = vpop.f32.mrf.mxu0
    %251 = vdwg.mxu0
    %v252 = vld [vmem:[#allocation7] sm:$0xff]
    %v253 = vld [vmem:[#allocation7 + $0x8] sm:$0xff]
    %v254 = vld [vmem:[#allocation7 + $0x10] sm:$0xff]
    %v255 = vld [vmem:[#allocation7 + $0x18] sm:$0xff]
    %v256 = vld [vmem:[#allocation7 + $0x20] sm:$0xff]
    %v257 = vld [vmem:[#allocation7 + $0x28] sm:$0xff]
    %v258 = vld [vmem:[#allocation7 + $0x30] sm:$0xff]
    %v259 = vld [vmem:[#allocation7 + $0x38] sm:$0xff]
    %v260 = vld [vmem:[#allocation7 + $0x40] sm:$0xff]
    %v261 = vld [vmem:[#allocation7 + $0x48] sm:$0xff]
    %v262 = vld [vmem:[#allocation7 + $0x50] sm:$0xff]
    %v263 = vld [vmem:[#allocation7 + $0x58] sm:$0xff]
    %v264 = vld [vmem:[#allocation7 + $0x60] sm:$0xff]
    %v265 = vld [vmem:[#allocation7 + $0x68] sm:$0xff]
    %v266 = vld [vmem:[#allocation7 + $0x70] sm:$0xff]
    %v267 = vld [vmem:[#allocation7 + $0x78] sm:$0xff]
    %v268 = vld [vmem:[#allocation7 + $0x80] sm:$0xff]
    %v269 = vld [vmem:[#allocation7 + $0x88] sm:$0xff]
    %v270 = vld [vmem:[#allocation7 + $0x90] sm:$0xff]
    %v271 = vld [vmem:[#allocation7 + $0x98] sm:$0xff]
    %v272 = vld [vmem:[#allocation7 + $0xa0] sm:$0xff]
    %v273 = vld [vmem:[#allocation7 + $0xa8] sm:$0xff]
    %v274 = vld [vmem:[#allocation7 + $0xb0] sm:$0xff]
    %v275 = vld [vmem:[#allocation7 + $0xb8] sm:$0xff]
    %v276 = vld [vmem:[#allocation7 + $0xc0] sm:$0xff]
    %v277 = vld [vmem:[#allocation7 + $0xc8] sm:$0xff]
    %v278 = vld [vmem:[#allocation7 + $0xd0] sm:$0xff]
    %v279 = vld [vmem:[#allocation7 + $0xd8] sm:$0xff]
    %v280 = vld [vmem:[#allocation7 + $0xe0] sm:$0xff]
    %v281 = vld [vmem:[#allocation7 + $0xe8] sm:$0xff]
    %v282 = vld [vmem:[#allocation7 + $0xf0] sm:$0xff]
    %v283 = vld [vmem:[#allocation7 + $0xf8] sm:$0xff]
    %v284 = vld [vmem:[#allocation7 + $0x100] sm:$0xff]
    %v285 = vld [vmem:[#allocation7 + $0x108] sm:$0xff]
    %v286 = vld [vmem:[#allocation7 + $0x110] sm:$0xff]
    %v287 = vld [vmem:[#allocation7 + $0x118] sm:$0xff]
    %v288 = vld [vmem:[#allocation7 + $0x120] sm:$0xff]
    %v289 = vld [vmem:[#allocation7 + $0x128] sm:$0xff]
    %v290 = vld [vmem:[#allocation7 + $0x130] sm:$0xff]
    %v291 = vld [vmem:[#allocation7 + $0x138] sm:$0xff]
    %v292 = vld [vmem:[#allocation7 + $0x140] sm:$0xff]
    %v293 = vld [vmem:[#allocation7 + $0x148] sm:$0xff]
    %v294 = vld [vmem:[#allocation7 + $0x150] sm:$0xff]
    %v295 = vld [vmem:[#allocation7 + $0x158] sm:$0xff]
    %v296 = vld [vmem:[#allocation7 + $0x160] sm:$0xff]
    %v297 = vld [vmem:[#allocation7 + $0x168] sm:$0xff]
    %v298 = vld [vmem:[#allocation7 + $0x170] sm:$0xff]
    %v299 = vld [vmem:[#allocation7 + $0x178] sm:$0xff]
    %300 = vmatprep.subr.mxu0 %v298
    %301 = vmatpush1.msra.mxu0 %v297
    %302 = vmatprep.subr.mxu0 %v295
    %303 = vmatpush1.msra.mxu0 %v294
    %304 = vmatprep.subr.mxu0 %v292
    %305 = vmatpush1.msra.mxu0 %v291
    %306 = vmatprep.subr.mxu0 %v289
    %307 = vmatpush1.msra.mxu0 %v288
    %308 = vmatprep.subr.mxu0 %v286
    %309 = vmatpush1.msra.mxu0 %v285
    %310 = vmatprep.subr.mxu0 %v283
    %311 = vmatpush1.msra.mxu0 %v282
    %312 = vmatprep.subr.mxu0 %v280
    %313 = vmatpush1.msra.mxu0 %v279
    %314 = vmatprep.subr.mxu0 %v277
    %315 = vmatpush1.msra.mxu0 %v276
    %316 = vmatprep.subr.mxu0 %v274
    %317 = vmatpush1.msra.mxu0 %v273
    %318 = vmatprep.subr.mxu0 %v271
    %319 = vmatpush1.msra.mxu0 %v270
    %320 = vmatprep.subr.mxu0 %v268
    %321 = vmatpush1.msra.mxu0 %v267
    %322 = vmatprep.subr.mxu0 %v265
    %323 = vmatpush1.msra.mxu0 %v264
    %324 = vmatprep.subr.mxu0 %v262
    %325 = vmatpush1.msra.mxu0 %v261
    %326 = vmatprep.subr.mxu0 %v259
    %327 = vmatpush1.msra.mxu0 %v258
    %328 = vmatprep.subr.mxu0 %v256
    %329 = vmatpush1.msra.mxu0 %v255
    %330 = vmatprep.subr.mxu0 %v253
    %331 = vmatpush1.msra.mxu0 %v252
    %332 = vmatprep.subr.mxu0 0.0
    %333 = vmatpush2.msra.mxu0 0.0
    %334 = vmatprep.subr.mxu0 0.0
    %335 = vmatpush2.msra.mxu0 0.0
    %336 = vmatprep.subr.mxu0 0.0
    %337 = vmatpush2.msra.mxu0 0.0
    %338 = vmatprep.subr.mxu0 0.0
    %339 = vmatpush2.msra.mxu0 0.0
    %340 = vmatprep.subr.mxu0 0.0
    %341 = vmatpush2.msra.mxu0 0.0
    %342 = vmatprep.subr.mxu0 0.0
    %343 = vmatpush2.msra.mxu0 0.0
    %344 = vmatprep.subr.mxu0 0.0
    %345 = vmatpush2.msra.mxu0 0.0
    %346 = vmatprep.subr.mxu0 0.0
    %347 = vmatpush2.msra.mxu0 0.0
    %348 = vmatprep.subr.mxu0 0.0
    %349 = vmatpush2.msra.mxu0 0.0
    %350 = vmatprep.subr.mxu0 0.0
    %351 = vmatpush2.msra.mxu0 0.0
    %352 = vmatprep.subr.mxu0 0.0
    %353 = vmatpush2.msra.mxu0 0.0
    %354 = vmatprep.subr.mxu0 0.0
    %355 = vmatpush2.msra.mxu0 0.0
    %356 = vmatprep.subr.mxu0 0.0
    %357 = vmatpush2.msra.mxu0 0.0
    %358 = vmatprep.subr.mxu0 0.0
    %359 = vmatpush2.msra.mxu0 0.0
    %360 = vmatprep.subr.mxu0 0.0
    %361 = vmatpush2.msra.mxu0 0.0
    %362 = vmatprep.subr.mxu0 0.0
    %363 = vmatpush2.msra.mxu0 0.0
    %364 = vmatprep.mubr.f32.mxu0 0.0
    %365 = vmatmul.mubr.f32.gmra.mxu0 %v244
    %v366 = vpop.f32.mrf.mxu0
    %v367 = vadd.f32 0.0, %v366
    %v368 = vpop.f32.mrf.mxu0
    %v369 = vadd.f32 0.0, %v368
    %370 = vmatprep.mubr.f32.mxu0 0.0
    %371 = vmatmul.mubr.f32.gmra.mxu0 %v249
    %v372 = vpop.f32.mrf.mxu0
    %v373 = vadd.f32 0.0, %v372
    %v374 = vpop.f32.mrf.mxu0
    %v375 = vadd.f32 0.0, %v374
    %376 = vdwg.mxu0
    %377 = vmatprep.subr.mxu0 0.0
    %378 = vmatpush1.msra.mxu0 %v299
    %379 = vmatprep.subr.mxu0 0.0
    %380 = vmatpush1.msra.mxu0 %v296
    %381 = vmatprep.subr.mxu0 0.0
    %382 = vmatpush1.msra.mxu0 %v293
    %383 = vmatprep.subr.mxu0 0.0
    %384 = vmatpush1.msra.mxu0 %v290
    %385 = vmatprep.subr.mxu0 0.0
    %386 = vmatpush1.msra.mxu0 %v287
    %387 = vmatprep.subr.mxu0 0.0
    %388 = vmatpush1.msra.mxu0 %v284
    %389 = vmatprep.subr.mxu0 0.0
    %390 = vmatpush1.msra.mxu0 %v281
    %391 = vmatprep.subr.mxu0 0.0
    %392 = vmatpush1.msra.mxu0 %v278
    %393 = vmatprep.subr.mxu0 0.0
    %394 = vmatpush1.msra.mxu0 %v275
    %395 = vmatprep.subr.mxu0 0.0
    %396 = vmatpush1.msra.mxu0 %v272
    %397 = vmatprep.subr.mxu0 0.0
    %398 = vmatpush1.msra.mxu0 %v269
    %399 = vmatprep.subr.mxu0 0.0
    %400 = vmatpush1.msra.mxu0 %v266
    %401 = vmatprep.subr.mxu0 0.0
    %402 = vmatpush1.msra.mxu0 %v263
    %403 = vmatprep.subr.mxu0 0.0
    %404 = vmatpush1.msra.mxu0 %v260
    %405 = vmatprep.subr.mxu0 0.0
    %406 = vmatpush1.msra.mxu0 %v257
    %407 = vmatprep.subr.mxu0 0.0
    %408 = vmatpush1.msra.mxu0 %v254
    %409 = vmatprep.subr.mxu0 0.0
    %410 = vmatpush2.msra.mxu0 0.0
    %411 = vmatprep.subr.mxu0 0.0
    %412 = vmatpush2.msra.mxu0 0.0
    %413 = vmatprep.subr.mxu0 0.0
    %414 = vmatpush2.msra.mxu0 0.0
    %415 = vmatprep.subr.mxu0 0.0
    %416 = vmatpush2.msra.mxu0 0.0
    %417 = vmatprep.subr.mxu0 0.0
    %418 = vmatpush2.msra.mxu0 0.0
    %419 = vmatprep.subr.mxu0 0.0
    %420 = vmatpush2.msra.mxu0 0.0
    %421 = vmatprep.subr.mxu0 0.0
    %422 = vmatpush2.msra.mxu0 0.0
    %423 = vmatprep.subr.mxu0 0.0
    %424 = vmatpush2.msra.mxu0 0.0
    %425 = vmatprep.subr.mxu0 0.0
    %426 = vmatpush2.msra.mxu0 0.0
    %427 = vmatprep.subr.mxu0 0.0
    %428 = vmatpush2.msra.mxu0 0.0
    %429 = vmatprep.subr.mxu0 0.0
    %430 = vmatpush2.msra.mxu0 0.0
    %431 = vmatprep.subr.mxu0 0.0
    %432 = vmatpush2.msra.mxu0 0.0
    %433 = vmatprep.subr.mxu0 0.0
    %434 = vmatpush2.msra.mxu0 0.0
    %435 = vmatprep.subr.mxu0 0.0
    %436 = vmatpush2.msra.mxu0 0.0
    %437 = vmatprep.subr.mxu0 0.0
    %438 = vmatpush2.msra.mxu0 0.0
    %439 = vmatprep.subr.mxu0 0.0
    %440 = vmatpush2.msra.mxu0 0.0
    %441 = vmatprep.mubr.f32.mxu0 0.0
    %442 = vmatmul.mubr.f32.gmra.mxu0 %v244
    %v443 = vpop.f32.mrf.mxu0
    %v444 = vadd.f32 0.0, %v443
    %v445 = vpop.f32.mrf.mxu0
    %446 = vmatprep.mubr.f32.mxu0 0.0
    %447 = vmatmul.mubr.f32.gmra.mxu0 %v249
    %v448 = vpop.f32.mrf.mxu0
    %v449 = vadd.f32 0.0, %v448
    %v450 = vpop.f32.mrf.mxu0
    %451 = vdwg.mxu0
    %v452 = vlaneseq
    %v453 = vshrl.u32 %v452, 7
    %v454 = vsub.s32 1, %v453
    %v455 = vrot.slane %v155, %v454
    %v456 = vadd.f32 %v367, %v455
    %v457 = vadd.f32 %v373, %v455
    %v458 = vlaneseq
    %v459 = vshrl.u32 %v458, 7
    %v460 = vsub.s32 2, %v459
    %v461 = vrot.slane %v155, %v460
    %v462 = vadd.f32 %v369, %v461
    %v463 = vadd.f32 %v375, %v461
    %v464 = vlaneseq
    %v465 = vshrl.u32 %v464, 7
    %v466 = vsub.s32 3, %v465
    %v467 = vrot.slane %v155, %v466
    %v468 = vadd.f32 %v444, %v467
    %v469 = vadd.f32 %v449, %v467
    %v470 = vld [vmem:[#allocation8] sm:$0xff]
    %v471 = vld [vmem:[#allocation8 + $0x8] sm:$0xff]
    %v472 = vld [vmem:[#allocation8 + $0x10] sm:$0xff]
    %v473 = vld [vmem:[#allocation8 + $0x18] sm:$0xff]
    %v474 = vld [vmem:[#allocation8 + $0x20] sm:$0xff]
    %v475 = vld [vmem:[#allocation8 + $0x28] sm:$0xff]
    %v476 = vld [vmem:[#allocation8 + $0x30] sm:$0xff]
    %v477 = vld [vmem:[#allocation8 + $0x38] sm:$0xff]
    %v478 = vld [vmem:[#allocation8 + $0x40] sm:$0xff]
    %v479 = vld [vmem:[#allocation8 + $0x48] sm:$0xff]
    %v480 = vld [vmem:[#allocation8 + $0x50] sm:$0xff]
    %v481 = vld [vmem:[#allocation8 + $0x58] sm:$0xff]
    %v482 = vld [vmem:[#allocation8 + $0x60] sm:$0xff]
    %v483 = vld [vmem:[#allocation8 + $0x68] sm:$0xff]
    %v484 = vld [vmem:[#allocation8 + $0x70] sm:$0xff]
    %v485 = vld [vmem:[#allocation8 + $0x78] sm:$0xff]
    %vm486 = vcmask 261120
    %v488 = vsel %vm486, %v456, 0
    %v491 = vsel %vm486, %v462, 0
    %493 = vmatprep.subr.mxu0 0.0
    %494 = vmatpush1.xpose.msra.mxu0 0.0
    %495 = vmatprep.subr.mxu0 0.0
    %496 = vmatpush1.xpose.msra.mxu0 0.0
    %497 = vmatprep.subr.mxu0 0.0
    %498 = vmatpush1.xpose.msra.mxu0 0.0
    %499 = vmatprep.subr.mxu0 0.0
    %500 = vmatpush1.xpose.msra.mxu0 0.0
    %501 = vmatprep.subr.mxu0 0.0
    %502 = vmatpush1.xpose.msra.mxu0 0.0
    %503 = vmatprep.subr.mxu0 0.0
    %504 = vmatpush1.xpose.msra.mxu0 0.0
    %505 = vmatprep.subr.mxu0 0.0
    %506 = vmatpush1.xpose.msra.mxu0 0.0
    %507 = vmatprep.subr.mxu0 0.0
    %508 = vmatpush1.xpose.msra.mxu0 0.0
    %509 = vmatprep.subr.mxu0 0.0
    %510 = vmatpush1.xpose.msra.mxu0 0.0
    %511 = vmatprep.subr.mxu0 0.0
    %512 = vmatpush1.xpose.msra.mxu0 0.0
    %513 = vmatprep.subr.mxu0 0.0
    %514 = vmatpush1.xpose.msra.mxu0 0.0
    %515 = vmatprep.subr.mxu0 0.0
    %516 = vmatpush1.xpose.msra.mxu0 0.0
    %517 = vmatprep.subr.mxu0 0.0
    %518 = vmatpush1.xpose.msra.mxu0 0.0
    %519 = vmatprep.subr.mxu0 0.0
    %520 = vmatpush1.xpose.msra.mxu0 0.0
    %521 = vmatprep.subr.mxu0 0.0
    %522 = vmatpush1.xpose.msra.mxu0 0.0
    %523 = vmatprep.subr.mxu0 0.0
    %524 = vmatpush1.xpose.msra.mxu0 %v491
    %525 = vmatprep.subr.mxu0 0.0
    %526 = vmatpush2.xpose.msra.mxu0 0.0
    %527 = vmatprep.subr.mxu0 0.0
    %528 = vmatpush2.xpose.msra.mxu0 0.0
    %529 = vmatprep.subr.mxu0 0.0
    %530 = vmatpush2.xpose.msra.mxu0 0.0
    %531 = vmatprep.subr.mxu0 0.0
    %532 = vmatpush2.xpose.msra.mxu0 0.0
    %533 = vmatprep.subr.mxu0 0.0
    %534 = vmatpush2.xpose.msra.mxu0 0.0
    %535 = vmatprep.subr.mxu0 0.0
    %536 = vmatpush2.xpose.msra.mxu0 0.0
    %537 = vmatprep.subr.mxu0 0.0
    %538 = vmatpush2.xpose.msra.mxu0 0.0
    %539 = vmatprep.subr.mxu0 0.0
    %540 = vmatpush2.xpose.msra.mxu0 0.0
    %541 = vmatprep.subr.mxu0 0.0
    %542 = vmatpush2.xpose.msra.mxu0 0.0
    %543 = vmatprep.subr.mxu0 0.0
    %544 = vmatpush2.xpose.msra.mxu0 0.0
    %545 = vmatprep.subr.mxu0 0.0
    %546 = vmatpush2.xpose.msra.mxu0 0.0
    %547 = vmatprep.subr.mxu0 0.0
    %548 = vmatpush2.xpose.msra.mxu0 0.0
    %549 = vmatprep.subr.mxu0 0.0
    %550 = vmatpush2.xpose.msra.mxu0 0.0
    %551 = vmatprep.subr.mxu0 0.0
    %552 = vmatpush2.xpose.msra.mxu0 0.0
    %553 = vmatprep.subr.mxu0 0.0
    %554 = vmatpush2.xpose.msra.mxu0 0.0
    %555 = vmatprep.subr.mxu0 0.0
    %556 = vmatpush2.xpose.msra.mxu0 0.0
    %557 = vmatprep.mubr.f32.mxu0 0.0
    %558 = vmatmul.mubr.f32.gmra.mxu0 %v488
    %v559 = vpop.f32.mrf.mxu0
    %v560 = vadd.f32 0.0, %v559
    %v561 = vpop.f32.mrf.mxu0
    %562 = vdwg.mxu0
    %v564 = vsel %vm486, %v457, 0
    %v567 = vsel %vm486, %v463, 0
    %569 = vmatprep.subr.mxu0 0.0
    %570 = vmatpush1.xpose.msra.mxu0 0.0
    %571 = vmatprep.subr.mxu0 0.0
    %572 = vmatpush1.xpose.msra.mxu0 0.0
    %573 = vmatprep.subr.mxu0 0.0
    %574 = vmatpush1.xpose.msra.mxu0 0.0
    %575 = vmatprep.subr.mxu0 0.0
    %576 = vmatpush1.xpose.msra.mxu0 0.0
    %577 = vmatprep.subr.mxu0 0.0
    %578 = vmatpush1.xpose.msra.mxu0 0.0
    %579 = vmatprep.subr.mxu0 0.0
    %580 = vmatpush1.xpose.msra.mxu0 0.0
    %581 = vmatprep.subr.mxu0 0.0
    %582 = vmatpush1.xpose.msra.mxu0 0.0
    %583 = vmatprep.subr.mxu0 0.0
    %584 = vmatpush1.xpose.msra.mxu0 0.0
    %585 = vmatprep.subr.mxu0 0.0
    %586 = vmatpush1.xpose.msra.mxu0 0.0
    %587 = vmatprep.subr.mxu0 0.0
    %588 = vmatpush1.xpose.msra.mxu0 0.0
    %589 = vmatprep.subr.mxu0 0.0
    %590 = vmatpush1.xpose.msra.mxu0 0.0
    %591 = vmatprep.subr.mxu0 0.0
    %592 = vmatpush1.xpose.msra.mxu0 0.0
    %593 = vmatprep.subr.mxu0 0.0
    %594 = vmatpush1.xpose.msra.mxu0 0.0
    %595 = vmatprep.subr.mxu0 0.0
    %596 = vmatpush1.xpose.msra.mxu0 0.0
    %597 = vmatprep.subr.mxu0 0.0
    %598 = vmatpush1.xpose.msra.mxu0 0.0
    %599 = vmatprep.subr.mxu0 0.0
    %600 = vmatpush1.xpose.msra.mxu0 %v567
    %601 = vmatprep.subr.mxu0 0.0
    %602 = vmatpush2.xpose.msra.mxu0 0.0
    %603 = vmatprep.subr.mxu0 0.0
    %604 = vmatpush2.xpose.msra.mxu0 0.0
    %605 = vmatprep.subr.mxu0 0.0
    %606 = vmatpush2.xpose.msra.mxu0 0.0
    %607 = vmatprep.subr.mxu0 0.0
    %608 = vmatpush2.xpose.msra.mxu0 0.0
    %609 = vmatprep.subr.mxu0 0.0
    %610 = vmatpush2.xpose.msra.mxu0 0.0
    %611 = vmatprep.subr.mxu0 0.0
    %612 = vmatpush2.xpose.msra.mxu0 0.0
    %613 = vmatprep.subr.mxu0 0.0
    %614 = vmatpush2.xpose.msra.mxu0 0.0
    %615 = vmatprep.subr.mxu0 0.0
    %616 = vmatpush2.xpose.msra.mxu0 0.0
    %617 = vmatprep.subr.mxu0 0.0
    %618 = vmatpush2.xpose.msra.mxu0 0.0
    %619 = vmatprep.subr.mxu0 0.0
    %620 = vmatpush2.xpose.msra.mxu0 0.0
    %621 = vmatprep.subr.mxu0 0.0
    %622 = vmatpush2.xpose.msra.mxu0 0.0
    %623 = vmatprep.subr.mxu0 0.0
    %624 = vmatpush2.xpose.msra.mxu0 0.0
    %625 = vmatprep.subr.mxu0 0.0
    %626 = vmatpush2.xpose.msra.mxu0 0.0
    %627 = vmatprep.subr.mxu0 0.0
    %628 = vmatpush2.xpose.msra.mxu0 0.0
    %629 = vmatprep.subr.mxu0 0.0
    %630 = vmatpush2.xpose.msra.mxu0 0.0
    %631 = vmatprep.subr.mxu0 0.0
    %632 = vmatpush2.xpose.msra.mxu0 0.0
    %633 = vmatprep.mubr.f32.mxu0 0.0
    %634 = vmatmul.mubr.f32.gmra.mxu0 %v564
    %v635 = vpop.f32.mrf.mxu0
    %v636 = vadd.f32 0.0, %v635
    %v637 = vpop.f32.mrf.mxu0
    %638 = vdwg.mxu0
    %v639 = vmul.f32 %v560, 0.35355338
    %v640 = vmul.f32 %v636, 0.35355338
    %vm641 = vcmask 64512
    %v642 = vsel %vm641, %v639, -inf
    %643 = vmax.xlane.f32.xlu0 %v642
    %v644 = vpop.xlane.xlu0 %643
    %v645 = vsel %vm641, %v640, -inf
    %646 = vmax.xlane.f32.xlu0 %v645
    %v647 = vpop.xlane.xlu0 %646
    %v648 = vsub.f32 %v639, %v644
    %v649 = vsub.f32 %v640, %v647
    %v650 = vmul.f32 %v648, 1.442695
    %v651 = vpow.pop %v650
    %v652 = vmul.f32 %v649, 1.442695
    %v653 = vpow.pop %v652
    %v654 = vsel %vm641, %v651, 0.0
    %655 = vadd.xlane.f32.xlu0 %v654
    %v656 = vpop.xlane.xlu0 %655
    %v657 = vsel %vm641, %v653, 0.0
    %658 = vadd.xlane.f32.xlu0 %v657
    %v659 = vpop.xlane.xlu0 %658
    %v660 = vrcp.pop %v656
    %v661 = vrcp.pop %v659
    %v662 = vmul.f32 %v651, %v660
    %v663 = vmul.f32 %v653, %v661
    %v665 = vsel %vm641, %v662, 0
    %667 = vmatprep.subr.mxu0 0.0
    %668 = vmatpush1.msra.mxu0 0.0
    %669 = vmatprep.subr.mxu0 0.0
    %670 = vmatpush1.msra.mxu0 0.0
    %671 = vmatprep.subr.mxu0 0.0
    %672 = vmatpush1.msra.mxu0 0.0
    %673 = vmatprep.subr.mxu0 0.0
    %674 = vmatpush1.msra.mxu0 0.0
    %675 = vmatprep.subr.mxu0 0.0
    %676 = vmatpush1.msra.mxu0 0.0
    %677 = vmatprep.subr.mxu0 0.0
    %678 = vmatpush1.msra.mxu0 0.0
    %679 = vmatprep.subr.mxu0 0.0
    %680 = vmatpush1.msra.mxu0 0.0
    %681 = vmatprep.subr.mxu0 0.0
    %682 = vmatpush1.msra.mxu0 0.0
    %683 = vmatprep.subr.mxu0 0.0
    %684 = vmatpush1.msra.mxu0 0.0
    %685 = vmatprep.subr.mxu0 0.0
    %686 = vmatpush1.msra.mxu0 0.0
    %687 = vmatprep.subr.mxu0 0.0
    %688 = vmatpush1.msra.mxu0 0.0
    %689 = vmatprep.subr.mxu0 0.0
    %690 = vmatpush1.msra.mxu0 0.0
    %691 = vmatprep.subr.mxu0 0.0
    %692 = vmatpush1.msra.mxu0 0.0
    %693 = vmatprep.subr.mxu0 0.0
    %694 = vmatpush1.msra.mxu0 0.0
    %695 = vmatprep.subr.mxu0 0.0
    %696 = vmatpush1.msra.mxu0 0.0
    %697 = vmatprep.subr.mxu0 0.0
    %698 = vmatpush1.msra.mxu0 %v468
    %699 = vmatprep.subr.mxu0 0.0
    %700 = vmatpush2.msra.mxu0 0.0
    %701 = vmatprep.subr.mxu0 0.0
    %702 = vmatpush2.msra.mxu0 0.0
    %703 = vmatprep.subr.mxu0 0.0
    %704 = vmatpush2.msra.mxu0 0.0
    %705 = vmatprep.subr.mxu0 0.0
    %706 = vmatpush2.msra.mxu0 0.0
    %707 = vmatprep.subr.mxu0 0.0
    %708 = vmatpush2.msra.mxu0 0.0
    %709 = vmatprep.subr.mxu0 0.0
    %710 = vmatpush2.msra.mxu0 0.0
    %711 = vmatprep.subr.mxu0 0.0
    %712 = vmatpush2.msra.mxu0 0.0
    %713 = vmatprep.subr.mxu0 0.0
    %714 = vmatpush2.msra.mxu0 0.0
    %715 = vmatprep.subr.mxu0 0.0
    %716 = vmatpush2.msra.mxu0 0.0
    %717 = vmatprep.subr.mxu0 0.0
    %718 = vmatpush2.msra.mxu0 0.0
    %719 = vmatprep.subr.mxu0 0.0
    %720 = vmatpush2.msra.mxu0 0.0
    %721 = vmatprep.subr.mxu0 0.0
    %722 = vmatpush2.msra.mxu0 0.0
    %723 = vmatprep.subr.mxu0 0.0
    %724 = vmatpush2.msra.mxu0 0.0
    %725 = vmatprep.subr.mxu0 0.0
    %726 = vmatpush2.msra.mxu0 0.0
    %727 = vmatprep.subr.mxu0 0.0
    %728 = vmatpush2.msra.mxu0 0.0
    %729 = vmatprep.subr.mxu0 0.0
    %730 = vmatpush2.msra.mxu0 0.0
    %731 = vmatprep.mubr.f32.mxu0 0.0
    %732 = vmatmul.mubr.f32.gmra.mxu0 %v665
    %v733 = vpop.f32.mrf.mxu0
    %v734 = vadd.f32 0.0, %v733
    %v735 = vpop.f32.mrf.mxu0
    %736 = vdwg.mxu0
    %v738 = vsel %vm641, %v663, 0
    %740 = vmatprep.subr.mxu0 0.0
    %741 = vmatpush1.msra.mxu0 0.0
    %742 = vmatprep.subr.mxu0 0.0
    %743 = vmatpush1.msra.mxu0 0.0
    %744 = vmatprep.subr.mxu0 0.0
    %745 = vmatpush1.msra.mxu0 0.0
    %746 = vmatprep.subr.mxu0 0.0
    %747 = vmatpush1.msra.mxu0 0.0
    %748 = vmatprep.subr.mxu0 0.0
    %749 = vmatpush1.msra.mxu0 0.0
    %750 = vmatprep.subr.mxu0 0.0
    %751 = vmatpush1.msra.mxu0 0.0
    %752 = vmatprep.subr.mxu0 0.0
    %753 = vmatpush1.msra.mxu0 0.0
    %754 = vmatprep.subr.mxu0 0.0
    %755 = vmatpush1.msra.mxu0 0.0
    %756 = vmatprep.subr.mxu0 0.0
    %757 = vmatpush1.msra.mxu0 0.0
    %758 = vmatprep.subr.mxu0 0.0
    %759 = vmatpush1.msra.mxu0 0.0
    %760 = vmatprep.subr.mxu0 0.0
    %761 = vmatpush1.msra.mxu0 0.0
    %762 = vmatprep.subr.mxu0 0.0
    %763 = vmatpush1.msra.mxu0 0.0
    %764 = vmatprep.subr.mxu0 0.0
    %765 = vmatpush1.msra.mxu0 0.0
    %766 = vmatprep.subr.mxu0 0.0
    %767 = vmatpush1.msra.mxu0 0.0
    %768 = vmatprep.subr.mxu0 0.0
    %769 = vmatpush1.msra.mxu0 0.0
    %770 = vmatprep.subr.mxu0 0.0
    %771 = vmatpush1.msra.mxu0 %v469
    %772 = vmatprep.subr.mxu0 0.0
    %773 = vmatpush2.msra.mxu0 0.0
    %774 = vmatprep.subr.mxu0 0.0
    %775 = vmatpush2.msra.mxu0 0.0
    %776 = vmatprep.subr.mxu0 0.0
    %777 = vmatpush2.msra.mxu0 0.0
    %778 = vmatprep.subr.mxu0 0.0
    %779 = vmatpush2.msra.mxu0 0.0
    %780 = vmatprep.subr.mxu0 0.0
    %781 = vmatpush2.msra.mxu0 0.0
    %782 = vmatprep.subr.mxu0 0.0
    %783 = vmatpush2.msra.mxu0 0.0
    %784 = vmatprep.subr.mxu0 0.0
    %785 = vmatpush2.msra.mxu0 0.0
    %786 = vmatprep.subr.mxu0 0.0
    %787 = vmatpush2.msra.mxu0 0.0
    %788 = vmatprep.subr.mxu0 0.0
    %789 = vmatpush2.msra.mxu0 0.0
    %790 = vmatprep.subr.mxu0 0.0
    %791 = vmatpush2.msra.mxu0 0.0
    %792 = vmatprep.subr.mxu0 0.0
    %793 = vmatpush2.msra.mxu0 0.0
    %794 = vmatprep.subr.mxu0 0.0
    %795 = vmatpush2.msra.mxu0 0.0
    %796 = vmatprep.subr.mxu0 0.0
    %797 = vmatpush2.msra.mxu0 0.0
    %798 = vmatprep.subr.mxu0 0.0
    %799 = vmatpush2.msra.mxu0 0.0
    %800 = vmatprep.subr.mxu0 0.0
    %801 = vmatpush2.msra.mxu0 0.0
    %802 = vmatprep.subr.mxu0 0.0
    %803 = vmatpush2.msra.mxu0 0.0
    %804 = vmatprep.mubr.f32.mxu0 0.0
    %805 = vmatmul.mubr.f32.gmra.mxu0 %v738
    %v806 = vpop.f32.mrf.mxu0
    %v807 = vadd.f32 0.0, %v806
    %v808 = vpop.f32.mrf.mxu0
    %809 = vdwg.mxu0
    %810 = vrot.lane.b32.xlu0 %v456, 96
    %v811 = vpop.permute.xlu0 %810
    %812 = vrot.lane.b32.xlu0 %v462, 96
    %v813 = vpop.permute.xlu0 %812
    %v814 = vsel %vm486, %v811, 0
    %v816 = vsel %vm486, %v813, 0
    %818 = vmatprep.subr.mxu0 0.0
    %819 = vmatpush1.xpose.msra.mxu0 0.0
    %820 = vmatprep.subr.mxu0 0.0
    %821 = vmatpush1.xpose.msra.mxu0 0.0
    %822 = vmatprep.subr.mxu0 0.0
    %823 = vmatpush1.xpose.msra.mxu0 0.0
    %824 = vmatprep.subr.mxu0 0.0
    %825 = vmatpush1.xpose.msra.mxu0 0.0
    %826 = vmatprep.subr.mxu0 0.0
    %827 = vmatpush1.xpose.msra.mxu0 0.0
    %828 = vmatprep.subr.mxu0 0.0
    %829 = vmatpush1.xpose.msra.mxu0 0.0
    %830 = vmatprep.subr.mxu0 0.0
    %831 = vmatpush1.xpose.msra.mxu0 0.0
    %832 = vmatprep.subr.mxu0 0.0
    %833 = vmatpush1.xpose.msra.mxu0 0.0
    %834 = vmatprep.subr.mxu0 0.0
    %835 = vmatpush1.xpose.msra.mxu0 0.0
    %836 = vmatprep.subr.mxu0 0.0
    %837 = vmatpush1.xpose.msra.mxu0 0.0
    %838 = vmatprep.subr.mxu0 0.0
    %839 = vmatpush1.xpose.msra.mxu0 0.0
    %840 = vmatprep.subr.mxu0 0.0
    %841 = vmatpush1.xpose.msra.mxu0 0.0
    %842 = vmatprep.subr.mxu0 0.0
    %843 = vmatpush1.xpose.msra.mxu0 0.0
    %844 = vmatprep.subr.mxu0 0.0
    %845 = vmatpush1.xpose.msra.mxu0 0.0
    %846 = vmatprep.subr.mxu0 0.0
    %847 = vmatpush1.xpose.msra.mxu0 0.0
    %848 = vmatprep.subr.mxu0 0.0
    %849 = vmatpush1.xpose.msra.mxu0 %v816
    %850 = vmatprep.subr.mxu0 0.0
    %851 = vmatpush2.xpose.msra.mxu0 0.0
    %852 = vmatprep.subr.mxu0 0.0
    %853 = vmatpush2.xpose.msra.mxu0 0.0
    %854 = vmatprep.subr.mxu0 0.0
    %855 = vmatpush2.xpose.msra.mxu0 0.0
    %856 = vmatprep.subr.mxu0 0.0
    %857 = vmatpush2.xpose.msra.mxu0 0.0
    %858 = vmatprep.subr.mxu0 0.0
    %859 = vmatpush2.xpose.msra.mxu0 0.0
    %860 = vmatprep.subr.mxu0 0.0
    %861 = vmatpush2.xpose.msra.mxu0 0.0
    %862 = vmatprep.subr.mxu0 0.0
    %863 = vmatpush2.xpose.msra.mxu0 0.0
    %864 = vmatprep.subr.mxu0 0.0
    %865 = vmatpush2.xpose.msra.mxu0 0.0
    %866 = vmatprep.subr.mxu0 0.0
    %867 = vmatpush2.xpose.msra.mxu0 0.0
    %868 = vmatprep.subr.mxu0 0.0
    %869 = vmatpush2.xpose.msra.mxu0 0.0
    %870 = vmatprep.subr.mxu0 0.0
    %871 = vmatpush2.xpose.msra.mxu0 0.0
    %872 = vmatprep.subr.mxu0 0.0
    %873 = vmatpush2.xpose.msra.mxu0 0.0
    %874 = vmatprep.subr.mxu0 0.0
    %875 = vmatpush2.xpose.msra.mxu0 0.0
    %876 = vmatprep.subr.mxu0 0.0
    %877 = vmatpush2.xpose.msra.mxu0 0.0
    %878 = vmatprep.subr.mxu0 0.0
    %879 = vmatpush2.xpose.msra.mxu0 0.0
    %880 = vmatprep.subr.mxu0 0.0
    %881 = vmatpush2.xpose.msra.mxu0 0.0
    %882 = vmatprep.mubr.f32.mxu0 0.0
    %883 = vmatmul.mubr.f32.gmra.mxu0 %v814
    %v884 = vpop.f32.mrf.mxu0
    %v885 = vadd.f32 0.0, %v884
    %v886 = vpop.f32.mrf.mxu0
    %887 = vdwg.mxu0
    %888 = vrot.lane.b32.xlu0 %v457, 96
    %v889 = vpop.permute.xlu0 %888
    %890 = vrot.lane.b32.xlu0 %v463, 96
    %v891 = vpop.permute.xlu0 %890
    %v892 = vsel %vm486, %v889, 0
    %v894 = vsel %vm486, %v891, 0
    %896 = vmatprep.subr.mxu0 0.0
    %897 = vmatpush1.xpose.msra.mxu0 0.0
    %898 = vmatprep.subr.mxu0 0.0
    %899 = vmatpush1.xpose.msra.mxu0 0.0
    %900 = vmatprep.subr.mxu0 0.0
    %901 = vmatpush1.xpose.msra.mxu0 0.0
    %902 = vmatprep.subr.mxu0 0.0
    %903 = vmatpush1.xpose.msra.mxu0 0.0
    %904 = vmatprep.subr.mxu0 0.0
    %905 = vmatpush1.xpose.msra.mxu0 0.0
    %906 = vmatprep.subr.mxu0 0.0
    %907 = vmatpush1.xpose.msra.mxu0 0.0
    %908 = vmatprep.subr.mxu0 0.0
    %909 = vmatpush1.xpose.msra.mxu0 0.0
    %910 = vmatprep.subr.mxu0 0.0
    %911 = vmatpush1.xpose.msra.mxu0 0.0
    %912 = vmatprep.subr.mxu0 0.0
    %913 = vmatpush1.xpose.msra.mxu0 0.0
    %914 = vmatprep.subr.mxu0 0.0
    %915 = vmatpush1.xpose.msra.mxu0 0.0
    %916 = vmatprep.subr.mxu0 0.0
    %917 = vmatpush1.xpose.msra.mxu0 0.0
    %918 = vmatprep.subr.mxu0 0.0
    %919 = vmatpush1.xpose.msra.mxu0 0.0
    %920 = vmatprep.subr.mxu0 0.0
    %921 = vmatpush1.xpose.msra.mxu0 0.0
    %922 = vmatprep.subr.mxu0 0.0
    %923 = vmatpush1.xpose.msra.mxu0 0.0
    %924 = vmatprep.subr.mxu0 0.0
    %925 = vmatpush1.xpose.msra.mxu0 0.0
    %926 = vmatprep.subr.mxu0 0.0
    %927 = vmatpush1.xpose.msra.mxu0 %v894
    %928 = vmatprep.subr.mxu0 0.0
    %929 = vmatpush2.xpose.msra.mxu0 0.0
    %930 = vmatprep.subr.mxu0 0.0
    %931 = vmatpush2.xpose.msra.mxu0 0.0
    %932 = vmatprep.subr.mxu0 0.0
    %933 = vmatpush2.xpose.msra.mxu0 0.0
    %934 = vmatprep.subr.mxu0 0.0
    %935 = vmatpush2.xpose.msra.mxu0 0.0
    %936 = vmatprep.subr.mxu0 0.0
    %937 = vmatpush2.xpose.msra.mxu0 0.0
    %938 = vmatprep.subr.mxu0 0.0
    %939 = vmatpush2.xpose.msra.mxu0 0.0
    %940 = vmatprep.subr.mxu0 0.0
    %941 = vmatpush2.xpose.msra.mxu0 0.0
    %942 = vmatprep.subr.mxu0 0.0
    %943 = vmatpush2.xpose.msra.mxu0 0.0
    %944 = vmatprep.subr.mxu0 0.0
    %945 = vmatpush2.xpose.msra.mxu0 0.0
    %946 = vmatprep.subr.mxu0 0.0
    %947 = vmatpush2.xpose.msra.mxu0 0.0
    %948 = vmatprep.subr.mxu0 0.0
    %949 = vmatpush2.xpose.msra.mxu0 0.0
    %950 = vmatprep.subr.mxu0 0.0
    %951 = vmatpush2.xpose.msra.mxu0 0.0
    %952 = vmatprep.subr.mxu0 0.0
    %953 = vmatpush2.xpose.msra.mxu0 0.0
    %954 = vmatprep.subr.mxu0 0.0
    %955 = vmatpush2.xpose.msra.mxu0 0.0
    %956 = vmatprep.subr.mxu0 0.0
    %957 = vmatpush2.xpose.msra.mxu0 0.0
    %958 = vmatprep.subr.mxu0 0.0
    %959 = vmatpush2.xpose.msra.mxu0 0.0
    %960 = vmatprep.mubr.f32.mxu0 0.0
    %961 = vmatmul.mubr.f32.gmra.mxu0 %v892
    %v962 = vpop.f32.mrf.mxu0
    %v963 = vadd.f32 0.0, %v962
    %v964 = vpop.f32.mrf.mxu0
    %965 = vdwg.mxu0
    %v966 = vmul.f32 %v885, 0.35355338
    %v967 = vmul.f32 %v963, 0.35355338
    %v968 = vsel %vm641, %v966, -inf
    %969 = vmax.xlane.f32.xlu0 %v968
    %v970 = vpop.xlane.xlu0 %969
    %v971 = vsel %vm641, %v967, -inf
    %972 = vmax.xlane.f32.xlu0 %v971
    %v973 = vpop.xlane.xlu0 %972
    %v974 = vsub.f32 %v966, %v970
    %v975 = vsub.f32 %v967, %v973
    %v976 = vmul.f32 %v974, 1.442695
    %v977 = vpow.pop %v976
    %v978 = vmul.f32 %v975, 1.442695
    %v979 = vpow.pop %v978
    %v980 = vsel %vm641, %v977, 0.0
    %981 = vadd.xlane.f32.xlu0 %v980
    %v982 = vpop.xlane.xlu0 %981
    %v983 = vsel %vm641, %v979, 0.0
    %984 = vadd.xlane.f32.xlu0 %v983
    %v985 = vpop.xlane.xlu0 %984
    %v986 = vrcp.pop %v982
    %v987 = vrcp.pop %v985
    %v988 = vmul.f32 %v977, %v986
    %v989 = vmul.f32 %v979, %v987
    %991 = vrot.lane.b32.xlu0 %v468, 96
    %v992 = vpop.permute.xlu0 %991
    %v995 = vsel %vm641, %v988, 0
    %997 = vmatprep.subr.mxu0 0.0
    %998 = vmatpush1.msra.mxu0 0.0
    %999 = vmatprep.subr.mxu0 0.0
    %1000 = vmatpush1.msra.mxu0 0.0
    %1001 = vmatprep.subr.mxu0 0.0
    %1002 = vmatpush1.msra.mxu0 0.0
    %1003 = vmatprep.subr.mxu0 0.0
    %1004 = vmatpush1.msra.mxu0 0.0
    %1005 = vmatprep.subr.mxu0 0.0
    %1006 = vmatpush1.msra.mxu0 0.0
    %1007 = vmatprep.subr.mxu0 0.0
    %1008 = vmatpush1.msra.mxu0 0.0
    %1009 = vmatprep.subr.mxu0 0.0
    %1010 = vmatpush1.msra.mxu0 0.0
    %1011 = vmatprep.subr.mxu0 0.0
    %1012 = vmatpush1.msra.mxu0 0.0
    %1013 = vmatprep.subr.mxu0 0.0
    %1014 = vmatpush1.msra.mxu0 0.0
    %1015 = vmatprep.subr.mxu0 0.0
    %1016 = vmatpush1.msra.mxu0 0.0
    %1017 = vmatprep.subr.mxu0 0.0
    %1018 = vmatpush1.msra.mxu0 0.0
    %1019 = vmatprep.subr.mxu0 0.0
    %1020 = vmatpush1.msra.mxu0 0.0
    %1021 = vmatprep.subr.mxu0 0.0
    %1022 = vmatpush1.msra.mxu0 0.0
    %1023 = vmatprep.subr.mxu0 0.0
    %1024 = vmatpush1.msra.mxu0 0.0
    %1025 = vmatprep.subr.mxu0 0.0
    %1026 = vmatpush1.msra.mxu0 0.0
    %1027 = vmatprep.subr.mxu0 0.0
    %1028 = vmatpush1.msra.mxu0 %v992
    %1029 = vmatprep.subr.mxu0 0.0
    %1030 = vmatpush2.msra.mxu0 0.0
    %1031 = vmatprep.subr.mxu0 0.0
    %1032 = vmatpush2.msra.mxu0 0.0
    %1033 = vmatprep.subr.mxu0 0.0
    %1034 = vmatpush2.msra.mxu0 0.0
    %1035 = vmatprep.subr.mxu0 0.0
    %1036 = vmatpush2.msra.mxu0 0.0
    %1037 = vmatprep.subr.mxu0 0.0
    %1038 = vmatpush2.msra.mxu0 0.0
    %1039 = vmatprep.subr.mxu0 0.0
    %1040 = vmatpush2.msra.mxu0 0.0
    %1041 = vmatprep.subr.mxu0 0.0
    %1042 = vmatpush2.msra.mxu0 0.0
    %1043 = vmatprep.subr.mxu0 0.0
    %1044 = vmatpush2.msra.mxu0 0.0
    %1045 = vmatprep.subr.mxu0 0.0
    %1046 = vmatpush2.msra.mxu0 0.0
    %1047 = vmatprep.subr.mxu0 0.0
    %1048 = vmatpush2.msra.mxu0 0.0
    %1049 = vmatprep.subr.mxu0 0.0
    %1050 = vmatpush2.msra.mxu0 0.0
    %1051 = vmatprep.subr.mxu0 0.0
    %1052 = vmatpush2.msra.mxu0 0.0
    %1053 = vmatprep.subr.mxu0 0.0
    %1054 = vmatpush2.msra.mxu0 0.0
    %1055 = vmatprep.subr.mxu0 0.0
    %1056 = vmatpush2.msra.mxu0 0.0
    %1057 = vmatprep.subr.mxu0 0.0
    %1058 = vmatpush2.msra.mxu0 0.0
    %1059 = vmatprep.subr.mxu0 0.0
    %1060 = vmatpush2.msra.mxu0 0.0
    %1061 = vmatprep.mubr.f32.mxu0 0.0
    %1062 = vmatmul.mubr.f32.gmra.mxu0 %v995
    %v1063 = vpop.f32.mrf.mxu0
    %v1064 = vadd.f32 0.0, %v1063
    %v1065 = vpop.f32.mrf.mxu0
    %1066 = vdwg.mxu0
    %1068 = vrot.lane.b32.xlu0 %v469, 96
    %v1069 = vpop.permute.xlu0 %1068
    %v1072 = vsel %vm641, %v989, 0
    %1074 = vmatprep.subr.mxu0 0.0
    %1075 = vmatpush1.msra.mxu0 0.0
    %1076 = vmatprep.subr.mxu0 0.0
    %1077 = vmatpush1.msra.mxu0 0.0
    %1078 = vmatprep.subr.mxu0 0.0
    %1079 = vmatpush1.msra.mxu0 0.0
    %1080 = vmatprep.subr.mxu0 0.0
    %1081 = vmatpush1.msra.mxu0 0.0
    %1082 = vmatprep.subr.mxu0 0.0
    %1083 = vmatpush1.msra.mxu0 0.0
    %1084 = vmatprep.subr.mxu0 0.0
    %1085 = vmatpush1.msra.mxu0 0.0
    %1086 = vmatprep.subr.mxu0 0.0
    %1087 = vmatpush1.msra.mxu0 0.0
    %1088 = vmatprep.subr.mxu0 0.0
    %1089 = vmatpush1.msra.mxu0 0.0
    %1090 = vmatprep.subr.mxu0 0.0
    %1091 = vmatpush1.msra.mxu0 0.0
    %1092 = vmatprep.subr.mxu0 0.0
    %1093 = vmatpush1.msra.mxu0 0.0
    %1094 = vmatprep.subr.mxu0 0.0
    %1095 = vmatpush1.msra.mxu0 0.0
    %1096 = vmatprep.subr.mxu0 0.0
    %1097 = vmatpush1.msra.mxu0 0.0
    %1098 = vmatprep.subr.mxu0 0.0
    %1099 = vmatpush1.msra.mxu0 0.0
    %1100 = vmatprep.subr.mxu0 0.0
    %1101 = vmatpush1.msra.mxu0 0.0
    %1102 = vmatprep.subr.mxu0 0.0
    %1103 = vmatpush1.msra.mxu0 0.0
    %1104 = vmatprep.subr.mxu0 0.0
    %1105 = vmatpush1.msra.mxu0 %v1069
    %1106 = vmatprep.subr.mxu0 0.0
    %1107 = vmatpush2.msra.mxu0 0.0
    %1108 = vmatprep.subr.mxu0 0.0
    %1109 = vmatpush2.msra.mxu0 0.0
    %1110 = vmatprep.subr.mxu0 0.0
    %1111 = vmatpush2.msra.mxu0 0.0
    %1112 = vmatprep.subr.mxu0 0.0
    %1113 = vmatpush2.msra.mxu0 0.0
    %1114 = vmatprep.subr.mxu0 0.0
    %1115 = vmatpush2.msra.mxu0 0.0
    %1116 = vmatprep.subr.mxu0 0.0
    %1117 = vmatpush2.msra.mxu0 0.0
    %1118 = vmatprep.subr.mxu0 0.0
    %1119 = vmatpush2.msra.mxu0 0.0
    %1120 = vmatprep.subr.mxu0 0.0
    %1121 = vmatpush2.msra.mxu0 0.0
    %1122 = vmatprep.subr.mxu0 0.0
    %1123 = vmatpush2.msra.mxu0 0.0
    %1124 = vmatprep.subr.mxu0 0.0
    %1125 = vmatpush2.msra.mxu0 0.0
    %1126 = vmatprep.subr.mxu0 0.0
    %1127 = vmatpush2.msra.mxu0 0.0
    %1128 = vmatprep.subr.mxu0 0.0
    %1129 = vmatpush2.msra.mxu0 0.0
    %1130 = vmatprep.subr.mxu0 0.0
    %1131 = vmatpush2.msra.mxu0 0.0
    %1132 = vmatprep.subr.mxu0 0.0
    %1133 = vmatpush2.msra.mxu0 0.0
    %1134 = vmatprep.subr.mxu0 0.0
    %1135 = vmatpush2.msra.mxu0 0.0
    %1136 = vmatprep.subr.mxu0 0.0
    %1137 = vmatpush2.msra.mxu0 0.0
    %1138 = vmatprep.mubr.f32.mxu0 0.0
    %1139 = vmatmul.mubr.f32.gmra.mxu0 %v1072
    %v1140 = vpop.f32.mrf.mxu0
    %v1141 = vadd.f32 0.0, %v1140
    %v1142 = vpop.f32.mrf.mxu0
    %1143 = vdwg.mxu0
    %v1145 = vsel %vm486, %v1064, 0
    %v1148 = vsel %vm486, %v1141, 0
    %1150 = vmatprep.subr.mxu0 0.0
    %1151 = vmatpush1.msra.mxu0 0.0
    %1152 = vmatprep.subr.mxu0 0.0
    %1153 = vmatpush1.msra.mxu0 0.0
    %1154 = vmatprep.subr.mxu0 0.0
    %1155 = vmatpush1.msra.mxu0 0.0
    %1156 = vmatprep.subr.mxu0 0.0
    %1157 = vmatpush1.msra.mxu0 0.0
    %1158 = vmatprep.subr.mxu0 0.0
    %1159 = vmatpush1.msra.mxu0 0.0
    %1160 = vmatprep.subr.mxu0 0.0
    %1161 = vmatpush1.msra.mxu0 0.0
    %1162 = vmatprep.subr.mxu0 0.0
    %1163 = vmatpush1.msra.mxu0 0.0
    %1164 = vmatprep.subr.mxu0 0.0
    %1165 = vmatpush1.msra.mxu0 0.0
    %1166 = vmatprep.subr.mxu0 0.0
    %1167 = vmatpush1.msra.mxu0 0.0
    %1168 = vmatprep.subr.mxu0 0.0
    %1169 = vmatpush1.msra.mxu0 0.0
    %1170 = vmatprep.subr.mxu0 0.0
    %1171 = vmatpush1.msra.mxu0 0.0
    %1172 = vmatprep.subr.mxu0 0.0
    %1173 = vmatpush1.msra.mxu0 0.0
    %1174 = vmatprep.subr.mxu0 0.0
    %1175 = vmatpush1.msra.mxu0 %v477
    %1176 = vmatprep.subr.mxu0 0.0
    %1177 = vmatpush1.msra.mxu0 %v476
    %1178 = vmatprep.subr.mxu0 0.0
    %1179 = vmatpush1.msra.mxu0 %v475
    %1180 = vmatprep.subr.mxu0 0.0
    %1181 = vmatpush1.msra.mxu0 %v474
    %1182 = vmatprep.subr.mxu0 0.0
    %1183 = vmatpush2.msra.mxu0 0.0
    %1184 = vmatprep.subr.mxu0 0.0
    %1185 = vmatpush2.msra.mxu0 0.0
    %1186 = vmatprep.subr.mxu0 0.0
    %1187 = vmatpush2.msra.mxu0 0.0
    %1188 = vmatprep.subr.mxu0 0.0
    %1189 = vmatpush2.msra.mxu0 0.0
    %1190 = vmatprep.subr.mxu0 0.0
    %1191 = vmatpush2.msra.mxu0 0.0
    %1192 = vmatprep.subr.mxu0 0.0
    %1193 = vmatpush2.msra.mxu0 0.0
    %1194 = vmatprep.subr.mxu0 0.0
    %1195 = vmatpush2.msra.mxu0 0.0
    %1196 = vmatprep.subr.mxu0 0.0
    %1197 = vmatpush2.msra.mxu0 0.0
    %1198 = vmatprep.subr.mxu0 0.0
    %1199 = vmatpush2.msra.mxu0 0.0
    %1200 = vmatprep.subr.mxu0 0.0
    %1201 = vmatpush2.msra.mxu0 0.0
    %1202 = vmatprep.subr.mxu0 0.0
    %1203 = vmatpush2.msra.mxu0 0.0
    %1204 = vmatprep.subr.mxu0 0.0
    %1205 = vmatpush2.msra.mxu0 0.0
    %1206 = vmatprep.subr.mxu0 0.0
    %1207 = vmatpush2.msra.mxu0 0.0
    %1208 = vmatprep.subr.mxu0 0.0
    %1209 = vmatpush2.msra.mxu0 0.0
    %1210 = vmatprep.subr.mxu0 0.0
    %1211 = vmatpush2.msra.mxu0 0.0
    %1212 = vmatprep.subr.mxu0 0.0
    %1213 = vmatpush2.msra.mxu0 0.0
    %1214 = vmatprep.mubr.f32.mxu0 0.0
    %1215 = vmatmul.mubr.f32.gmra.mxu0 %v1145
    %v1216 = vpop.f32.mrf.mxu0
    %v1217 = vadd.f32 0.0, %v1216
    %v1218 = vpop.f32.mrf.mxu0
    %1219 = vmatprep.mubr.f32.mxu0 0.0
    %1220 = vmatmul.mubr.f32.gmra.mxu0 %v1148
    %v1221 = vpop.f32.mrf.mxu0
    %v1222 = vadd.f32 0.0, %v1221
    %v1223 = vpop.f32.mrf.mxu0
    %1224 = vdwg.mxu0
    %v1226 = vsel %vm486, %v734, 0
    %v1229 = vsel %vm486, %v807, 0
    %1231 = vmatprep.subr.mxu0 0.0
    %1232 = vmatpush1.msra.mxu0 0.0
    %1233 = vmatprep.subr.mxu0 0.0
    %1234 = vmatpush1.msra.mxu0 0.0
    %1235 = vmatprep.subr.mxu0 0.0
    %1236 = vmatpush1.msra.mxu0 0.0
    %1237 = vmatprep.subr.mxu0 0.0
    %1238 = vmatpush1.msra.mxu0 0.0
    %1239 = vmatprep.subr.mxu0 0.0
    %1240 = vmatpush1.msra.mxu0 0.0
    %1241 = vmatprep.subr.mxu0 0.0
    %1242 = vmatpush1.msra.mxu0 0.0
    %1243 = vmatprep.subr.mxu0 0.0
    %1244 = vmatpush1.msra.mxu0 0.0
    %1245 = vmatprep.subr.mxu0 0.0
    %1246 = vmatpush1.msra.mxu0 0.0
    %1247 = vmatprep.subr.mxu0 0.0
    %1248 = vmatpush1.msra.mxu0 0.0
    %1249 = vmatprep.subr.mxu0 0.0
    %1250 = vmatpush1.msra.mxu0 0.0
    %1251 = vmatprep.subr.mxu0 0.0
    %1252 = vmatpush1.msra.mxu0 0.0
    %1253 = vmatprep.subr.mxu0 0.0
    %1254 = vmatpush1.msra.mxu0 0.0
    %1255 = vmatprep.subr.mxu0 0.0
    %1256 = vmatpush1.msra.mxu0 %v473
    %1257 = vmatprep.subr.mxu0 0.0
    %1258 = vmatpush1.msra.mxu0 %v472
    %1259 = vmatprep.subr.mxu0 0.0
    %1260 = vmatpush1.msra.mxu0 %v471
    %1261 = vmatprep.subr.mxu0 0.0
    %1262 = vmatpush1.msra.mxu0 %v470
    %1263 = vmatprep.subr.mxu0 0.0
    %1264 = vmatpush2.msra.mxu0 0.0
    %1265 = vmatprep.subr.mxu0 0.0
    %1266 = vmatpush2.msra.mxu0 0.0
    %1267 = vmatprep.subr.mxu0 0.0
    %1268 = vmatpush2.msra.mxu0 0.0
    %1269 = vmatprep.subr.mxu0 0.0
    %1270 = vmatpush2.msra.mxu0 0.0
    %1271 = vmatprep.subr.mxu0 0.0
    %1272 = vmatpush2.msra.mxu0 0.0
    %1273 = vmatprep.subr.mxu0 0.0
    %1274 = vmatpush2.msra.mxu0 0.0
    %1275 = vmatprep.subr.mxu0 0.0
    %1276 = vmatpush2.msra.mxu0 0.0
    %1277 = vmatprep.subr.mxu0 0.0
    %1278 = vmatpush2.msra.mxu0 0.0
    %1279 = vmatprep.subr.mxu0 0.0
    %1280 = vmatpush2.msra.mxu0 0.0
    %1281 = vmatprep.subr.mxu0 0.0
    %1282 = vmatpush2.msra.mxu0 0.0
    %1283 = vmatprep.subr.mxu0 0.0
    %1284 = vmatpush2.msra.mxu0 0.0
    %1285 = vmatprep.subr.mxu0 0.0
    %1286 = vmatpush2.msra.mxu0 0.0
    %1287 = vmatprep.subr.mxu0 0.0
    %1288 = vmatpush2.msra.mxu0 0.0
    %1289 = vmatprep.subr.mxu0 0.0
    %1290 = vmatpush2.msra.mxu0 0.0
    %1291 = vmatprep.subr.mxu0 0.0
    %1292 = vmatpush2.msra.mxu0 0.0
    %1293 = vmatprep.subr.mxu0 0.0
    %1294 = vmatpush2.msra.mxu0 0.0
    %1295 = vmatprep.mubr.f32.mxu0 0.0
    %1296 = vmatmul.mubr.f32.gmra.mxu0 %v1226
    %v1297 = vpop.f32.mrf.mxu0
    %v1298 = vadd.f32 %v1217, %v1297
    %v1299 = vpop.f32.mrf.mxu0
    %1300 = vmatprep.mubr.f32.mxu0 0.0
    %1301 = vmatmul.mubr.f32.gmra.mxu0 %v1229
    %v1302 = vpop.f32.mrf.mxu0
    %v1303 = vadd.f32 %v1222, %v1302
    %v1304 = vpop.f32.mrf.mxu0
    %1305 = vdwg.mxu0
    %1306 = vrot.lane.b32.xlu0 %v456, 64
    %v1307 = vpop.permute.xlu0 %1306
    %1308 = vrot.lane.b32.xlu0 %v462, 64
    %v1309 = vpop.permute.xlu0 %1308
    %v1310 = vsel %vm486, %v1307, 0
    %v1312 = vsel %vm486, %v1309, 0
    %1314 = vmatprep.subr.mxu0 0.0
    %1315 = vmatpush1.xpose.msra.mxu0 0.0
    %1316 = vmatprep.subr.mxu0 0.0
    %1317 = vmatpush1.xpose.msra.mxu0 0.0
    %1318 = vmatprep.subr.mxu0 0.0
    %1319 = vmatpush1.xpose.msra.mxu0 0.0
    %1320 = vmatprep.subr.mxu0 0.0
    %1321 = vmatpush1.xpose.msra.mxu0 0.0
    %1322 = vmatprep.subr.mxu0 0.0
    %1323 = vmatpush1.xpose.msra.mxu0 0.0
    %1324 = vmatprep.subr.mxu0 0.0
    %1325 = vmatpush1.xpose.msra.mxu0 0.0
    %1326 = vmatprep.subr.mxu0 0.0
    %1327 = vmatpush1.xpose.msra.mxu0 0.0
    %1328 = vmatprep.subr.mxu0 0.0
    %1329 = vmatpush1.xpose.msra.mxu0 0.0
    %1330 = vmatprep.subr.mxu0 0.0
    %1331 = vmatpush1.xpose.msra.mxu0 0.0
    %1332 = vmatprep.subr.mxu0 0.0
    %1333 = vmatpush1.xpose.msra.mxu0 0.0
    %1334 = vmatprep.subr.mxu0 0.0
    %1335 = vmatpush1.xpose.msra.mxu0 0.0
    %1336 = vmatprep.subr.mxu0 0.0
    %1337 = vmatpush1.xpose.msra.mxu0 0.0
    %1338 = vmatprep.subr.mxu0 0.0
    %1339 = vmatpush1.xpose.msra.mxu0 0.0
    %1340 = vmatprep.subr.mxu0 0.0
    %1341 = vmatpush1.xpose.msra.mxu0 0.0
    %1342 = vmatprep.subr.mxu0 0.0
    %1343 = vmatpush1.xpose.msra.mxu0 0.0
    %1344 = vmatprep.subr.mxu0 0.0
    %1345 = vmatpush1.xpose.msra.mxu0 %v1312
    %1346 = vmatprep.subr.mxu0 0.0
    %1347 = vmatpush2.xpose.msra.mxu0 0.0
    %1348 = vmatprep.subr.mxu0 0.0
    %1349 = vmatpush2.xpose.msra.mxu0 0.0
    %1350 = vmatprep.subr.mxu0 0.0
    %1351 = vmatpush2.xpose.msra.mxu0 0.0
    %1352 = vmatprep.subr.mxu0 0.0
    %1353 = vmatpush2.xpose.msra.mxu0 0.0
    %1354 = vmatprep.subr.mxu0 0.0
    %1355 = vmatpush2.xpose.msra.mxu0 0.0
    %1356 = vmatprep.subr.mxu0 0.0
    %1357 = vmatpush2.xpose.msra.mxu0 0.0
    %1358 = vmatprep.subr.mxu0 0.0
    %1359 = vmatpush2.xpose.msra.mxu0 0.0
    %1360 = vmatprep.subr.mxu0 0.0
    %1361 = vmatpush2.xpose.msra.mxu0 0.0
    %1362 = vmatprep.subr.mxu0 0.0
    %1363 = vmatpush2.xpose.msra.mxu0 0.0
    %1364 = vmatprep.subr.mxu0 0.0
    %1365 = vmatpush2.xpose.msra.mxu0 0.0
    %1366 = vmatprep.subr.mxu0 0.0
    %1367 = vmatpush2.xpose.msra.mxu0 0.0
    %1368 = vmatprep.subr.mxu0 0.0
    %1369 = vmatpush2.xpose.msra.mxu0 0.0
    %1370 = vmatprep.subr.mxu0 0.0
    %1371 = vmatpush2.xpose.msra.mxu0 0.0
    %1372 = vmatprep.subr.mxu0 0.0
    %1373 = vmatpush2.xpose.msra.mxu0 0.0
    %1374 = vmatprep.subr.mxu0 0.0
    %1375 = vmatpush2.xpose.msra.mxu0 0.0
    %1376 = vmatprep.subr.mxu0 0.0
    %1377 = vmatpush2.xpose.msra.mxu0 0.0
    %1378 = vmatprep.mubr.f32.mxu0 0.0
    %1379 = vmatmul.mubr.f32.gmra.mxu0 %v1310
    %v1380 = vpop.f32.mrf.mxu0
    %v1381 = vadd.f32 0.0, %v1380
    %v1382 = vpop.f32.mrf.mxu0
    %1383 = vdwg.mxu0
    %1384 = vrot.lane.b32.xlu0 %v457, 64
    %v1385 = vpop.permute.xlu0 %1384
    %1386 = vrot.lane.b32.xlu0 %v463, 64
    %v1387 = vpop.permute.xlu0 %1386
    %v1388 = vsel %vm486, %v1385, 0
    %v1390 = vsel %vm486, %v1387, 0
    %1392 = vmatprep.subr.mxu0 0.0
    %1393 = vmatpush1.xpose.msra.mxu0 0.0
    %1394 = vmatprep.subr.mxu0 0.0
    %1395 = vmatpush1.xpose.msra.mxu0 0.0
    %1396 = vmatprep.subr.mxu0 0.0
    %1397 = vmatpush1.xpose.msra.mxu0 0.0
    %1398 = vmatprep.subr.mxu0 0.0
    %1399 = vmatpush1.xpose.msra.mxu0 0.0
    %1400 = vmatprep.subr.mxu0 0.0
    %1401 = vmatpush1.xpose.msra.mxu0 0.0
    %1402 = vmatprep.subr.mxu0 0.0
    %1403 = vmatpush1.xpose.msra.mxu0 0.0
    %1404 = vmatprep.subr.mxu0 0.0
    %1405 = vmatpush1.xpose.msra.mxu0 0.0
    %1406 = vmatprep.subr.mxu0 0.0
    %1407 = vmatpush1.xpose.msra.mxu0 0.0
    %1408 = vmatprep.subr.mxu0 0.0
    %1409 = vmatpush1.xpose.msra.mxu0 0.0
    %1410 = vmatprep.subr.mxu0 0.0
    %1411 = vmatpush1.xpose.msra.mxu0 0.0
    %1412 = vmatprep.subr.mxu0 0.0
    %1413 = vmatpush1.xpose.msra.mxu0 0.0
    %1414 = vmatprep.subr.mxu0 0.0
    %1415 = vmatpush1.xpose.msra.mxu0 0.0
    %1416 = vmatprep.subr.mxu0 0.0
    %1417 = vmatpush1.xpose.msra.mxu0 0.0
    %1418 = vmatprep.subr.mxu0 0.0
    %1419 = vmatpush1.xpose.msra.mxu0 0.0
    %1420 = vmatprep.subr.mxu0 0.0
    %1421 = vmatpush1.xpose.msra.mxu0 0.0
    %1422 = vmatprep.subr.mxu0 0.0
    %1423 = vmatpush1.xpose.msra.mxu0 %v1390
    %1424 = vmatprep.subr.mxu0 0.0
    %1425 = vmatpush2.xpose.msra.mxu0 0.0
    %1426 = vmatprep.subr.mxu0 0.0
    %1427 = vmatpush2.xpose.msra.mxu0 0.0
    %1428 = vmatprep.subr.mxu0 0.0
    %1429 = vmatpush2.xpose.msra.mxu0 0.0
    %1430 = vmatprep.subr.mxu0 0.0
    %1431 = vmatpush2.xpose.msra.mxu0 0.0
    %1432 = vmatprep.subr.mxu0 0.0
    %1433 = vmatpush2.xpose.msra.mxu0 0.0
    %1434 = vmatprep.subr.mxu0 0.0
    %1435 = vmatpush2.xpose.msra.mxu0 0.0
    %1436 = vmatprep.subr.mxu0 0.0
    %1437 = vmatpush2.xpose.msra.mxu0 0.0
    %1438 = vmatprep.subr.mxu0 0.0
    %1439 = vmatpush2.xpose.msra.mxu0 0.0
    %1440 = vmatprep.subr.mxu0 0.0
    %1441 = vmatpush2.xpose.msra.mxu0 0.0
    %1442 = vmatprep.subr.mxu0 0.0
    %1443 = vmatpush2.xpose.msra.mxu0 0.0
    %1444 = vmatprep.subr.mxu0 0.0
    %1445 = vmatpush2.xpose.msra.mxu0 0.0
    %1446 = vmatprep.subr.mxu0 0.0
    %1447 = vmatpush2.xpose.msra.mxu0 0.0
    %1448 = vmatprep.subr.mxu0 0.0
    %1449 = vmatpush2.xpose.msra.mxu0 0.0
    %1450 = vmatprep.subr.mxu0 0.0
    %1451 = vmatpush2.xpose.msra.mxu0 0.0
    %1452 = vmatprep.subr.mxu0 0.0
    %1453 = vmatpush2.xpose.msra.mxu0 0.0
    %1454 = vmatprep.subr.mxu0 0.0
    %1455 = vmatpush2.xpose.msra.mxu0 0.0
    %1456 = vmatprep.mubr.f32.mxu0 0.0
    %1457 = vmatmul.mubr.f32.gmra.mxu0 %v1388
    %v1458 = vpop.f32.mrf.mxu0
    %v1459 = vadd.f32 0.0, %v1458
    %v1460 = vpop.f32.mrf.mxu0
    %1461 = vdwg.mxu0
    %v1462 = vmul.f32 %v1381, 0.35355338
    %v1463 = vmul.f32 %v1459, 0.35355338
    %v1464 = vsel %vm641, %v1462, -inf
    %1465 = vmax.xlane.f32.xlu0 %v1464
    %v1466 = vpop.xlane.xlu0 %1465
    %v1467 = vsel %vm641, %v1463, -inf
    %1468 = vmax.xlane.f32.xlu0 %v1467
    %v1469 = vpop.xlane.xlu0 %1468
    %v1470 = vsub.f32 %v1462, %v1466
    %v1471 = vsub.f32 %v1463, %v1469
    %v1472 = vmul.f32 %v1470, 1.442695
    %v1473 = vpow.pop %v1472
    %v1474 = vmul.f32 %v1471, 1.442695
    %v1475 = vpow.pop %v1474
    %v1476 = vsel %vm641, %v1473, 0.0
    %1477 = vadd.xlane.f32.xlu0 %v1476
    %v1478 = vpop.xlane.xlu0 %1477
    %v1479 = vsel %vm641, %v1475, 0.0
    %1480 = vadd.xlane.f32.xlu0 %v1479
    %v1481 = vpop.xlane.xlu0 %1480
    %v1482 = vrcp.pop %v1478
    %v1483 = vrcp.pop %v1481
    %v1484 = vmul.f32 %v1473, %v1482
    %v1485 = vmul.f32 %v1475, %v1483
    %1486 = vrot.lane.b32.xlu0 %v468, 64
    %v1487 = vpop.permute.xlu0 %1486
    %v1490 = vsel %vm641, %v1484, 0
    %1492 = vmatprep.subr.mxu0 0.0
    %1493 = vmatpush1.msra.mxu0 0.0
    %1494 = vmatprep.subr.mxu0 0.0
    %1495 = vmatpush1.msra.mxu0 0.0
    %1496 = vmatprep.subr.mxu0 0.0
    %1497 = vmatpush1.msra.mxu0 0.0
    %1498 = vmatprep.subr.mxu0 0.0
    %1499 = vmatpush1.msra.mxu0 0.0
    %1500 = vmatprep.subr.mxu0 0.0
    %1501 = vmatpush1.msra.mxu0 0.0
    %1502 = vmatprep.subr.mxu0 0.0
    %1503 = vmatpush1.msra.mxu0 0.0
    %1504 = vmatprep.subr.mxu0 0.0
    %1505 = vmatpush1.msra.mxu0 0.0
    %1506 = vmatprep.subr.mxu0 0.0
    %1507 = vmatpush1.msra.mxu0 0.0
    %1508 = vmatprep.subr.mxu0 0.0
    %1509 = vmatpush1.msra.mxu0 0.0
    %1510 = vmatprep.subr.mxu0 0.0
    %1511 = vmatpush1.msra.mxu0 0.0
    %1512 = vmatprep.subr.mxu0 0.0
    %1513 = vmatpush1.msra.mxu0 0.0
    %1514 = vmatprep.subr.mxu0 0.0
    %1515 = vmatpush1.msra.mxu0 0.0
    %1516 = vmatprep.subr.mxu0 0.0
    %1517 = vmatpush1.msra.mxu0 0.0
    %1518 = vmatprep.subr.mxu0 0.0
    %1519 = vmatpush1.msra.mxu0 0.0
    %1520 = vmatprep.subr.mxu0 0.0
    %1521 = vmatpush1.msra.mxu0 0.0
    %1522 = vmatprep.subr.mxu0 0.0
    %1523 = vmatpush1.msra.mxu0 %v1487
    %1524 = vmatprep.subr.mxu0 0.0
    %1525 = vmatpush2.msra.mxu0 0.0
    %1526 = vmatprep.subr.mxu0 0.0
    %1527 = vmatpush2.msra.mxu0 0.0
    %1528 = vmatprep.subr.mxu0 0.0
    %1529 = vmatpush2.msra.mxu0 0.0
    %1530 = vmatprep.subr.mxu0 0.0
    %1531 = vmatpush2.msra.mxu0 0.0
    %1532 = vmatprep.subr.mxu0 0.0
    %1533 = vmatpush2.msra.mxu0 0.0
    %1534 = vmatprep.subr.mxu0 0.0
    %1535 = vmatpush2.msra.mxu0 0.0
    %1536 = vmatprep.subr.mxu0 0.0
    %1537 = vmatpush2.msra.mxu0 0.0
    %1538 = vmatprep.subr.mxu0 0.0
    %1539 = vmatpush2.msra.mxu0 0.0
    %1540 = vmatprep.subr.mxu0 0.0
    %1541 = vmatpush2.msra.mxu0 0.0
    %1542 = vmatprep.subr.mxu0 0.0
    %1543 = vmatpush2.msra.mxu0 0.0
    %1544 = vmatprep.subr.mxu0 0.0
    %1545 = vmatpush2.msra.mxu0 0.0
    %1546 = vmatprep.subr.mxu0 0.0
    %1547 = vmatpush2.msra.mxu0 0.0
    %1548 = vmatprep.subr.mxu0 0.0
    %1549 = vmatpush2.msra.mxu0 0.0
    %1550 = vmatprep.subr.mxu0 0.0
    %1551 = vmatpush2.msra.mxu0 0.0
    %1552 = vmatprep.subr.mxu0 0.0
    %1553 = vmatpush2.msra.mxu0 0.0
    %1554 = vmatprep.subr.mxu0 0.0
    %1555 = vmatpush2.msra.mxu0 0.0
    %1556 = vmatprep.mubr.f32.mxu0 0.0
    %1557 = vmatmul.mubr.f32.gmra.mxu0 %v1490
    %v1558 = vpop.f32.mrf.mxu0
    %v1559 = vadd.f32 0.0, %v1558
    %v1560 = vpop.f32.mrf.mxu0
    %1561 = vdwg.mxu0
    %1562 = vrot.lane.b32.xlu0 %v469, 64
    %v1563 = vpop.permute.xlu0 %1562
    %v1566 = vsel %vm641, %v1485, 0
    %1568 = vmatprep.subr.mxu0 0.0
    %1569 = vmatpush1.msra.mxu0 0.0
    %1570 = vmatprep.subr.mxu0 0.0
    %1571 = vmatpush1.msra.mxu0 0.0
    %1572 = vmatprep.subr.mxu0 0.0
    %1573 = vmatpush1.msra.mxu0 0.0
    %1574 = vmatprep.subr.mxu0 0.0
    %1575 = vmatpush1.msra.mxu0 0.0
    %1576 = vmatprep.subr.mxu0 0.0
    %1577 = vmatpush1.msra.mxu0 0.0
    %1578 = vmatprep.subr.mxu0 0.0
    %1579 = vmatpush1.msra.mxu0 0.0
    %1580 = vmatprep.subr.mxu0 0.0
    %1581 = vmatpush1.msra.mxu0 0.0
    %1582 = vmatprep.subr.mxu0 0.0
    %1583 = vmatpush1.msra.mxu0 0.0
    %1584 = vmatprep.subr.mxu0 0.0
    %1585 = vmatpush1.msra.mxu0 0.0
    %1586 = vmatprep.subr.mxu0 0.0
    %1587 = vmatpush1.msra.mxu0 0.0
    %1588 = vmatprep.subr.mxu0 0.0
    %1589 = vmatpush1.msra.mxu0 0.0
    %1590 = vmatprep.subr.mxu0 0.0
    %1591 = vmatpush1.msra.mxu0 0.0
    %1592 = vmatprep.subr.mxu0 0.0
    %1593 = vmatpush1.msra.mxu0 0.0
    %1594 = vmatprep.subr.mxu0 0.0
    %1595 = vmatpush1.msra.mxu0 0.0
    %1596 = vmatprep.subr.mxu0 0.0
    %1597 = vmatpush1.msra.mxu0 0.0
    %1598 = vmatprep.subr.mxu0 0.0
    %1599 = vmatpush1.msra.mxu0 %v1563
    %1600 = vmatprep.subr.mxu0 0.0
    %1601 = vmatpush2.msra.mxu0 0.0
    %1602 = vmatprep.subr.mxu0 0.0
    %1603 = vmatpush2.msra.mxu0 0.0
    %1604 = vmatprep.subr.mxu0 0.0
    %1605 = vmatpush2.msra.mxu0 0.0
    %1606 = vmatprep.subr.mxu0 0.0
    %1607 = vmatpush2.msra.mxu0 0.0
    %1608 = vmatprep.subr.mxu0 0.0
    %1609 = vmatpush2.msra.mxu0 0.0
    %1610 = vmatprep.subr.mxu0 0.0
    %1611 = vmatpush2.msra.mxu0 0.0
    %1612 = vmatprep.subr.mxu0 0.0
    %1613 = vmatpush2.msra.mxu0 0.0
    %1614 = vmatprep.subr.mxu0 0.0
    %1615 = vmatpush2.msra.mxu0 0.0
    %1616 = vmatprep.subr.mxu0 0.0
    %1617 = vmatpush2.msra.mxu0 0.0
    %1618 = vmatprep.subr.mxu0 0.0
    %1619 = vmatpush2.msra.mxu0 0.0
    %1620 = vmatprep.subr.mxu0 0.0
    %1621 = vmatpush2.msra.mxu0 0.0
    %1622 = vmatprep.subr.mxu0 0.0
    %1623 = vmatpush2.msra.mxu0 0.0
    %1624 = vmatprep.subr.mxu0 0.0
    %1625 = vmatpush2.msra.mxu0 0.0
    %1626 = vmatprep.subr.mxu0 0.0
    %1627 = vmatpush2.msra.mxu0 0.0
    %1628 = vmatprep.subr.mxu0 0.0
    %1629 = vmatpush2.msra.mxu0 0.0
    %1630 = vmatprep.subr.mxu0 0.0
    %1631 = vmatpush2.msra.mxu0 0.0
    %1632 = vmatprep.mubr.f32.mxu0 0.0
    %1633 = vmatmul.mubr.f32.gmra.mxu0 %v1566
    %v1634 = vpop.f32.mrf.mxu0
    %v1635 = vadd.f32 0.0, %v1634
    %v1636 = vpop.f32.mrf.mxu0
    %1637 = vdwg.mxu0
    %v1639 = vsel %vm486, %v1559, 0
    %v1642 = vsel %vm486, %v1635, 0
    %1644 = vmatprep.subr.mxu0 0.0
    %1645 = vmatpush1.msra.mxu0 0.0
    %1646 = vmatprep.subr.mxu0 0.0
    %1647 = vmatpush1.msra.mxu0 0.0
    %1648 = vmatprep.subr.mxu0 0.0
    %1649 = vmatpush1.msra.mxu0 0.0
    %1650 = vmatprep.subr.mxu0 0.0
    %1651 = vmatpush1.msra.mxu0 0.0
    %1652 = vmatprep.subr.mxu0 0.0
    %1653 = vmatpush1.msra.mxu0 0.0
    %1654 = vmatprep.subr.mxu0 0.0
    %1655 = vmatpush1.msra.mxu0 0.0
    %1656 = vmatprep.subr.mxu0 0.0
    %1657 = vmatpush1.msra.mxu0 0.0
    %1658 = vmatprep.subr.mxu0 0.0
    %1659 = vmatpush1.msra.mxu0 0.0
    %1660 = vmatprep.subr.mxu0 0.0
    %1661 = vmatpush1.msra.mxu0 0.0
    %1662 = vmatprep.subr.mxu0 0.0
    %1663 = vmatpush1.msra.mxu0 0.0
    %1664 = vmatprep.subr.mxu0 0.0
    %1665 = vmatpush1.msra.mxu0 0.0
    %1666 = vmatprep.subr.mxu0 0.0
    %1667 = vmatpush1.msra.mxu0 0.0
    %1668 = vmatprep.subr.mxu0 0.0
    %1669 = vmatpush1.msra.mxu0 %v481
    %1670 = vmatprep.subr.mxu0 0.0
    %1671 = vmatpush1.msra.mxu0 %v480
    %1672 = vmatprep.subr.mxu0 0.0
    %1673 = vmatpush1.msra.mxu0 %v479
    %1674 = vmatprep.subr.mxu0 0.0
    %1675 = vmatpush1.msra.mxu0 %v478
    %1676 = vmatprep.subr.mxu0 0.0
    %1677 = vmatpush2.msra.mxu0 0.0
    %1678 = vmatprep.subr.mxu0 0.0
    %1679 = vmatpush2.msra.mxu0 0.0
    %1680 = vmatprep.subr.mxu0 0.0
    %1681 = vmatpush2.msra.mxu0 0.0
    %1682 = vmatprep.subr.mxu0 0.0
    %1683 = vmatpush2.msra.mxu0 0.0
    %1684 = vmatprep.subr.mxu0 0.0
    %1685 = vmatpush2.msra.mxu0 0.0
    %1686 = vmatprep.subr.mxu0 0.0
    %1687 = vmatpush2.msra.mxu0 0.0
    %1688 = vmatprep.subr.mxu0 0.0
    %1689 = vmatpush2.msra.mxu0 0.0
    %1690 = vmatprep.subr.mxu0 0.0
    %1691 = vmatpush2.msra.mxu0 0.0
    %1692 = vmatprep.subr.mxu0 0.0
    %1693 = vmatpush2.msra.mxu0 0.0
    %1694 = vmatprep.subr.mxu0 0.0
    %1695 = vmatpush2.msra.mxu0 0.0
    %1696 = vmatprep.subr.mxu0 0.0
    %1697 = vmatpush2.msra.mxu0 0.0
    %1698 = vmatprep.subr.mxu0 0.0
    %1699 = vmatpush2.msra.mxu0 0.0
    %1700 = vmatprep.subr.mxu0 0.0
    %1701 = vmatpush2.msra.mxu0 0.0
    %1702 = vmatprep.subr.mxu0 0.0
    %1703 = vmatpush2.msra.mxu0 0.0
    %1704 = vmatprep.subr.mxu0 0.0
    %1705 = vmatpush2.msra.mxu0 0.0
    %1706 = vmatprep.subr.mxu0 0.0
    %1707 = vmatpush2.msra.mxu0 0.0
    %1708 = vmatprep.mubr.f32.mxu0 0.0
    %1709 = vmatmul.mubr.f32.gmra.mxu0 %v1639
    %v1710 = vpop.f32.mrf.mxu0
    %v1711 = vadd.f32 0.0, %v1710
    %v1712 = vpop.f32.mrf.mxu0
    %1713 = vmatprep.mubr.f32.mxu0 0.0
    %1714 = vmatmul.mubr.f32.gmra.mxu0 %v1642
    %v1715 = vpop.f32.mrf.mxu0
    %v1716 = vadd.f32 0.0, %v1715
    %v1717 = vpop.f32.mrf.mxu0
    %1718 = vdwg.mxu0
    %v1719 = vadd.f32 %v1298, %v1711
    %v1720 = vadd.f32 %v1303, %v1716
    %1721 = vrot.lane.b32.xlu0 %v456, 32
    %v1722 = vpop.permute.xlu0 %1721
    %1723 = vrot.lane.b32.xlu0 %v462, 32
    %v1724 = vpop.permute.xlu0 %1723
    %v1725 = vsel %vm486, %v1722, 0
    %v1727 = vsel %vm486, %v1724, 0
    %1729 = vmatprep.subr.mxu0 0.0
    %1730 = vmatpush1.xpose.msra.mxu0 0.0
    %1731 = vmatprep.subr.mxu0 0.0
    %1732 = vmatpush1.xpose.msra.mxu0 0.0
    %1733 = vmatprep.subr.mxu0 0.0
    %1734 = vmatpush1.xpose.msra.mxu0 0.0
    %1735 = vmatprep.subr.mxu0 0.0
    %1736 = vmatpush1.xpose.msra.mxu0 0.0
    %1737 = vmatprep.subr.mxu0 0.0
    %1738 = vmatpush1.xpose.msra.mxu0 0.0
    %1739 = vmatprep.subr.mxu0 0.0
    %1740 = vmatpush1.xpose.msra.mxu0 0.0
    %1741 = vmatprep.subr.mxu0 0.0
    %1742 = vmatpush1.xpose.msra.mxu0 0.0
    %1743 = vmatprep.subr.mxu0 0.0
    %1744 = vmatpush1.xpose.msra.mxu0 0.0
    %1745 = vmatprep.subr.mxu0 0.0
    %1746 = vmatpush1.xpose.msra.mxu0 0.0
    %1747 = vmatprep.subr.mxu0 0.0
    %1748 = vmatpush1.xpose.msra.mxu0 0.0
    %1749 = vmatprep.subr.mxu0 0.0
    %1750 = vmatpush1.xpose.msra.mxu0 0.0
    %1751 = vmatprep.subr.mxu0 0.0
    %1752 = vmatpush1.xpose.msra.mxu0 0.0
    %1753 = vmatprep.subr.mxu0 0.0
    %1754 = vmatpush1.xpose.msra.mxu0 0.0
    %1755 = vmatprep.subr.mxu0 0.0
    %1756 = vmatpush1.xpose.msra.mxu0 0.0
    %1757 = vmatprep.subr.mxu0 0.0
    %1758 = vmatpush1.xpose.msra.mxu0 0.0
    %1759 = vmatprep.subr.mxu0 0.0
    %1760 = vmatpush1.xpose.msra.mxu0 %v1727
    %1761 = vmatprep.subr.mxu0 0.0
    %1762 = vmatpush2.xpose.msra.mxu0 0.0
    %1763 = vmatprep.subr.mxu0 0.0
    %1764 = vmatpush2.xpose.msra.mxu0 0.0
    %1765 = vmatprep.subr.mxu0 0.0
    %1766 = vmatpush2.xpose.msra.mxu0 0.0
    %1767 = vmatprep.subr.mxu0 0.0
    %1768 = vmatpush2.xpose.msra.mxu0 0.0
    %1769 = vmatprep.subr.mxu0 0.0
    %1770 = vmatpush2.xpose.msra.mxu0 0.0
    %1771 = vmatprep.subr.mxu0 0.0
    %1772 = vmatpush2.xpose.msra.mxu0 0.0
    %1773 = vmatprep.subr.mxu0 0.0
    %1774 = vmatpush2.xpose.msra.mxu0 0.0
    %1775 = vmatprep.subr.mxu0 0.0
    %1776 = vmatpush2.xpose.msra.mxu0 0.0
    %1777 = vmatprep.subr.mxu0 0.0
    %1778 = vmatpush2.xpose.msra.mxu0 0.0
    %1779 = vmatprep.subr.mxu0 0.0
    %1780 = vmatpush2.xpose.msra.mxu0 0.0
    %1781 = vmatprep.subr.mxu0 0.0
    %1782 = vmatpush2.xpose.msra.mxu0 0.0
    %1783 = vmatprep.subr.mxu0 0.0
    %1784 = vmatpush2.xpose.msra.mxu0 0.0
    %1785 = vmatprep.subr.mxu0 0.0
    %1786 = vmatpush2.xpose.msra.mxu0 0.0
    %1787 = vmatprep.subr.mxu0 0.0
    %1788 = vmatpush2.xpose.msra.mxu0 0.0
    %1789 = vmatprep.subr.mxu0 0.0
    %1790 = vmatpush2.xpose.msra.mxu0 0.0
    %1791 = vmatprep.subr.mxu0 0.0
    %1792 = vmatpush2.xpose.msra.mxu0 0.0
    %1793 = vmatprep.mubr.f32.mxu0 0.0
    %1794 = vmatmul.mubr.f32.gmra.mxu0 %v1725
    %v1795 = vpop.f32.mrf.mxu0
    %v1796 = vadd.f32 0.0, %v1795
    %v1797 = vpop.f32.mrf.mxu0
    %1798 = vdwg.mxu0
    %1799 = vrot.lane.b32.xlu0 %v457, 32
    %v1800 = vpop.permute.xlu0 %1799
    %1801 = vrot.lane.b32.xlu0 %v463, 32
    %v1802 = vpop.permute.xlu0 %1801
    %v1803 = vsel %vm486, %v1800, 0
    %v1805 = vsel %vm486, %v1802, 0
    %1807 = vmatprep.subr.mxu0 0.0
    %1808 = vmatpush1.xpose.msra.mxu0 0.0
    %1809 = vmatprep.subr.mxu0 0.0
    %1810 = vmatpush1.xpose.msra.mxu0 0.0
    %1811 = vmatprep.subr.mxu0 0.0
    %1812 = vmatpush1.xpose.msra.mxu0 0.0
    %1813 = vmatprep.subr.mxu0 0.0
    %1814 = vmatpush1.xpose.msra.mxu0 0.0
    %1815 = vmatprep.subr.mxu0 0.0
    %1816 = vmatpush1.xpose.msra.mxu0 0.0
    %1817 = vmatprep.subr.mxu0 0.0
    %1818 = vmatpush1.xpose.msra.mxu0 0.0
    %1819 = vmatprep.subr.mxu0 0.0
    %1820 = vmatpush1.xpose.msra.mxu0 0.0
    %1821 = vmatprep.subr.mxu0 0.0
    %1822 = vmatpush1.xpose.msra.mxu0 0.0
    %1823 = vmatprep.subr.mxu0 0.0
    %1824 = vmatpush1.xpose.msra.mxu0 0.0
    %1825 = vmatprep.subr.mxu0 0.0
    %1826 = vmatpush1.xpose.msra.mxu0 0.0
    %1827 = vmatprep.subr.mxu0 0.0
    %1828 = vmatpush1.xpose.msra.mxu0 0.0
    %1829 = vmatprep.subr.mxu0 0.0
    %1830 = vmatpush1.xpose.msra.mxu0 0.0
    %1831 = vmatprep.subr.mxu0 0.0
    %1832 = vmatpush1.xpose.msra.mxu0 0.0
    %1833 = vmatprep.subr.mxu0 0.0
    %1834 = vmatpush1.xpose.msra.mxu0 0.0
    %1835 = vmatprep.subr.mxu0 0.0
    %1836 = vmatpush1.xpose.msra.mxu0 0.0
    %1837 = vmatprep.subr.mxu0 0.0
    %1838 = vmatpush1.xpose.msra.mxu0 %v1805
    %1839 = vmatprep.subr.mxu0 0.0
    %1840 = vmatpush2.xpose.msra.mxu0 0.0
    %1841 = vmatprep.subr.mxu0 0.0
    %1842 = vmatpush2.xpose.msra.mxu0 0.0
    %1843 = vmatprep.subr.mxu0 0.0
    %1844 = vmatpush2.xpose.msra.mxu0 0.0
    %1845 = vmatprep.subr.mxu0 0.0
    %1846 = vmatpush2.xpose.msra.mxu0 0.0
    %1847 = vmatprep.subr.mxu0 0.0
    %1848 = vmatpush2.xpose.msra.mxu0 0.0
    %1849 = vmatprep.subr.mxu0 0.0
    %1850 = vmatpush2.xpose.msra.mxu0 0.0
    %1851 = vmatprep.subr.mxu0 0.0
    %1852 = vmatpush2.xpose.msra.mxu0 0.0
    %1853 = vmatprep.subr.mxu0 0.0
    %1854 = vmatpush2.xpose.msra.mxu0 0.0
    %1855 = vmatprep.subr.mxu0 0.0
    %1856 = vmatpush2.xpose.msra.mxu0 0.0
    %1857 = vmatprep.subr.mxu0 0.0
    %1858 = vmatpush2.xpose.msra.mxu0 0.0
    %1859 = vmatprep.subr.mxu0 0.0
    %1860 = vmatpush2.xpose.msra.mxu0 0.0
    %1861 = vmatprep.subr.mxu0 0.0
    %1862 = vmatpush2.xpose.msra.mxu0 0.0
    %1863 = vmatprep.subr.mxu0 0.0
    %1864 = vmatpush2.xpose.msra.mxu0 0.0
    %1865 = vmatprep.subr.mxu0 0.0
    %1866 = vmatpush2.xpose.msra.mxu0 0.0
    %1867 = vmatprep.subr.mxu0 0.0
    %1868 = vmatpush2.xpose.msra.mxu0 0.0
    %1869 = vmatprep.subr.mxu0 0.0
    %1870 = vmatpush2.xpose.msra.mxu0 0.0
    %1871 = vmatprep.mubr.f32.mxu0 0.0
    %1872 = vmatmul.mubr.f32.gmra.mxu0 %v1803
    %v1873 = vpop.f32.mrf.mxu0
    %v1874 = vadd.f32 0.0, %v1873
    %v1875 = vpop.f32.mrf.mxu0
    %1876 = vdwg.mxu0
    %v1877 = vmul.f32 %v1796, 0.35355338
    %v1878 = vmul.f32 %v1874, 0.35355338
    %v1879 = vsel %vm641, %v1877, -inf
    %1880 = vmax.xlane.f32.xlu0 %v1879
    %v1881 = vpop.xlane.xlu0 %1880
    %v1882 = vsel %vm641, %v1878, -inf
    %1883 = vmax.xlane.f32.xlu0 %v1882
    %v1884 = vpop.xlane.xlu0 %1883
    %v1885 = vsub.f32 %v1877, %v1881
    %v1886 = vsub.f32 %v1878, %v1884
    %v1887 = vmul.f32 %v1885, 1.442695
    %v1888 = vpow.pop %v1887
    %v1889 = vmul.f32 %v1886, 1.442695
    %v1890 = vpow.pop %v1889
    %v1891 = vsel %vm641, %v1888, 0.0
    %1892 = vadd.xlane.f32.xlu0 %v1891
    %v1893 = vpop.xlane.xlu0 %1892
    %v1894 = vsel %vm641, %v1890, 0.0
    %1895 = vadd.xlane.f32.xlu0 %v1894
    %v1896 = vpop.xlane.xlu0 %1895
    %v1897 = vrcp.pop %v1893
    %v1898 = vrcp.pop %v1896
    %v1899 = vmul.f32 %v1888, %v1897
    %v1900 = vmul.f32 %v1890, %v1898
    %1901 = vrot.lane.b32.xlu0 %v468, 32
    %v1902 = vpop.permute.xlu0 %1901
    %v1905 = vsel %vm641, %v1899, 0
    %1907 = vmatprep.subr.mxu0 0.0
    %1908 = vmatpush1.msra.mxu0 0.0
    %1909 = vmatprep.subr.mxu0 0.0
    %1910 = vmatpush1.msra.mxu0 0.0
    %1911 = vmatprep.subr.mxu0 0.0
    %1912 = vmatpush1.msra.mxu0 0.0
    %1913 = vmatprep.subr.mxu0 0.0
    %1914 = vmatpush1.msra.mxu0 0.0
    %1915 = vmatprep.subr.mxu0 0.0
    %1916 = vmatpush1.msra.mxu0 0.0
    %1917 = vmatprep.subr.mxu0 0.0
    %1918 = vmatpush1.msra.mxu0 0.0
    %1919 = vmatprep.subr.mxu0 0.0
    %1920 = vmatpush1.msra.mxu0 0.0
    %1921 = vmatprep.subr.mxu0 0.0
    %1922 = vmatpush1.msra.mxu0 0.0
    %1923 = vmatprep.subr.mxu0 0.0
    %1924 = vmatpush1.msra.mxu0 0.0
    %1925 = vmatprep.subr.mxu0 0.0
    %1926 = vmatpush1.msra.mxu0 0.0
    %1927 = vmatprep.subr.mxu0 0.0
    %1928 = vmatpush1.msra.mxu0 0.0
    %1929 = vmatprep.subr.mxu0 0.0
    %1930 = vmatpush1.msra.mxu0 0.0
    %1931 = vmatprep.subr.mxu0 0.0
    %1932 = vmatpush1.msra.mxu0 0.0
    %1933 = vmatprep.subr.mxu0 0.0
    %1934 = vmatpush1.msra.mxu0 0.0
    %1935 = vmatprep.subr.mxu0 0.0
    %1936 = vmatpush1.msra.mxu0 0.0
    %1937 = vmatprep.subr.mxu0 0.0
    %1938 = vmatpush1.msra.mxu0 %v1902
    %1939 = vmatprep.subr.mxu0 0.0
    %1940 = vmatpush2.msra.mxu0 0.0
    %1941 = vmatprep.subr.mxu0 0.0
    %1942 = vmatpush2.msra.mxu0 0.0
    %1943 = vmatprep.subr.mxu0 0.0
    %1944 = vmatpush2.msra.mxu0 0.0
    %1945 = vmatprep.subr.mxu0 0.0
    %1946 = vmatpush2.msra.mxu0 0.0
    %1947 = vmatprep.subr.mxu0 0.0
    %1948 = vmatpush2.msra.mxu0 0.0
    %1949 = vmatprep.subr.mxu0 0.0
    %1950 = vmatpush2.msra.mxu0 0.0
    %1951 = vmatprep.subr.mxu0 0.0
    %1952 = vmatpush2.msra.mxu0 0.0
    %1953 = vmatprep.subr.mxu0 0.0
    %1954 = vmatpush2.msra.mxu0 0.0
    %1955 = vmatprep.subr.mxu0 0.0
    %1956 = vmatpush2.msra.mxu0 0.0
    %1957 = vmatprep.subr.mxu0 0.0
    %1958 = vmatpush2.msra.mxu0 0.0
    %1959 = vmatprep.subr.mxu0 0.0
    %1960 = vmatpush2.msra.mxu0 0.0
    %1961 = vmatprep.subr.mxu0 0.0
    %1962 = vmatpush2.msra.mxu0 0.0
    %1963 = vmatprep.subr.mxu0 0.0
    %1964 = vmatpush2.msra.mxu0 0.0
    %1965 = vmatprep.subr.mxu0 0.0
    %1966 = vmatpush2.msra.mxu0 0.0
    %1967 = vmatprep.subr.mxu0 0.0
    %1968 = vmatpush2.msra.mxu0 0.0
    %1969 = vmatprep.subr.mxu0 0.0
    %1970 = vmatpush2.msra.mxu0 0.0
    %1971 = vmatprep.mubr.f32.mxu0 0.0
    %1972 = vmatmul.mubr.f32.gmra.mxu0 %v1905
    %v1973 = vpop.f32.mrf.mxu0
    %v1974 = vadd.f32 0.0, %v1973
    %v1975 = vpop.f32.mrf.mxu0
    %1976 = vdwg.mxu0
    %1977 = vrot.lane.b32.xlu0 %v469, 32
    %v1978 = vpop.permute.xlu0 %1977
    %v1981 = vsel %vm641, %v1900, 0
    %1983 = vmatprep.subr.mxu0 0.0
    %1984 = vmatpush1.msra.mxu0 0.0
    %1985 = vmatprep.subr.mxu0 0.0
    %1986 = vmatpush1.msra.mxu0 0.0
    %1987 = vmatprep.subr.mxu0 0.0
    %1988 = vmatpush1.msra.mxu0 0.0
    %1989 = vmatprep.subr.mxu0 0.0
    %1990 = vmatpush1.msra.mxu0 0.0
    %1991 = vmatprep.subr.mxu0 0.0
    %1992 = vmatpush1.msra.mxu0 0.0
    %1993 = vmatprep.subr.mxu0 0.0
    %1994 = vmatpush1.msra.mxu0 0.0
    %1995 = vmatprep.subr.mxu0 0.0
    %1996 = vmatpush1.msra.mxu0 0.0
    %1997 = vmatprep.subr.mxu0 0.0
    %1998 = vmatpush1.msra.mxu0 0.0
    %1999 = vmatprep.subr.mxu0 0.0
    %2000 = vmatpush1.msra.mxu0 0.0
    %2001 = vmatprep.subr.mxu0 0.0
    %2002 = vmatpush1.msra.mxu0 0.0
    %2003 = vmatprep.subr.mxu0 0.0
    %2004 = vmatpush1.msra.mxu0 0.0
    %2005 = vmatprep.subr.mxu0 0.0
    %2006 = vmatpush1.msra.mxu0 0.0
    %2007 = vmatprep.subr.mxu0 0.0
    %2008 = vmatpush1.msra.mxu0 0.0
    %2009 = vmatprep.subr.mxu0 0.0
    %2010 = vmatpush1.msra.mxu0 0.0
    %2011 = vmatprep.subr.mxu0 0.0
    %2012 = vmatpush1.msra.mxu0 0.0
    %2013 = vmatprep.subr.mxu0 0.0
    %2014 = vmatpush1.msra.mxu0 %v1978
    %2015 = vmatprep.subr.mxu0 0.0
    %2016 = vmatpush2.msra.mxu0 0.0
    %2017 = vmatprep.subr.mxu0 0.0
    %2018 = vmatpush2.msra.mxu0 0.0
    %2019 = vmatprep.subr.mxu0 0.0
    %2020 = vmatpush2.msra.mxu0 0.0
    %2021 = vmatprep.subr.mxu0 0.0
    %2022 = vmatpush2.msra.mxu0 0.0
    %2023 = vmatprep.subr.mxu0 0.0
    %2024 = vmatpush2.msra.mxu0 0.0
    %2025 = vmatprep.subr.mxu0 0.0
    %2026 = vmatpush2.msra.mxu0 0.0
    %2027 = vmatprep.subr.mxu0 0.0
    %2028 = vmatpush2.msra.mxu0 0.0
    %2029 = vmatprep.subr.mxu0 0.0
    %2030 = vmatpush2.msra.mxu0 0.0
    %2031 = vmatprep.subr.mxu0 0.0
    %2032 = vmatpush2.msra.mxu0 0.0
    %2033 = vmatprep.subr.mxu0 0.0
    %2034 = vmatpush2.msra.mxu0 0.0
    %2035 = vmatprep.subr.mxu0 0.0
    %2036 = vmatpush2.msra.mxu0 0.0
    %2037 = vmatprep.subr.mxu0 0.0
    %2038 = vmatpush2.msra.mxu0 0.0
    %2039 = vmatprep.subr.mxu0 0.0
    %2040 = vmatpush2.msra.mxu0 0.0
    %2041 = vmatprep.subr.mxu0 0.0
    %2042 = vmatpush2.msra.mxu0 0.0
    %2043 = vmatprep.subr.mxu0 0.0
    %2044 = vmatpush2.msra.mxu0 0.0
    %2045 = vmatprep.subr.mxu0 0.0
    %2046 = vmatpush2.msra.mxu0 0.0
    %2047 = vmatprep.mubr.f32.mxu0 0.0
    %2048 = vmatmul.mubr.f32.gmra.mxu0 %v1981
    %v2049 = vpop.f32.mrf.mxu0
    %v2050 = vadd.f32 0.0, %v2049
    %v2051 = vpop.f32.mrf.mxu0
    %2052 = vdwg.mxu0
    %v2054 = vsel %vm486, %v1974, 0
    %v2057 = vsel %vm486, %v2050, 0
    %2059 = vmatprep.subr.mxu0 0.0
    %2060 = vmatpush1.msra.mxu0 0.0
    %2061 = vmatprep.subr.mxu0 0.0
    %2062 = vmatpush1.msra.mxu0 0.0
    %2063 = vmatprep.subr.mxu0 0.0
    %2064 = vmatpush1.msra.mxu0 0.0
    %2065 = vmatprep.subr.mxu0 0.0
    %2066 = vmatpush1.msra.mxu0 0.0
    %2067 = vmatprep.subr.mxu0 0.0
    %2068 = vmatpush1.msra.mxu0 0.0
    %2069 = vmatprep.subr.mxu0 0.0
    %2070 = vmatpush1.msra.mxu0 0.0
    %2071 = vmatprep.subr.mxu0 0.0
    %2072 = vmatpush1.msra.mxu0 0.0
    %2073 = vmatprep.subr.mxu0 0.0
    %2074 = vmatpush1.msra.mxu0 0.0
    %2075 = vmatprep.subr.mxu0 0.0
    %2076 = vmatpush1.msra.mxu0 0.0
    %2077 = vmatprep.subr.mxu0 0.0
    %2078 = vmatpush1.msra.mxu0 0.0
    %2079 = vmatprep.subr.mxu0 0.0
    %2080 = vmatpush1.msra.mxu0 0.0
    %2081 = vmatprep.subr.mxu0 0.0
    %2082 = vmatpush1.msra.mxu0 0.0
    %2083 = vmatprep.subr.mxu0 0.0
    %2084 = vmatpush1.msra.mxu0 %v485
    %2085 = vmatprep.subr.mxu0 0.0
    %2086 = vmatpush1.msra.mxu0 %v484
    %2087 = vmatprep.subr.mxu0 0.0
    %2088 = vmatpush1.msra.mxu0 %v483
    %2089 = vmatprep.subr.mxu0 0.0
    %2090 = vmatpush1.msra.mxu0 %v482
    %2091 = vmatprep.subr.mxu0 0.0
    %2092 = vmatpush2.msra.mxu0 0.0
    %2093 = vmatprep.subr.mxu0 0.0
    %2094 = vmatpush2.msra.mxu0 0.0
    %2095 = vmatprep.subr.mxu0 0.0
    %2096 = vmatpush2.msra.mxu0 0.0
    %2097 = vmatprep.subr.mxu0 0.0
    %2098 = vmatpush2.msra.mxu0 0.0
    %2099 = vmatprep.subr.mxu0 0.0
    %2100 = vmatpush2.msra.mxu0 0.0
    %2101 = vmatprep.subr.mxu0 0.0
    %2102 = vmatpush2.msra.mxu0 0.0
    %2103 = vmatprep.subr.mxu0 0.0
    %2104 = vmatpush2.msra.mxu0 0.0
    %2105 = vmatprep.subr.mxu0 0.0
    %2106 = vmatpush2.msra.mxu0 0.0
    %2107 = vmatprep.subr.mxu0 0.0
    %2108 = vmatpush2.msra.mxu0 0.0
    %2109 = vmatprep.subr.mxu0 0.0
    %2110 = vmatpush2.msra.mxu0 0.0
    %2111 = vmatprep.subr.mxu0 0.0
    %2112 = vmatpush2.msra.mxu0 0.0
    %2113 = vmatprep.subr.mxu0 0.0
    %2114 = vmatpush2.msra.mxu0 0.0
    %2115 = vmatprep.subr.mxu0 0.0
    %2116 = vmatpush2.msra.mxu0 0.0
    %2117 = vmatprep.subr.mxu0 0.0
    %2118 = vmatpush2.msra.mxu0 0.0
    %2119 = vmatprep.subr.mxu0 0.0
    %2120 = vmatpush2.msra.mxu0 0.0
    %2121 = vmatprep.subr.mxu0 0.0
    %2122 = vmatpush2.msra.mxu0 0.0
    %2123 = vmatprep.mubr.f32.mxu0 0.0
    %2124 = vmatmul.mubr.f32.gmra.mxu0 %v2054
    %v2125 = vpop.f32.mrf.mxu0
    %v2126 = vadd.f32 0.0, %v2125
    %v2127 = vpop.f32.mrf.mxu0
    %2128 = vmatprep.mubr.f32.mxu0 0.0
    %2129 = vmatmul.mubr.f32.gmra.mxu0 %v2057
    %v2130 = vpop.f32.mrf.mxu0
    %v2131 = vadd.f32 0.0, %v2130
    %v2132 = vpop.f32.mrf.mxu0
    %2133 = vdwg.mxu0
    %v2134 = vadd.f32 %v1719, %v2126
    %v2135 = vadd.f32 %v1720, %v2131
    %v2136 = vlaneseq
    %v2137 = vshrl.u32 %v2136, 7
    %v2138 = vsub.s32 4, %v2137
    %v2139 = vrot.slane %v155, %v2138
    %v2140 = vadd.f32 %v2134, %v2139
    %v2141 = vadd.f32 %v2135, %v2139
    %v2142 = vadd.f32 %v244, %v2140
    %v2143 = vadd.f32 %v249, %v2141
    %2144 = vadd.xlane.f32.xlu0 %v2142
    %v2145 = vpop.xlane.xlu0 %2144
    %2146 = vadd.xlane.f32.xlu0 %v2143
    %v2147 = vpop.xlane.xlu0 %2146
    %v2148 = vmul.f32 %v2145, 0.03125
    %v2149 = vmul.f32 %v2147, 0.03125
    %v2150 = vsub.f32 %v2142, %v2148
    %v2151 = vsub.f32 %v2143, %v2149
    %v2152 = vlaneseq
    %v2153 = vshrl.u32 %v2152, 7
    %v2154 = vsub.s32 3, %v2153
    %v2155 = vrot.slane %v156, %v2154
    %v2156 = vmul.f32 %v2150, %v2155
    %v2157 = vmul.f32 %v2151, %v2155
    %v2158 = vmul.f32 %v2156, %v2156
    %v2159 = vmul.f32 %v2157, %v2157
    %2160 = vadd.xlane.f32.xlu0 %v2158
    %v2161 = vpop.xlane.xlu0 %2160
    %2162 = vadd.xlane.f32.xlu0 %v2159
    %v2163 = vpop.xlane.xlu0 %2162
    %v2164 = vmul.f32 %v2161, 0.03125
    %v2165 = vmul.f32 %v2163, 0.03125
    %v2166 = vadd.f32 %v2164, 1e-05
    %v2167 = vadd.f32 %v2165, 1e-05
    %v2168 = vrsqrt.pop %v2166
    %v2169 = vrsqrt.pop %v2167
    %v2170 = vmul.f32 %v2156, %v2168
    %v2171 = vmul.f32 %v2157, %v2169
    %v2172 = vlaneseq
    %v2173 = vshrl.u32 %v2172, 7
    %v2174 = vsub.s32 5, %v2173
    %v2175 = vrot.slane %v155, %v2174
    %v2176 = vmul.f32 %v2170, %v2175
    %v2177 = vmul.f32 %v2171, %v2175
    %v2178 = vlaneseq
    %v2179 = vshrl.u32 %v2178, 7
    %v2180 = vsub.s32 6, %v2179
    %v2181 = vrot.slane %v155, %v2180
    %v2182 = vadd.f32 %v2176, %v2181
    %v2183 = vadd.f32 %v2177, %v2181
    %v2184 = vld [vmem:[#allocation10] sm:$0xff]
    %v2185 = vld [vmem:[#allocation10 + $0x8] sm:$0xff]
    %v2186 = vld [vmem:[#allocation10 + $0x10] sm:$0xff]
    %v2187 = vld [vmem:[#allocation10 + $0x18] sm:$0xff]
    %v2188 = vld [vmem:[#allocation10 + $0x20] sm:$0xff]
    %v2189 = vld [vmem:[#allocation10 + $0x28] sm:$0xff]
    %v2190 = vld [vmem:[#allocation10 + $0x30] sm:$0xff]
    %v2191 = vld [vmem:[#allocation10 + $0x38] sm:$0xff]
    %v2192 = vld [vmem:[#allocation10 + $0x40] sm:$0xff]
    %v2193 = vld [vmem:[#allocation10 + $0x48] sm:$0xff]
    %v2194 = vld [vmem:[#allocation10 + $0x50] sm:$0xff]
    %v2195 = vld [vmem:[#allocation10 + $0x58] sm:$0xff]
    %v2196 = vld [vmem:[#allocation10 + $0x60] sm:$0xff]
    %v2197 = vld [vmem:[#allocation10 + $0x68] sm:$0xff]
    %v2198 = vld [vmem:[#allocation10 + $0x70] sm:$0xff]
    %v2199 = vld [vmem:[#allocation10 + $0x78] sm:$0xff]
    %v2200 = vld [vmem:[#allocation10 + $0x80] sm:$0xff]
    %v2201 = vld [vmem:[#allocation10 + $0x88] sm:$0xff]
    %v2202 = vld [vmem:[#allocation10 + $0x90] sm:$0xff]
    %v2203 = vld [vmem:[#allocation10 + $0x98] sm:$0xff]
    %v2204 = vld [vmem:[#allocation10 + $0xa0] sm:$0xff]
    %v2205 = vld [vmem:[#allocation10 + $0xa8] sm:$0xff]
    %v2206 = vld [vmem:[#allocation10 + $0xb0] sm:$0xff]
    %v2207 = vld [vmem:[#allocation10 + $0xb8] sm:$0xff]
    %v2208 = vld [vmem:[#allocation10 + $0xc0] sm:$0xff]
    %v2209 = vld [vmem:[#allocation10 + $0xc8] sm:$0xff]
    %v2210 = vld [vmem:[#allocation10 + $0xd0] sm:$0xff]
    %v2211 = vld [vmem:[#allocation10 + $0xd8] sm:$0xff]
    %v2212 = vld [vmem:[#allocation10 + $0xe0] sm:$0xff]
    %v2213 = vld [vmem:[#allocation10 + $0xe8] sm:$0xff]
    %v2214 = vld [vmem:[#allocation10 + $0xf0] sm:$0xff]
    %v2215 = vld [vmem:[#allocation10 + $0xf8] sm:$0xff]
    %v2216 = vld [vmem:[#allocation10 + $0x100] sm:$0xff]
    %v2217 = vld [vmem:[#allocation10 + $0x108] sm:$0xff]
    %v2218 = vld [vmem:[#allocation10 + $0x110] sm:$0xff]
    %v2219 = vld [vmem:[#allocation10 + $0x118] sm:$0xff]
    %v2220 = vld [vmem:[#allocation10 + $0x120] sm:$0xff]
    %v2221 = vld [vmem:[#allocation10 + $0x128] sm:$0xff]
    %v2222 = vld [vmem:[#allocation10 + $0x130] sm:$0xff]
    %v2223 = vld [vmem:[#allocation10 + $0x138] sm:$0xff]
    %v2224 = vld [vmem:[#allocation10 + $0x140] sm:$0xff]
    %v2225 = vld [vmem:[#allocation10 + $0x148] sm:$0xff]
    %v2226 = vld [vmem:[#allocation10 + $0x150] sm:$0xff]
    %v2227 = vld [vmem:[#allocation10 + $0x158] sm:$0xff]
    %v2228 = vld [vmem:[#allocation10 + $0x160] sm:$0xff]
    %v2229 = vld [vmem:[#allocation10 + $0x168] sm:$0xff]
    %v2230 = vld [vmem:[#allocation10 + $0x170] sm:$0xff]
    %v2231 = vld [vmem:[#allocation10 + $0x178] sm:$0xff]
    %v2232 = vld [vmem:[#allocation10 + $0x180] sm:$0xff]
    %v2233 = vld [vmem:[#allocation10 + $0x188] sm:$0xff]
    %v2234 = vld [vmem:[#allocation10 + $0x190] sm:$0xff]
    %v2235 = vld [vmem:[#allocation10 + $0x198] sm:$0xff]
    %v2236 = vld [vmem:[#allocation10 + $0x1a0] sm:$0xff]
    %v2237 = vld [vmem:[#allocation10 + $0x1a8] sm:$0xff]
    %v2238 = vld [vmem:[#allocation10 + $0x1b0] sm:$0xff]
    %v2239 = vld [vmem:[#allocation10 + $0x1b8] sm:$0xff]
    %v2240 = vld [vmem:[#allocation10 + $0x1c0] sm:$0xff]
    %v2241 = vld [vmem:[#allocation10 + $0x1c8] sm:$0xff]
    %v2242 = vld [vmem:[#allocation10 + $0x1d0] sm:$0xff]
    %v2243 = vld [vmem:[#allocation10 + $0x1d8] sm:$0xff]
    %v2244 = vld [vmem:[#allocation10 + $0x1e0] sm:$0xff]
    %v2245 = vld [vmem:[#allocation10 + $0x1e8] sm:$0xff]
    %v2246 = vld [vmem:[#allocation10 + $0x1f0] sm:$0xff]
    %v2247 = vld [vmem:[#allocation10 + $0x1f8] sm:$0xff]
    %v2248 = vld [vmem:[#allocation10 + $0x200] sm:$0xff]
    %v2249 = vld [vmem:[#allocation10 + $0x208] sm:$0xff]
    %v2250 = vld [vmem:[#allocation10 + $0x210] sm:$0xff]
    %v2251 = vld [vmem:[#allocation10 + $0x218] sm:$0xff]
    %v2252 = vld [vmem:[#allocation10 + $0x220] sm:$0xff]
    %v2253 = vld [vmem:[#allocation10 + $0x228] sm:$0xff]
    %v2254 = vld [vmem:[#allocation10 + $0x230] sm:$0xff]
    %v2255 = vld [vmem:[#allocation10 + $0x238] sm:$0xff]
    %v2256 = vld [vmem:[#allocation10 + $0x240] sm:$0xff]
    %v2257 = vld [vmem:[#allocation10 + $0x248] sm:$0xff]
    %v2258 = vld [vmem:[#allocation10 + $0x250] sm:$0xff]
    %v2259 = vld [vmem:[#allocation10 + $0x258] sm:$0xff]
    %v2260 = vld [vmem:[#allocation10 + $0x260] sm:$0xff]
    %v2261 = vld [vmem:[#allocation10 + $0x268] sm:$0xff]
    %v2262 = vld [vmem:[#allocation10 + $0x270] sm:$0xff]
    %v2263 = vld [vmem:[#allocation10 + $0x278] sm:$0xff]
    %v2264 = vld [vmem:[#allocation10 + $0x280] sm:$0xff]
    %v2265 = vld [vmem:[#allocation10 + $0x288] sm:$0xff]
    %v2266 = vld [vmem:[#allocation10 + $0x290] sm:$0xff]
    %v2267 = vld [vmem:[#allocation10 + $0x298] sm:$0xff]
    %v2268 = vld [vmem:[#allocation10 + $0x2a0] sm:$0xff]
    %v2269 = vld [vmem:[#allocation10 + $0x2a8] sm:$0xff]
    %v2270 = vld [vmem:[#allocation10 + $0x2b0] sm:$0xff]
    %v2271 = vld [vmem:[#allocation10 + $0x2b8] sm:$0xff]
    %v2272 = vld [vmem:[#allocation10 + $0x2c0] sm:$0xff]
    %v2273 = vld [vmem:[#allocation10 + $0x2c8] sm:$0xff]
    %v2274 = vld [vmem:[#allocation10 + $0x2d0] sm:$0xff]
    %v2275 = vld [vmem:[#allocation10 + $0x2d8] sm:$0xff]
    %v2276 = vld [vmem:[#allocation10 + $0x2e0] sm:$0xff]
    %v2277 = vld [vmem:[#allocation10 + $0x2e8] sm:$0xff]
    %v2278 = vld [vmem:[#allocation10 + $0x2f0] sm:$0xff]
    %v2279 = vld [vmem:[#allocation10 + $0x2f8] sm:$0xff]
    %v2280 = vld [vmem:[#allocation10 + $0x300] sm:$0xff]
    %v2281 = vld [vmem:[#allocation10 + $0x308] sm:$0xff]
    %v2282 = vld [vmem:[#allocation10 + $0x310] sm:$0xff]
    %v2283 = vld [vmem:[#allocation10 + $0x318] sm:$0xff]
    %v2284 = vld [vmem:[#allocation10 + $0x320] sm:$0xff]
    %v2285 = vld [vmem:[#allocation10 + $0x328] sm:$0xff]
    %v2286 = vld [vmem:[#allocation10 + $0x330] sm:$0xff]
    %v2287 = vld [vmem:[#allocation10 + $0x338] sm:$0xff]
    %v2288 = vld [vmem:[#allocation10 + $0x340] sm:$0xff]
    %v2289 = vld [vmem:[#allocation10 + $0x348] sm:$0xff]
    %v2290 = vld [vmem:[#allocation10 + $0x350] sm:$0xff]
    %v2291 = vld [vmem:[#allocation10 + $0x358] sm:$0xff]
    %v2292 = vld [vmem:[#allocation10 + $0x360] sm:$0xff]
    %v2293 = vld [vmem:[#allocation10 + $0x368] sm:$0xff]
    %v2294 = vld [vmem:[#allocation10 + $0x370] sm:$0xff]
    %v2295 = vld [vmem:[#allocation10 + $0x378] sm:$0xff]
    %v2296 = vld [vmem:[#allocation10 + $0x380] sm:$0xff]
    %v2297 = vld [vmem:[#allocation10 + $0x388] sm:$0xff]
    %v2298 = vld [vmem:[#allocation10 + $0x390] sm:$0xff]
    %v2299 = vld [vmem:[#allocation10 + $0x398] sm:$0xff]
    %v2300 = vld [vmem:[#allocation10 + $0x3a0] sm:$0xff]
    %v2301 = vld [vmem:[#allocation10 + $0x3a8] sm:$0xff]
    %v2302 = vld [vmem:[#allocation10 + $0x3b0] sm:$0xff]
    %v2303 = vld [vmem:[#allocation10 + $0x3b8] sm:$0xff]
    %v2304 = vld [vmem:[#allocation10 + $0x3c0] sm:$0xff]
    %v2305 = vld [vmem:[#allocation10 + $0x3c8] sm:$0xff]
    %v2306 = vld [vmem:[#allocation10 + $0x3d0] sm:$0xff]
    %v2307 = vld [vmem:[#allocation10 + $0x3d8] sm:$0xff]
    %v2308 = vld [vmem:[#allocation10 + $0x3e0] sm:$0xff]
    %v2309 = vld [vmem:[#allocation10 + $0x3e8] sm:$0xff]
    %v2310 = vld [vmem:[#allocation10 + $0x3f0] sm:$0xff]
    %v2311 = vld [vmem:[#allocation10 + $0x3f8] sm:$0xff]
    %v2312 = vunpack.c.l.bf16 %v2184
    %v2313 = vunpack.c.h.bf16 %v2184
    %v2314 = vunpack.c.l.bf16 %v2185
    %v2315 = vunpack.c.h.bf16 %v2185
    %v2316 = vunpack.c.l.bf16 %v2186
    %v2317 = vunpack.c.h.bf16 %v2186
    %v2318 = vunpack.c.l.bf16 %v2187
    %v2319 = vunpack.c.h.bf16 %v2187
    %v2320 = vunpack.c.l.bf16 %v2188
    %v2321 = vunpack.c.h.bf16 %v2188
    %v2322 = vunpack.c.l.bf16 %v2189
    %v2323 = vunpack.c.h.bf16 %v2189
    %v2324 = vunpack.c.l.bf16 %v2190
    %v2325 = vunpack.c.h.bf16 %v2190
    %v2326 = vunpack.c.l.bf16 %v2191
    %v2327 = vunpack.c.h.bf16 %v2191
    %v2328 = vunpack.c.l.bf16 %v2192
    %v2329 = vunpack.c.h.bf16 %v2192
    %v2330 = vunpack.c.l.bf16 %v2193
    %v2331 = vunpack.c.h.bf16 %v2193
    %v2332 = vunpack.c.l.bf16 %v2194
    %v2333 = vunpack.c.h.bf16 %v2194
    %v2334 = vunpack.c.l.bf16 %v2195
    %v2335 = vunpack.c.h.bf16 %v2195
    %v2336 = vunpack.c.l.bf16 %v2196
    %v2337 = vunpack.c.h.bf16 %v2196
    %v2338 = vunpack.c.l.bf16 %v2197
    %v2339 = vunpack.c.h.bf16 %v2197
    %v2340 = vunpack.c.l.bf16 %v2198
    %v2341 = vunpack.c.h.bf16 %v2198
    %v2342 = vunpack.c.l.bf16 %v2199
    %v2343 = vunpack.c.h.bf16 %v2199
    %v2344 = vunpack.c.l.bf16 %v2200
    %v2345 = vunpack.c.h.bf16 %v2200
    %v2346 = vunpack.c.l.bf16 %v2201
    %v2347 = vunpack.c.h.bf16 %v2201
    %v2348 = vunpack.c.l.bf16 %v2202
    %v2349 = vunpack.c.h.bf16 %v2202
    %v2350 = vunpack.c.l.bf16 %v2203
    %v2351 = vunpack.c.h.bf16 %v2203
    %v2352 = vunpack.c.l.bf16 %v2204
    %v2353 = vunpack.c.h.bf16 %v2204
    %v2354 = vunpack.c.l.bf16 %v2205
    %v2355 = vunpack.c.h.bf16 %v2205
    %v2356 = vunpack.c.l.bf16 %v2206
    %v2357 = vunpack.c.h.bf16 %v2206
    %v2358 = vunpack.c.l.bf16 %v2207
    %v2359 = vunpack.c.h.bf16 %v2207
    %v2360 = vunpack.c.l.bf16 %v2208
    %v2361 = vunpack.c.h.bf16 %v2208
    %v2362 = vunpack.c.l.bf16 %v2209
    %v2363 = vunpack.c.h.bf16 %v2209
    %v2364 = vunpack.c.l.bf16 %v2210
    %v2365 = vunpack.c.h.bf16 %v2210
    %v2366 = vunpack.c.l.bf16 %v2211
    %v2367 = vunpack.c.h.bf16 %v2211
    %v2368 = vunpack.c.l.bf16 %v2212
    %v2369 = vunpack.c.h.bf16 %v2212
    %v2370 = vunpack.c.l.bf16 %v2213
    %v2371 = vunpack.c.h.bf16 %v2213
    %v2372 = vunpack.c.l.bf16 %v2214
    %v2373 = vunpack.c.h.bf16 %v2214
    %v2374 = vunpack.c.l.bf16 %v2215
    %v2375 = vunpack.c.h.bf16 %v2215
    %v2376 = vunpack.c.l.bf16 %v2216
    %v2377 = vunpack.c.h.bf16 %v2216
    %v2378 = vunpack.c.l.bf16 %v2217
    %v2379 = vunpack.c.h.bf16 %v2217
    %v2380 = vunpack.c.l.bf16 %v2218
    %v2381 = vunpack.c.h.bf16 %v2218
    %v2382 = vunpack.c.l.bf16 %v2219
    %v2383 = vunpack.c.h.bf16 %v2219
    %v2384 = vunpack.c.l.bf16 %v2220
    %v2385 = vunpack.c.h.bf16 %v2220
    %v2386 = vunpack.c.l.bf16 %v2221
    %v2387 = vunpack.c.h.bf16 %v2221
    %v2388 = vunpack.c.l.bf16 %v2222
    %v2389 = vunpack.c.h.bf16 %v2222
    %v2390 = vunpack.c.l.bf16 %v2223
    %v2391 = vunpack.c.h.bf16 %v2223
    %v2392 = vunpack.c.l.bf16 %v2224
    %v2393 = vunpack.c.h.bf16 %v2224
    %v2394 = vunpack.c.l.bf16 %v2225
    %v2395 = vunpack.c.h.bf16 %v2225
    %v2396 = vunpack.c.l.bf16 %v2226
    %v2397 = vunpack.c.h.bf16 %v2226
    %v2398 = vunpack.c.l.bf16 %v2227
    %v2399 = vunpack.c.h.bf16 %v2227
    %v2400 = vunpack.c.l.bf16 %v2228
    %v2401 = vunpack.c.h.bf16 %v2228
    %v2402 = vunpack.c.l.bf16 %v2229
    %v2403 = vunpack.c.h.bf16 %v2229
    %v2404 = vunpack.c.l.bf16 %v2230
    %v2405 = vunpack.c.h.bf16 %v2230
    %v2406 = vunpack.c.l.bf16 %v2231
    %v2407 = vunpack.c.h.bf16 %v2231
    %v2408 = vunpack.c.l.bf16 %v2232
    %v2409 = vunpack.c.h.bf16 %v2232
    %v2410 = vunpack.c.l.bf16 %v2233
    %v2411 = vunpack.c.h.bf16 %v2233
    %v2412 = vunpack.c.l.bf16 %v2234
    %v2413 = vunpack.c.h.bf16 %v2234
    %v2414 = vunpack.c.l.bf16 %v2235
    %v2415 = vunpack.c.h.bf16 %v2235
    %v2416 = vunpack.c.l.bf16 %v2236
    %v2417 = vunpack.c.h.bf16 %v2236
    %v2418 = vunpack.c.l.bf16 %v2237
    %v2419 = vunpack.c.h.bf16 %v2237
    %v2420 = vunpack.c.l.bf16 %v2238
    %v2421 = vunpack.c.h.bf16 %v2238
    %v2422 = vunpack.c.l.bf16 %v2239
    %v2423 = vunpack.c.h.bf16 %v2239
    %v2424 = vunpack.c.l.bf16 %v2240
    %v2425 = vunpack.c.h.bf16 %v2240
    %v2426 = vunpack.c.l.bf16 %v2241
    %v2427 = vunpack.c.h.bf16 %v2241
    %v2428 = vunpack.c.l.bf16 %v2242
    %v2429 = vunpack.c.h.bf16 %v2242
    %v2430 = vunpack.c.l.bf16 %v2243
    %v2431 = vunpack.c.h.bf16 %v2243
    %v2432 = vunpack.c.l.bf16 %v2244
    %v2433 = vunpack.c.h.bf16 %v2244
    %v2434 = vunpack.c.l.bf16 %v2245
    %v2435 = vunpack.c.h.bf16 %v2245
    %v2436 = vunpack.c.l.bf16 %v2246
    %v2437 = vunpack.c.h.bf16 %v2246
    %v2438 = vunpack.c.l.bf16 %v2247
    %v2439 = vunpack.c.h.bf16 %v2247
    %v2440 = vunpack.c.l.bf16 %v2248
    %v2441 = vunpack.c.h.bf16 %v2248
    %v2442 = vunpack.c.l.bf16 %v2249
    %v2443 = vunpack.c.h.bf16 %v2249
    %v2444 = vunpack.c.l.bf16 %v2250
    %v2445 = vunpack.c.h.bf16 %v2250
    %v2446 = vunpack.c.l.bf16 %v2251
    %v2447 = vunpack.c.h.bf16 %v2251
    %v2448 = vunpack.c.l.bf16 %v2252
    %v2449 = vunpack.c.h.bf16 %v2252
    %v2450 = vunpack.c.l.bf16 %v2253
    %v2451 = vunpack.c.h.bf16 %v2253
    %v2452 = vunpack.c.l.bf16 %v2254
    %v2453 = vunpack.c.h.bf16 %v2254
    %v2454 = vunpack.c.l.bf16 %v2255
    %v2455 = vunpack.c.h.bf16 %v2255
    %v2456 = vunpack.c.l.bf16 %v2256
    %v2457 = vunpack.c.h.bf16 %v2256
    %v2458 = vunpack.c.l.bf16 %v2257
    %v2459 = vunpack.c.h.bf16 %v2257
    %v2460 = vunpack.c.l.bf16 %v2258
    %v2461 = vunpack.c.h.bf16 %v2258
    %v2462 = vunpack.c.l.bf16 %v2259
    %v2463 = vunpack.c.h.bf16 %v2259
    %v2464 = vunpack.c.l.bf16 %v2260
    %v2465 = vunpack.c.h.bf16 %v2260
    %v2466 = vunpack.c.l.bf16 %v2261
    %v2467 = vunpack.c.h.bf16 %v2261
    %v2468 = vunpack.c.l.bf16 %v2262
    %v2469 = vunpack.c.h.bf16 %v2262
    %v2470 = vunpack.c.l.bf16 %v2263
    %v2471 = vunpack.c.h.bf16 %v2263
    %v2472 = vunpack.c.l.bf16 %v2264
    %v2473 = vunpack.c.h.bf16 %v2264
    %v2474 = vunpack.c.l.bf16 %v2265
    %v2475 = vunpack.c.h.bf16 %v2265
    %v2476 = vunpack.c.l.bf16 %v2266
    %v2477 = vunpack.c.h.bf16 %v2266
    %v2478 = vunpack.c.l.bf16 %v2267
    %v2479 = vunpack.c.h.bf16 %v2267
    %v2480 = vunpack.c.l.bf16 %v2268
    %v2481 = vunpack.c.h.bf16 %v2268
    %v2482 = vunpack.c.l.bf16 %v2269
    %v2483 = vunpack.c.h.bf16 %v2269
    %v2484 = vunpack.c.l.bf16 %v2270
    %v2485 = vunpack.c.h.bf16 %v2270
    %v2486 = vunpack.c.l.bf16 %v2271
    %v2487 = vunpack.c.h.bf16 %v2271
    %v2488 = vunpack.c.l.bf16 %v2272
    %v2489 = vunpack.c.h.bf16 %v2272
    %v2490 = vunpack.c.l.bf16 %v2273
    %v2491 = vunpack.c.h.bf16 %v2273
    %v2492 = vunpack.c.l.bf16 %v2274
    %v2493 = vunpack.c.h.bf16 %v2274
    %v2494 = vunpack.c.l.bf16 %v2275
    %v2495 = vunpack.c.h.bf16 %v2275
    %v2496 = vunpack.c.l.bf16 %v2276
    %v2497 = vunpack.c.h.bf16 %v2276
    %v2498 = vunpack.c.l.bf16 %v2277
    %v2499 = vunpack.c.h.bf16 %v2277
    %v2500 = vunpack.c.l.bf16 %v2278
    %v2501 = vunpack.c.h.bf16 %v2278
    %v2502 = vunpack.c.l.bf16 %v2279
    %v2503 = vunpack.c.h.bf16 %v2279
    %v2504 = vunpack.c.l.bf16 %v2280
    %v2505 = vunpack.c.h.bf16 %v2280
    %v2506 = vunpack.c.l.bf16 %v2281
    %v2507 = vunpack.c.h.bf16 %v2281
    %v2508 = vunpack.c.l.bf16 %v2282
    %v2509 = vunpack.c.h.bf16 %v2282
    %v2510 = vunpack.c.l.bf16 %v2283
    %v2511 = vunpack.c.h.bf16 %v2283
    %v2512 = vunpack.c.l.bf16 %v2284
    %v2513 = vunpack.c.h.bf16 %v2284
    %v2514 = vunpack.c.l.bf16 %v2285
    %v2515 = vunpack.c.h.bf16 %v2285
    %v2516 = vunpack.c.l.bf16 %v2286
    %v2517 = vunpack.c.h.bf16 %v2286
    %v2518 = vunpack.c.l.bf16 %v2287
    %v2519 = vunpack.c.h.bf16 %v2287
    %v2520 = vunpack.c.l.bf16 %v2288
    %v2521 = vunpack.c.h.bf16 %v2288
    %v2522 = vunpack.c.l.bf16 %v2289
    %v2523 = vunpack.c.h.bf16 %v2289
    %v2524 = vunpack.c.l.bf16 %v2290
    %v2525 = vunpack.c.h.bf16 %v2290
    %v2526 = vunpack.c.l.bf16 %v2291
    %v2527 = vunpack.c.h.bf16 %v2291
    %v2528 = vunpack.c.l.bf16 %v2292
    %v2529 = vunpack.c.h.bf16 %v2292
    %v2530 = vunpack.c.l.bf16 %v2293
    %v2531 = vunpack.c.h.bf16 %v2293
    %v2532 = vunpack.c.l.bf16 %v2294
    %v2533 = vunpack.c.h.bf16 %v2294
    %v2534 = vunpack.c.l.bf16 %v2295
    %v2535 = vunpack.c.h.bf16 %v2295
    %v2536 = vunpack.c.l.bf16 %v2296
    %v2537 = vunpack.c.h.bf16 %v2296
    %v2538 = vunpack.c.l.bf16 %v2297
    %v2539 = vunpack.c.h.bf16 %v2297
    %v2540 = vunpack.c.l.bf16 %v2298
    %v2541 = vunpack.c.h.bf16 %v2298
    %v2542 = vunpack.c.l.bf16 %v2299
    %v2543 = vunpack.c.h.bf16 %v2299
    %v2544 = vunpack.c.l.bf16 %v2300
    %v2545 = vunpack.c.h.bf16 %v2300
    %v2546 = vunpack.c.l.bf16 %v2301
    %v2547 = vunpack.c.h.bf16 %v2301
    %v2548 = vunpack.c.l.bf16 %v2302
    %v2549 = vunpack.c.h.bf16 %v2302
    %v2550 = vunpack.c.l.bf16 %v2303
    %v2551 = vunpack.c.h.bf16 %v2303
    %v2552 = vunpack.c.l.bf16 %v2304
    %v2553 = vunpack.c.h.bf16 %v2304
    %v2554 = vunpack.c.l.bf16 %v2305
    %v2555 = vunpack.c.h.bf16 %v2305
    %v2556 = vunpack.c.l.bf16 %v2306
    %v2557 = vunpack.c.h.bf16 %v2306
    %v2558 = vunpack.c.l.bf16 %v2307
    %v2559 = vunpack.c.h.bf16 %v2307
    %v2560 = vunpack.c.l.bf16 %v2308
    %v2561 = vunpack.c.h.bf16 %v2308
    %v2562 = vunpack.c.l.bf16 %v2309
    %v2563 = vunpack.c.h.bf16 %v2309
    %v2564 = vunpack.c.l.bf16 %v2310
    %v2565 = vunpack.c.h.bf16 %v2310
    %v2566 = vunpack.c.l.bf16 %v2311
    %v2567 = vunpack.c.h.bf16 %v2311
    %v2568 = vld [vmem:[#allocation11] sm:$0xff]
    %v2569 = vld [vmem:[#allocation11 + $0x8] sm:$0xff]
    %v2572 = vlaneseq
    %v2573 = vshrl.u32 %v2572, 7
    %v2574 = vsub.s32 0, %v2573
    %v2575 = vrot.slane %v2568, %v2574
    %v2576 = vlaneseq
    %v2577 = vshrl.u32 %v2576, 7
    %v2578 = vsub.s32 1, %v2577
    %v2579 = vrot.slane %v2568, %v2578
    %v2580 = vlaneseq
    %v2581 = vshrl.u32 %v2580, 7
    %v2582 = vsub.s32 2, %v2581
    %v2583 = vrot.slane %v2568, %v2582
    %v2584 = vlaneseq
    %v2585 = vshrl.u32 %v2584, 7
    %v2586 = vsub.s32 3, %v2585
    %v2587 = vrot.slane %v2568, %v2586
    %v2588 = vlaneseq
    %v2589 = vshrl.u32 %v2588, 7
    %v2590 = vsub.s32 4, %v2589
    %v2591 = vrot.slane %v2568, %v2590
    %v2592 = vlaneseq
    %v2593 = vshrl.u32 %v2592, 7
    %v2594 = vsub.s32 5, %v2593
    %v2595 = vrot.slane %v2568, %v2594
    %v2596 = vlaneseq
    %v2597 = vshrl.u32 %v2596, 7
    %v2598 = vsub.s32 6, %v2597
    %v2599 = vrot.slane %v2568, %v2598
    %v2600 = vlaneseq
    %v2601 = vshrl.u32 %v2600, 7
    %v2602 = vsub.s32 7, %v2601
    %v2603 = vrot.slane %v2568, %v2602
    %v2604 = vlaneseq
    %v2605 = vshrl.u32 %v2604, 7
    %v2606 = vsub.s32 0, %v2605
    %v2607 = vrot.slane %v2569, %v2606
    %v2608 = vlaneseq
    %v2609 = vshrl.u32 %v2608, 7
    %v2610 = vsub.s32 1, %v2609
    %v2611 = vrot.slane %v2569, %v2610
    %v2612 = vlaneseq
    %v2613 = vshrl.u32 %v2612, 7
    %v2614 = vsub.s32 2, %v2613
    %v2615 = vrot.slane %v2569, %v2614
    %v2616 = vlaneseq
    %v2617 = vshrl.u32 %v2616, 7
    %v2618 = vsub.s32 3, %v2617
    %v2619 = vrot.slane %v2569, %v2618
    %v2620 = vlaneseq
    %v2621 = vshrl.u32 %v2620, 7
    %v2622 = vsub.s32 4, %v2621
    %v2623 = vrot.slane %v2569, %v2622
    %v2624 = vlaneseq
    %v2625 = vshrl.u32 %v2624, 7
    %v2626 = vsub.s32 5, %v2625
    %v2627 = vrot.slane %v2569, %v2626
    %v2628 = vlaneseq
    %v2629 = vshrl.u32 %v2628, 7
    %v2630 = vsub.s32 6, %v2629
    %v2631 = vrot.slane %v2569, %v2630
    %v2632 = vlaneseq
    %v2633 = vshrl.u32 %v2632, 7
    %v2634 = vsub.s32 7, %v2633
    %v2635 = vrot.slane %v2569, %v2634
    %2652 = vmatprep.subr.mxu0 %v2553
    %2653 = vmatpush1.msra.mxu0 %v2552
    %2654 = vmatprep.subr.mxu0 %v2537
    %2655 = vmatpush1.msra.mxu0 %v2536
    %2656 = vmatprep.subr.mxu0 %v2521
    %2657 = vmatpush1.msra.mxu0 %v2520
    %2658 = vmatprep.subr.mxu0 %v2505
    %2659 = vmatpush1.msra.mxu0 %v2504
    %2660 = vmatprep.subr.mxu0 %v2489
    %2661 = vmatpush1.msra.mxu0 %v2488
    %2662 = vmatprep.subr.mxu0 %v2473
    %2663 = vmatpush1.msra.mxu0 %v2472
    %2664 = vmatprep.subr.mxu0 %v2457
    %2665 = vmatpush1.msra.mxu0 %v2456
    %2666 = vmatprep.subr.mxu0 %v2441
    %2667 = vmatpush1.msra.mxu0 %v2440
    %2668 = vmatprep.subr.mxu0 %v2425
    %2669 = vmatpush1.msra.mxu0 %v2424
    %2670 = vmatprep.subr.mxu0 %v2409
    %2671 = vmatpush1.msra.mxu0 %v2408
    %2672 = vmatprep.subr.mxu0 %v2393
    %2673 = vmatpush1.msra.mxu0 %v2392
    %2674 = vmatprep.subr.mxu0 %v2377
    %2675 = vmatpush1.msra.mxu0 %v2376
    %2676 = vmatprep.subr.mxu0 %v2361
    %2677 = vmatpush1.msra.mxu0 %v2360
    %2678 = vmatprep.subr.mxu0 %v2345
    %2679 = vmatpush1.msra.mxu0 %v2344
    %2680 = vmatprep.subr.mxu0 %v2329
    %2681 = vmatpush1.msra.mxu0 %v2328
    %2682 = vmatprep.subr.mxu0 %v2313
    %2683 = vmatpush1.msra.mxu0 %v2312
    %2684 = vmatprep.subr.mxu0 0.0
    %2685 = vmatpush2.msra.mxu0 0.0
    %2686 = vmatprep.subr.mxu0 0.0
    %2687 = vmatpush2.msra.mxu0 0.0
    %2688 = vmatprep.subr.mxu0 0.0
    %2689 = vmatpush2.msra.mxu0 0.0
    %2690 = vmatprep.subr.mxu0 0.0
    %2691 = vmatpush2.msra.mxu0 0.0
    %2692 = vmatprep.subr.mxu0 0.0
    %2693 = vmatpush2.msra.mxu0 0.0
    %2694 = vmatprep.subr.mxu0 0.0
    %2695 = vmatpush2.msra.mxu0 0.0
    %2696 = vmatprep.subr.mxu0 0.0
    %2697 = vmatpush2.msra.mxu0 0.0
    %2698 = vmatprep.subr.mxu0 0.0
    %2699 = vmatpush2.msra.mxu0 0.0
    %2700 = vmatprep.subr.mxu0 0.0
    %2701 = vmatpush2.msra.mxu0 0.0
    %2702 = vmatprep.subr.mxu0 0.0
    %2703 = vmatpush2.msra.mxu0 0.0
    %2704 = vmatprep.subr.mxu0 0.0
    %2705 = vmatpush2.msra.mxu0 0.0
    %2706 = vmatprep.subr.mxu0 0.0
    %2707 = vmatpush2.msra.mxu0 0.0
    %2708 = vmatprep.subr.mxu0 0.0
    %2709 = vmatpush2.msra.mxu0 0.0
    %2710 = vmatprep.subr.mxu0 0.0
    %2711 = vmatpush2.msra.mxu0 0.0
    %2712 = vmatprep.subr.mxu0 0.0
    %2713 = vmatpush2.msra.mxu0 0.0
    %2714 = vmatprep.subr.mxu0 0.0
    %2715 = vmatpush2.msra.mxu0 0.0
    %2716 = vmatprep.mubr.f32.mxu0 0.0
    %2717 = vmatmul.mubr.f32.gmra.mxu0 %v2182
    %v2718 = vpop.f32.mrf.mxu0
    %v2719 = vadd.f32 %v2575, %v2718
    %v2720 = vpop.f32.mrf.mxu0
    %v2721 = vadd.f32 %v2579, %v2720
    %2722 = vmatprep.mubr.f32.mxu0 0.0
    %2723 = vmatmul.mubr.f32.gmra.mxu0 %v2183
    %v2724 = vpop.f32.mrf.mxu0
    %v2725 = vadd.f32 %v2575, %v2724
    %v2726 = vpop.f32.mrf.mxu0
    %v2727 = vadd.f32 %v2579, %v2726
    %2728 = vdwg.mxu0
    %2729 = vmatprep.subr.mxu0 %v2555
    %2730 = vmatpush1.msra.mxu0 %v2554
    %2731 = vmatprep.subr.mxu0 %v2539
    %2732 = vmatpush1.msra.mxu0 %v2538
    %2733 = vmatprep.subr.mxu0 %v2523
    %2734 = vmatpush1.msra.mxu0 %v2522
    %2735 = vmatprep.subr.mxu0 %v2507
    %2736 = vmatpush1.msra.mxu0 %v2506
    %2737 = vmatprep.subr.mxu0 %v2491
    %2738 = vmatpush1.msra.mxu0 %v2490
    %2739 = vmatprep.subr.mxu0 %v2475
    %2740 = vmatpush1.msra.mxu0 %v2474
    %2741 = vmatprep.subr.mxu0 %v2459
    %2742 = vmatpush1.msra.mxu0 %v2458
    %2743 = vmatprep.subr.mxu0 %v2443
    %2744 = vmatpush1.msra.mxu0 %v2442
    %2745 = vmatprep.subr.mxu0 %v2427
    %2746 = vmatpush1.msra.mxu0 %v2426
    %2747 = vmatprep.subr.mxu0 %v2411
    %2748 = vmatpush1.msra.mxu0 %v2410
    %2749 = vmatprep.subr.mxu0 %v2395
    %2750 = vmatpush1.msra.mxu0 %v2394
    %2751 = vmatprep.subr.mxu0 %v2379
    %2752 = vmatpush1.msra.mxu0 %v2378
    %2753 = vmatprep.subr.mxu0 %v2363
    %2754 = vmatpush1.msra.mxu0 %v2362
    %2755 = vmatprep.subr.mxu0 %v2347
    %2756 = vmatpush1.msra.mxu0 %v2346
    %2757 = vmatprep.subr.mxu0 %v2331
    %2758 = vmatpush1.msra.mxu0 %v2330
    %2759 = vmatprep.subr.mxu0 %v2315
    %2760 = vmatpush1.msra.mxu0 %v2314
    %2761 = vmatprep.subr.mxu0 0.0
    %2762 = vmatpush2.msra.mxu0 0.0
    %2763 = vmatprep.subr.mxu0 0.0
    %2764 = vmatpush2.msra.mxu0 0.0
    %2765 = vmatprep.subr.mxu0 0.0
    %2766 = vmatpush2.msra.mxu0 0.0
    %2767 = vmatprep.subr.mxu0 0.0
    %2768 = vmatpush2.msra.mxu0 0.0
    %2769 = vmatprep.subr.mxu0 0.0
    %2770 = vmatpush2.msra.mxu0 0.0
    %2771 = vmatprep.subr.mxu0 0.0
    %2772 = vmatpush2.msra.mxu0 0.0
    %2773 = vmatprep.subr.mxu0 0.0
    %2774 = vmatpush2.msra.mxu0 0.0
    %2775 = vmatprep.subr.mxu0 0.0
    %2776 = vmatpush2.msra.mxu0 0.0
    %2777 = vmatprep.subr.mxu0 0.0
    %2778 = vmatpush2.msra.mxu0 0.0
    %2779 = vmatprep.subr.mxu0 0.0
    %2780 = vmatpush2.msra.mxu0 0.0
    %2781 = vmatprep.subr.mxu0 0.0
    %2782 = vmatpush2.msra.mxu0 0.0
    %2783 = vmatprep.subr.mxu0 0.0
    %2784 = vmatpush2.msra.mxu0 0.0
    %2785 = vmatprep.subr.mxu0 0.0
    %2786 = vmatpush2.msra.mxu0 0.0
    %2787 = vmatprep.subr.mxu0 0.0
    %2788 = vmatpush2.msra.mxu0 0.0
    %2789 = vmatprep.subr.mxu0 0.0
    %2790 = vmatpush2.msra.mxu0 0.0
    %2791 = vmatprep.subr.mxu0 0.0
    %2792 = vmatpush2.msra.mxu0 0.0
    %2793 = vmatprep.mubr.f32.mxu0 0.0
    %2794 = vmatmul.mubr.f32.gmra.mxu0 %v2182
    %v2795 = vpop.f32.mrf.mxu0
    %v2796 = vadd.f32 %v2583, %v2795
    %v2797 = vpop.f32.mrf.mxu0
    %v2798 = vadd.f32 %v2587, %v2797
    %2799 = vmatprep.mubr.f32.mxu0 0.0
    %2800 = vmatmul.mubr.f32.gmra.mxu0 %v2183
    %v2801 = vpop.f32.mrf.mxu0
    %v2802 = vadd.f32 %v2583, %v2801
    %v2803 = vpop.f32.mrf.mxu0
    %v2804 = vadd.f32 %v2587, %v2803
    %2805 = vdwg.mxu0
    %2806 = vmatprep.subr.mxu0 %v2557
    %2807 = vmatpush1.msra.mxu0 %v2556
    %2808 = vmatprep.subr.mxu0 %v2541
    %2809 = vmatpush1.msra.mxu0 %v2540
    %2810 = vmatprep.subr.mxu0 %v2525
    %2811 = vmatpush1.msra.mxu0 %v2524
    %2812 = vmatprep.subr.mxu0 %v2509
    %2813 = vmatpush1.msra.mxu0 %v2508
    %2814 = vmatprep.subr.mxu0 %v2493
    %2815 = vmatpush1.msra.mxu0 %v2492
    %2816 = vmatprep.subr.mxu0 %v2477
    %2817 = vmatpush1.msra.mxu0 %v2476
    %2818 = vmatprep.subr.mxu0 %v2461
    %2819 = vmatpush1.msra.mxu0 %v2460
    %2820 = vmatprep.subr.mxu0 %v2445
    %2821 = vmatpush1.msra.mxu0 %v2444
    %2822 = vmatprep.subr.mxu0 %v2429
    %2823 = vmatpush1.msra.mxu0 %v2428
    %2824 = vmatprep.subr.mxu0 %v2413
    %2825 = vmatpush1.msra.mxu0 %v2412
    %2826 = vmatprep.subr.mxu0 %v2397
    %2827 = vmatpush1.msra.mxu0 %v2396
    %2828 = vmatprep.subr.mxu0 %v2381
    %2829 = vmatpush1.msra.mxu0 %v2380
    %2830 = vmatprep.subr.mxu0 %v2365
    %2831 = vmatpush1.msra.mxu0 %v2364
    %2832 = vmatprep.subr.mxu0 %v2349
    %2833 = vmatpush1.msra.mxu0 %v2348
    %2834 = vmatprep.subr.mxu0 %v2333
    %2835 = vmatpush1.msra.mxu0 %v2332
    %2836 = vmatprep.subr.mxu0 %v2317
    %2837 = vmatpush1.msra.mxu0 %v2316
    %2838 = vmatprep.subr.mxu0 0.0
    %2839 = vmatpush2.msra.mxu0 0.0
    %2840 = vmatprep.subr.mxu0 0.0
    %2841 = vmatpush2.msra.mxu0 0.0
    %2842 = vmatprep.subr.mxu0 0.0
    %2843 = vmatpush2.msra.mxu0 0.0
    %2844 = vmatprep.subr.mxu0 0.0
    %2845 = vmatpush2.msra.mxu0 0.0
    %2846 = vmatprep.subr.mxu0 0.0
    %2847 = vmatpush2.msra.mxu0 0.0
    %2848 = vmatprep.subr.mxu0 0.0
    %2849 = vmatpush2.msra.mxu0 0.0
    %2850 = vmatprep.subr.mxu0 0.0
    %2851 = vmatpush2.msra.mxu0 0.0
    %2852 = vmatprep.subr.mxu0 0.0
    %2853 = vmatpush2.msra.mxu0 0.0
    %2854 = vmatprep.subr.mxu0 0.0
    %2855 = vmatpush2.msra.mxu0 0.0
    %2856 = vmatprep.subr.mxu0 0.0
    %2857 = vmatpush2.msra.mxu0 0.0
    %2858 = vmatprep.subr.mxu0 0.0
    %2859 = vmatpush2.msra.mxu0 0.0
    %2860 = vmatprep.subr.mxu0 0.0
    %2861 = vmatpush2.msra.mxu0 0.0
    %2862 = vmatprep.subr.mxu0 0.0
    %2863 = vmatpush2.msra.mxu0 0.0
    %2864 = vmatprep.subr.mxu0 0.0
    %2865 = vmatpush2.msra.mxu0 0.0
    %2866 = vmatprep.subr.mxu0 0.0
    %2867 = vmatpush2.msra.mxu0 0.0
    %2868 = vmatprep.subr.mxu0 0.0
    %2869 = vmatpush2.msra.mxu0 0.0
    %2870 = vmatprep.mubr.f32.mxu0 0.0
    %2871 = vmatmul.mubr.f32.gmra.mxu0 %v2182
    %v2872 = vpop.f32.mrf.mxu0
    %v2873 = vadd.f32 %v2591, %v2872
    %v2874 = vpop.f32.mrf.mxu0
    %v2875 = vadd.f32 %v2595, %v2874
    %2876 = vmatprep.mubr.f32.mxu0 0.0
    %2877 = vmatmul.mubr.f32.gmra.mxu0 %v2183
    %v2878 = vpop.f32.mrf.mxu0
    %v2879 = vadd.f32 %v2591, %v2878
    %v2880 = vpop.f32.mrf.mxu0
    %v2881 = vadd.f32 %v2595, %v2880
    %2882 = vdwg.mxu0
    %2883 = vmatprep.subr.mxu0 %v2559
    %2884 = vmatpush1.msra.mxu0 %v2558
    %2885 = vmatprep.subr.mxu0 %v2543
    %2886 = vmatpush1.msra.mxu0 %v2542
    %2887 = vmatprep.subr.mxu0 %v2527
    %2888 = vmatpush1.msra.mxu0 %v2526
    %2889 = vmatprep.subr.mxu0 %v2511
    %2890 = vmatpush1.msra.mxu0 %v2510
    %2891 = vmatprep.subr.mxu0 %v2495
    %2892 = vmatpush1.msra.mxu0 %v2494
    %2893 = vmatprep.subr.mxu0 %v2479
    %2894 = vmatpush1.msra.mxu0 %v2478
    %2895 = vmatprep.subr.mxu0 %v2463
    %2896 = vmatpush1.msra.mxu0 %v2462
    %2897 = vmatprep.subr.mxu0 %v2447
    %2898 = vmatpush1.msra.mxu0 %v2446
    %2899 = vmatprep.subr.mxu0 %v2431
    %2900 = vmatpush1.msra.mxu0 %v2430
    %2901 = vmatprep.subr.mxu0 %v2415
    %2902 = vmatpush1.msra.mxu0 %v2414
    %2903 = vmatprep.subr.mxu0 %v2399
    %2904 = vmatpush1.msra.mxu0 %v2398
    %2905 = vmatprep.subr.mxu0 %v2383
    %2906 = vmatpush1.msra.mxu0 %v2382
    %2907 = vmatprep.subr.mxu0 %v2367
    %2908 = vmatpush1.msra.mxu0 %v2366
    %2909 = vmatprep.subr.mxu0 %v2351
    %2910 = vmatpush1.msra.mxu0 %v2350
    %2911 = vmatprep.subr.mxu0 %v2335
    %2912 = vmatpush1.msra.mxu0 %v2334
    %2913 = vmatprep.subr.mxu0 %v2319
    %2914 = vmatpush1.msra.mxu0 %v2318
    %2915 = vmatprep.subr.mxu0 0.0
    %2916 = vmatpush2.msra.mxu0 0.0
    %2917 = vmatprep.subr.mxu0 0.0
    %2918 = vmatpush2.msra.mxu0 0.0
    %2919 = vmatprep.subr.mxu0 0.0
    %2920 = vmatpush2.msra.mxu0 0.0
    %2921 = vmatprep.subr.mxu0 0.0
    %2922 = vmatpush2.msra.mxu0 0.0
    %2923 = vmatprep.subr.mxu0 0.0
    %2924 = vmatpush2.msra.mxu0 0.0
    %2925 = vmatprep.subr.mxu0 0.0
    %2926 = vmatpush2.msra.mxu0 0.0
    %2927 = vmatprep.subr.mxu0 0.0
    %2928 = vmatpush2.msra.mxu0 0.0
    %2929 = vmatprep.subr.mxu0 0.0
    %2930 = vmatpush2.msra.mxu0 0.0
    %2931 = vmatprep.subr.mxu0 0.0
    %2932 = vmatpush2.msra.mxu0 0.0
    %2933 = vmatprep.subr.mxu0 0.0
    %2934 = vmatpush2.msra.mxu0 0.0
    %2935 = vmatprep.subr.mxu0 0.0
    %2936 = vmatpush2.msra.mxu0 0.0
    %2937 = vmatprep.subr.mxu0 0.0
    %2938 = vmatpush2.msra.mxu0 0.0
    %2939 = vmatprep.subr.mxu0 0.0
    %2940 = vmatpush2.msra.mxu0 0.0
    %2941 = vmatprep.subr.mxu0 0.0
    %2942 = vmatpush2.msra.mxu0 0.0
    %2943 = vmatprep.subr.mxu0 0.0
    %2944 = vmatpush2.msra.mxu0 0.0
    %2945 = vmatprep.subr.mxu0 0.0
    %2946 = vmatpush2.msra.mxu0 0.0
    %2947 = vmatprep.mubr.f32.mxu0 0.0
    %2948 = vmatmul.mubr.f32.gmra.mxu0 %v2182
    %v2949 = vpop.f32.mrf.mxu0
    %v2950 = vadd.f32 %v2599, %v2949
    %v2951 = vpop.f32.mrf.mxu0
    %v2952 = vadd.f32 %v2603, %v2951
    %2953 = vmatprep.mubr.f32.mxu0 0.0
    %2954 = vmatmul.mubr.f32.gmra.mxu0 %v2183
    %v2955 = vpop.f32.mrf.mxu0
    %v2956 = vadd.f32 %v2599, %v2955
    %v2957 = vpop.f32.mrf.mxu0
    %v2958 = vadd.f32 %v2603, %v2957
    %2959 = vdwg.mxu0
    %2960 = vmatprep.subr.mxu0 %v2561
    %2961 = vmatpush1.msra.mxu0 %v2560
    %2962 = vmatprep.subr.mxu0 %v2545
    %2963 = vmatpush1.msra.mxu0 %v2544
    %2964 = vmatprep.subr.mxu0 %v2529
    %2965 = vmatpush1.msra.mxu0 %v2528
    %2966 = vmatprep.subr.mxu0 %v2513
    %2967 = vmatpush1.msra.mxu0 %v2512
    %2968 = vmatprep.subr.mxu0 %v2497
    %2969 = vmatpush1.msra.mxu0 %v2496
    %2970 = vmatprep.subr.mxu0 %v2481
    %2971 = vmatpush1.msra.mxu0 %v2480
    %2972 = vmatprep.subr.mxu0 %v2465
    %2973 = vmatpush1.msra.mxu0 %v2464
    %2974 = vmatprep.subr.mxu0 %v2449
    %2975 = vmatpush1.msra.mxu0 %v2448
    %2976 = vmatprep.subr.mxu0 %v2433
    %2977 = vmatpush1.msra.mxu0 %v2432
    %2978 = vmatprep.subr.mxu0 %v2417
    %2979 = vmatpush1.msra.mxu0 %v2416
    %2980 = vmatprep.subr.mxu0 %v2401
    %2981 = vmatpush1.msra.mxu0 %v2400
    %2982 = vmatprep.subr.mxu0 %v2385
    %2983 = vmatpush1.msra.mxu0 %v2384
    %2984 = vmatprep.subr.mxu0 %v2369
    %2985 = vmatpush1.msra.mxu0 %v2368
    %2986 = vmatprep.subr.mxu0 %v2353
    %2987 = vmatpush1.msra.mxu0 %v2352
    %2988 = vmatprep.subr.mxu0 %v2337
    %2989 = vmatpush1.msra.mxu0 %v2336
    %2990 = vmatprep.subr.mxu0 %v2321
    %2991 = vmatpush1.msra.mxu0 %v2320
    %2992 = vmatprep.subr.mxu0 0.0
    %2993 = vmatpush2.msra.mxu0 0.0
    %2994 = vmatprep.subr.mxu0 0.0
    %2995 = vmatpush2.msra.mxu0 0.0
    %2996 = vmatprep.subr.mxu0 0.0
    %2997 = vmatpush2.msra.mxu0 0.0
    %2998 = vmatprep.subr.mxu0 0.0
    %2999 = vmatpush2.msra.mxu0 0.0
    %3000 = vmatprep.subr.mxu0 0.0
    %3001 = vmatpush2.msra.mxu0 0.0
    %3002 = vmatprep.subr.mxu0 0.0
    %3003 = vmatpush2.msra.mxu0 0.0
    %3004 = vmatprep.subr.mxu0 0.0
    %3005 = vmatpush2.msra.mxu0 0.0
    %3006 = vmatprep.subr.mxu0 0.0
    %3007 = vmatpush2.msra.mxu0 0.0
    %3008 = vmatprep.subr.mxu0 0.0
    %3009 = vmatpush2.msra.mxu0 0.0
    %3010 = vmatprep.subr.mxu0 0.0
    %3011 = vmatpush2.msra.mxu0 0.0
    %3012 = vmatprep.subr.mxu0 0.0
    %3013 = vmatpush2.msra.mxu0 0.0
    %3014 = vmatprep.subr.mxu0 0.0
    %3015 = vmatpush2.msra.mxu0 0.0
    %3016 = vmatprep.subr.mxu0 0.0
    %3017 = vmatpush2.msra.mxu0 0.0
    %3018 = vmatprep.subr.mxu0 0.0
    %3019 = vmatpush2.msra.mxu0 0.0
    %3020 = vmatprep.subr.mxu0 0.0
    %3021 = vmatpush2.msra.mxu0 0.0
    %3022 = vmatprep.subr.mxu0 0.0
    %3023 = vmatpush2.msra.mxu0 0.0
    %3024 = vmatprep.mubr.f32.mxu0 0.0
    %3025 = vmatmul.mubr.f32.gmra.mxu0 %v2182
    %v3026 = vpop.f32.mrf.mxu0
    %v3027 = vadd.f32 %v2607, %v3026
    %v3028 = vpop.f32.mrf.mxu0
    %v3029 = vadd.f32 %v2611, %v3028
    %3030 = vmatprep.mubr.f32.mxu0 0.0
    %3031 = vmatmul.mubr.f32.gmra.mxu0 %v2183
    %v3032 = vpop.f32.mrf.mxu0
    %v3033 = vadd.f32 %v2607, %v3032
    %v3034 = vpop.f32.mrf.mxu0
    %v3035 = vadd.f32 %v2611, %v3034
    %3036 = vdwg.mxu0
    %3037 = vmatprep.subr.mxu0 %v2563
    %3038 = vmatpush1.msra.mxu0 %v2562
    %3039 = vmatprep.subr.mxu0 %v2547
    %3040 = vmatpush1.msra.mxu0 %v2546
    %3041 = vmatprep.subr.mxu0 %v2531
    %3042 = vmatpush1.msra.mxu0 %v2530
    %3043 = vmatprep.subr.mxu0 %v2515
    %3044 = vmatpush1.msra.mxu0 %v2514
    %3045 = vmatprep.subr.mxu0 %v2499
    %3046 = vmatpush1.msra.mxu0 %v2498
    %3047 = vmatprep.subr.mxu0 %v2483
    %3048 = vmatpush1.msra.mxu0 %v2482
    %3049 = vmatprep.subr.mxu0 %v2467
    %3050 = vmatpush1.msra.mxu0 %v2466
    %3051 = vmatprep.subr.mxu0 %v2451
    %3052 = vmatpush1.msra.mxu0 %v2450
    %3053 = vmatprep.subr.mxu0 %v2435
    %3054 = vmatpush1.msra.mxu0 %v2434
    %3055 = vmatprep.subr.mxu0 %v2419
    %3056 = vmatpush1.msra.mxu0 %v2418
    %3057 = vmatprep.subr.mxu0 %v2403
    %3058 = vmatpush1.msra.mxu0 %v2402
    %3059 = vmatprep.subr.mxu0 %v2387
    %3060 = vmatpush1.msra.mxu0 %v2386
    %3061 = vmatprep.subr.mxu0 %v2371
    %3062 = vmatpush1.msra.mxu0 %v2370
    %3063 = vmatprep.subr.mxu0 %v2355
    %3064 = vmatpush1.msra.mxu0 %v2354
    %3065 = vmatprep.subr.mxu0 %v2339
    %3066 = vmatpush1.msra.mxu0 %v2338
    %3067 = vmatprep.subr.mxu0 %v2323
    %3068 = vmatpush1.msra.mxu0 %v2322
    %3069 = vmatprep.subr.mxu0 0.0
    %3070 = vmatpush2.msra.mxu0 0.0
    %3071 = vmatprep.subr.mxu0 0.0
    %3072 = vmatpush2.msra.mxu0 0.0
    %3073 = vmatprep.subr.mxu0 0.0
    %3074 = vmatpush2.msra.mxu0 0.0
    %3075 = vmatprep.subr.mxu0 0.0
    %3076 = vmatpush2.msra.mxu0 0.0
    %3077 = vmatprep.subr.mxu0 0.0
    %3078 = vmatpush2.msra.mxu0 0.0
    %3079 = vmatprep.subr.mxu0 0.0
    %3080 = vmatpush2.msra.mxu0 0.0
    %3081 = vmatprep.subr.mxu0 0.0
    %3082 = vmatpush2.msra.mxu0 0.0
    %3083 = vmatprep.subr.mxu0 0.0
    %3084 = vmatpush2.msra.mxu0 0.0
    %3085 = vmatprep.subr.mxu0 0.0
    %3086 = vmatpush2.msra.mxu0 0.0
    %3087 = vmatprep.subr.mxu0 0.0
    %3088 = vmatpush2.msra.mxu0 0.0
    %3089 = vmatprep.subr.mxu0 0.0
    %3090 = vmatpush2.msra.mxu0 0.0
    %3091 = vmatprep.subr.mxu0 0.0
    %3092 = vmatpush2.msra.mxu0 0.0
    %3093 = vmatprep.subr.mxu0 0.0
    %3094 = vmatpush2.msra.mxu0 0.0
    %3095 = vmatprep.subr.mxu0 0.0
    %3096 = vmatpush2.msra.mxu0 0.0
    %3097 = vmatprep.subr.mxu0 0.0
    %3098 = vmatpush2.msra.mxu0 0.0
    %3099 = vmatprep.subr.mxu0 0.0
    %3100 = vmatpush2.msra.mxu0 0.0
    %3101 = vmatprep.mubr.f32.mxu0 0.0
    %3102 = vmatmul.mubr.f32.gmra.mxu0 %v2182
    %v3103 = vpop.f32.mrf.mxu0
    %v3104 = vadd.f32 %v2615, %v3103
    %v3105 = vpop.f32.mrf.mxu0
    %v3106 = vadd.f32 %v2619, %v3105
    %3107 = vmatprep.mubr.f32.mxu0 0.0
    %3108 = vmatmul.mubr.f32.gmra.mxu0 %v2183
    %v3109 = vpop.f32.mrf.mxu0
    %v3110 = vadd.f32 %v2615, %v3109
    %v3111 = vpop.f32.mrf.mxu0
    %v3112 = vadd.f32 %v2619, %v3111
    %3113 = vdwg.mxu0
    %3114 = vmatprep.subr.mxu0 %v2565
    %3115 = vmatpush1.msra.mxu0 %v2564
    %3116 = vmatprep.subr.mxu0 %v2549
    %3117 = vmatpush1.msra.mxu0 %v2548
    %3118 = vmatprep.subr.mxu0 %v2533
    %3119 = vmatpush1.msra.mxu0 %v2532
    %3120 = vmatprep.subr.mxu0 %v2517
    %3121 = vmatpush1.msra.mxu0 %v2516
    %3122 = vmatprep.subr.mxu0 %v2501
    %3123 = vmatpush1.msra.mxu0 %v2500
    %3124 = vmatprep.subr.mxu0 %v2485
    %3125 = vmatpush1.msra.mxu0 %v2484
    %3126 = vmatprep.subr.mxu0 %v2469
    %3127 = vmatpush1.msra.mxu0 %v2468
    %3128 = vmatprep.subr.mxu0 %v2453
    %3129 = vmatpush1.msra.mxu0 %v2452
    %3130 = vmatprep.subr.mxu0 %v2437
    %3131 = vmatpush1.msra.mxu0 %v2436
    %3132 = vmatprep.subr.mxu0 %v2421
    %3133 = vmatpush1.msra.mxu0 %v2420
    %3134 = vmatprep.subr.mxu0 %v2405
    %3135 = vmatpush1.msra.mxu0 %v2404
    %3136 = vmatprep.subr.mxu0 %v2389
    %3137 = vmatpush1.msra.mxu0 %v2388
    %3138 = vmatprep.subr.mxu0 %v2373
    %3139 = vmatpush1.msra.mxu0 %v2372
    %3140 = vmatprep.subr.mxu0 %v2357
    %3141 = vmatpush1.msra.mxu0 %v2356
    %3142 = vmatprep.subr.mxu0 %v2341
    %3143 = vmatpush1.msra.mxu0 %v2340
    %3144 = vmatprep.subr.mxu0 %v2325
    %3145 = vmatpush1.msra.mxu0 %v2324
    %3146 = vmatprep.subr.mxu0 0.0
    %3147 = vmatpush2.msra.mxu0 0.0
    %3148 = vmatprep.subr.mxu0 0.0
    %3149 = vmatpush2.msra.mxu0 0.0
    %3150 = vmatprep.subr.mxu0 0.0
    %3151 = vmatpush2.msra.mxu0 0.0
    %3152 = vmatprep.subr.mxu0 0.0
    %3153 = vmatpush2.msra.mxu0 0.0
    %3154 = vmatprep.subr.mxu0 0.0
    %3155 = vmatpush2.msra.mxu0 0.0
    %3156 = vmatprep.subr.mxu0 0.0
    %3157 = vmatpush2.msra.mxu0 0.0
    %3158 = vmatprep.subr.mxu0 0.0
    %3159 = vmatpush2.msra.mxu0 0.0
    %3160 = vmatprep.subr.mxu0 0.0
    %3161 = vmatpush2.msra.mxu0 0.0
    %3162 = vmatprep.subr.mxu0 0.0
    %3163 = vmatpush2.msra.mxu0 0.0
    %3164 = vmatprep.subr.mxu0 0.0
    %3165 = vmatpush2.msra.mxu0 0.0
    %3166 = vmatprep.subr.mxu0 0.0
    %3167 = vmatpush2.msra.mxu0 0.0
    %3168 = vmatprep.subr.mxu0 0.0
    %3169 = vmatpush2.msra.mxu0 0.0
    %3170 = vmatprep.subr.mxu0 0.0
    %3171 = vmatpush2.msra.mxu0 0.0
    %3172 = vmatprep.subr.mxu0 0.0
    %3173 = vmatpush2.msra.mxu0 0.0
    %3174 = vmatprep.subr.mxu0 0.0
    %3175 = vmatpush2.msra.mxu0 0.0
    %3176 = vmatprep.subr.mxu0 0.0
    %3177 = vmatpush2.msra.mxu0 0.0
    %3178 = vmatprep.mubr.f32.mxu0 0.0
    %3179 = vmatmul.mubr.f32.gmra.mxu0 %v2182
    %v3180 = vpop.f32.mrf.mxu0
    %v3181 = vadd.f32 %v2623, %v3180
    %v3182 = vpop.f32.mrf.mxu0
    %v3183 = vadd.f32 %v2627, %v3182
    %3184 = vmatprep.mubr.f32.mxu0 0.0
    %3185 = vmatmul.mubr.f32.gmra.mxu0 %v2183
    %v3186 = vpop.f32.mrf.mxu0
    %v3187 = vadd.f32 %v2623, %v3186
    %v3188 = vpop.f32.mrf.mxu0
    %v3189 = vadd.f32 %v2627, %v3188
    %3190 = vdwg.mxu0
    %3191 = vmatprep.subr.mxu0 %v2567
    %3192 = vmatpush1.msra.mxu0 %v2566
    %3193 = vmatprep.subr.mxu0 %v2551
    %3194 = vmatpush1.msra.mxu0 %v2550
    %3195 = vmatprep.subr.mxu0 %v2535
    %3196 = vmatpush1.msra.mxu0 %v2534
    %3197 = vmatprep.subr.mxu0 %v2519
    %3198 = vmatpush1.msra.mxu0 %v2518
    %3199 = vmatprep.subr.mxu0 %v2503
    %3200 = vmatpush1.msra.mxu0 %v2502
    %3201 = vmatprep.subr.mxu0 %v2487
    %3202 = vmatpush1.msra.mxu0 %v2486
    %3203 = vmatprep.subr.mxu0 %v2471
    %3204 = vmatpush1.msra.mxu0 %v2470
    %3205 = vmatprep.subr.mxu0 %v2455
    %3206 = vmatpush1.msra.mxu0 %v2454
    %3207 = vmatprep.subr.mxu0 %v2439
    %3208 = vmatpush1.msra.mxu0 %v2438
    %3209 = vmatprep.subr.mxu0 %v2423
    %3210 = vmatpush1.msra.mxu0 %v2422
    %3211 = vmatprep.subr.mxu0 %v2407
    %3212 = vmatpush1.msra.mxu0 %v2406
    %3213 = vmatprep.subr.mxu0 %v2391
    %3214 = vmatpush1.msra.mxu0 %v2390
    %3215 = vmatprep.subr.mxu0 %v2375
    %3216 = vmatpush1.msra.mxu0 %v2374
    %3217 = vmatprep.subr.mxu0 %v2359
    %3218 = vmatpush1.msra.mxu0 %v2358
    %3219 = vmatprep.subr.mxu0 %v2343
    %3220 = vmatpush1.msra.mxu0 %v2342
    %3221 = vmatprep.subr.mxu0 %v2327
    %3222 = vmatpush1.msra.mxu0 %v2326
    %3223 = vmatprep.subr.mxu0 0.0
    %3224 = vmatpush2.msra.mxu0 0.0
    %3225 = vmatprep.subr.mxu0 0.0
    %3226 = vmatpush2.msra.mxu0 0.0
    %3227 = vmatprep.subr.mxu0 0.0
    %3228 = vmatpush2.msra.mxu0 0.0
    %3229 = vmatprep.subr.mxu0 0.0
    %3230 = vmatpush2.msra.mxu0 0.0
    %3231 = vmatprep.subr.mxu0 0.0
    %3232 = vmatpush2.msra.mxu0 0.0
    %3233 = vmatprep.subr.mxu0 0.0
    %3234 = vmatpush2.msra.mxu0 0.0
    %3235 = vmatprep.subr.mxu0 0.0
    %3236 = vmatpush2.msra.mxu0 0.0
    %3237 = vmatprep.subr.mxu0 0.0
    %3238 = vmatpush2.msra.mxu0 0.0
    %3239 = vmatprep.subr.mxu0 0.0
    %3240 = vmatpush2.msra.mxu0 0.0
    %3241 = vmatprep.subr.mxu0 0.0
    %3242 = vmatpush2.msra.mxu0 0.0
    %3243 = vmatprep.subr.mxu0 0.0
    %3244 = vmatpush2.msra.mxu0 0.0
    %3245 = vmatprep.subr.mxu0 0.0
    %3246 = vmatpush2.msra.mxu0 0.0
    %3247 = vmatprep.subr.mxu0 0.0
    %3248 = vmatpush2.msra.mxu0 0.0
    %3249 = vmatprep.subr.mxu0 0.0
    %3250 = vmatpush2.msra.mxu0 0.0
    %3251 = vmatprep.subr.mxu0 0.0
    %3252 = vmatpush2.msra.mxu0 0.0
    %3253 = vmatprep.subr.mxu0 0.0
    %3254 = vmatpush2.msra.mxu0 0.0
    %3255 = vmatprep.mubr.f32.mxu0 0.0
    %3256 = vmatmul.mubr.f32.gmra.mxu0 %v2182
    %v3257 = vpop.f32.mrf.mxu0
    %v3258 = vadd.f32 %v2631, %v3257
    %v3259 = vpop.f32.mrf.mxu0
    %v3260 = vadd.f32 %v2635, %v3259
    %3261 = vmatprep.mubr.f32.mxu0 0.0
    %3262 = vmatmul.mubr.f32.gmra.mxu0 %v2183
    %v3263 = vpop.f32.mrf.mxu0
    %v3264 = vadd.f32 %v2631, %v3263
    %v3265 = vpop.f32.mrf.mxu0
    %v3266 = vadd.f32 %v2635, %v3265
    %3267 = vdwg.mxu0
    %v3268 = vmax.f32 %v2719, 0.0
    %v3269 = vmax.f32 %v2721, 0.0
    %v3270 = vmax.f32 %v2796, 0.0
    %v3271 = vmax.f32 %v2798, 0.0
    %v3272 = vmax.f32 %v2873, 0.0
    %v3273 = vmax.f32 %v2875, 0.0
    %v3274 = vmax.f32 %v2950, 0.0
    %v3275 = vmax.f32 %v2952, 0.0
    %v3276 = vmax.f32 %v3027, 0.0
    %v3277 = vmax.f32 %v3029, 0.0
    %v3278 = vmax.f32 %v3104, 0.0
    %v3279 = vmax.f32 %v3106, 0.0
    %v3280 = vmax.f32 %v3181, 0.0
    %v3281 = vmax.f32 %v3183, 0.0
    %v3282 = vmax.f32 %v3258, 0.0
    %v3283 = vmax.f32 %v3260, 0.0
    %v3284 = vmax.f32 %v2725, 0.0
    %v3285 = vmax.f32 %v2727, 0.0
    %v3286 = vmax.f32 %v2802, 0.0
    %v3287 = vmax.f32 %v2804, 0.0
    %v3288 = vmax.f32 %v2879, 0.0
    %v3289 = vmax.f32 %v2881, 0.0
    %v3290 = vmax.f32 %v2956, 0.0
    %v3291 = vmax.f32 %v2958, 0.0
    %v3292 = vmax.f32 %v3033, 0.0
    %v3293 = vmax.f32 %v3035, 0.0
    %v3294 = vmax.f32 %v3110, 0.0
    %v3295 = vmax.f32 %v3112, 0.0
    %v3296 = vmax.f32 %v3187, 0.0
    %v3297 = vmax.f32 %v3189, 0.0
    %v3298 = vmax.f32 %v3264, 0.0
    %v3299 = vmax.f32 %v3266, 0.0
    %v3300 = vld [vmem:[#allocation13] sm:$0xf]
    %v3301 = vld [vmem:[#allocation13 + $0x4] sm:$0xf]
    %v3302 = vld [vmem:[#allocation13 + $0x8] sm:$0xf]
    %v3303 = vld [vmem:[#allocation13 + $0xc] sm:$0xf]
    %v3304 = vld [vmem:[#allocation13 + $0x10] sm:$0xf]
    %v3305 = vld [vmem:[#allocation13 + $0x14] sm:$0xf]
    %v3306 = vld [vmem:[#allocation13 + $0x18] sm:$0xf]
    %v3307 = vld [vmem:[#allocation13 + $0x1c] sm:$0xf]
    %v3308 = vld [vmem:[#allocation13 + $0x20] sm:$0xf]
    %v3309 = vld [vmem:[#allocation13 + $0x24] sm:$0xf]
    %v3310 = vld [vmem:[#allocation13 + $0x28] sm:$0xf]
    %v3311 = vld [vmem:[#allocation13 + $0x2c] sm:$0xf]
    %v3312 = vld [vmem:[#allocation13 + $0x30] sm:$0xf]
    %v3313 = vld [vmem:[#allocation13 + $0x34] sm:$0xf]
    %v3314 = vld [vmem:[#allocation13 + $0x38] sm:$0xf]
    %v3315 = vld [vmem:[#allocation13 + $0x3c] sm:$0xf]
    %v3316 = vld [vmem:[#allocation13 + $0x40] sm:$0xf]
    %v3317 = vld [vmem:[#allocation13 + $0x44] sm:$0xf]
    %v3318 = vld [vmem:[#allocation13 + $0x48] sm:$0xf]
    %v3319 = vld [vmem:[#allocation13 + $0x4c] sm:$0xf]
    %v3320 = vld [vmem:[#allocation13 + $0x50] sm:$0xf]
    %v3321 = vld [vmem:[#allocation13 + $0x54] sm:$0xf]
    %v3322 = vld [vmem:[#allocation13 + $0x58] sm:$0xf]
    %v3323 = vld [vmem:[#allocation13 + $0x5c] sm:$0xf]
    %v3324 = vld [vmem:[#allocation13 + $0x60] sm:$0xf]
    %v3325 = vld [vmem:[#allocation13 + $0x64] sm:$0xf]
    %v3326 = vld [vmem:[#allocation13 + $0x68] sm:$0xf]
    %v3327 = vld [vmem:[#allocation13 + $0x6c] sm:$0xf]
    %v3328 = vld [vmem:[#allocation13 + $0x70] sm:$0xf]
    %v3329 = vld [vmem:[#allocation13 + $0x74] sm:$0xf]
    %v3330 = vld [vmem:[#allocation13 + $0x78] sm:$0xf]
    %v3331 = vld [vmem:[#allocation13 + $0x7c] sm:$0xf]
    %v3332 = vld [vmem:[#allocation13 + $0x80] sm:$0xf]
    %v3333 = vld [vmem:[#allocation13 + $0x84] sm:$0xf]
    %v3334 = vld [vmem:[#allocation13 + $0x88] sm:$0xf]
    %v3335 = vld [vmem:[#allocation13 + $0x8c] sm:$0xf]
    %v3336 = vld [vmem:[#allocation13 + $0x90] sm:$0xf]
    %v3337 = vld [vmem:[#allocation13 + $0x94] sm:$0xf]
    %v3338 = vld [vmem:[#allocation13 + $0x98] sm:$0xf]
    %v3339 = vld [vmem:[#allocation13 + $0x9c] sm:$0xf]
    %v3340 = vld [vmem:[#allocation13 + $0xa0] sm:$0xf]
    %v3341 = vld [vmem:[#allocation13 + $0xa4] sm:$0xf]
    %v3342 = vld [vmem:[#allocation13 + $0xa8] sm:$0xf]
    %v3343 = vld [vmem:[#allocation13 + $0xac] sm:$0xf]
    %v3344 = vld [vmem:[#allocation13 + $0xb0] sm:$0xf]
    %v3345 = vld [vmem:[#allocation13 + $0xb4] sm:$0xf]
    %v3346 = vld [vmem:[#allocation13 + $0xb8] sm:$0xf]
    %v3347 = vld [vmem:[#allocation13 + $0xbc] sm:$0xf]
    %v3348 = vld [vmem:[#allocation13 + $0xc0] sm:$0xf]
    %v3349 = vld [vmem:[#allocation13 + $0xc4] sm:$0xf]
    %v3350 = vld [vmem:[#allocation13 + $0xc8] sm:$0xf]
    %v3351 = vld [vmem:[#allocation13 + $0xcc] sm:$0xf]
    %v3352 = vld [vmem:[#allocation13 + $0xd0] sm:$0xf]
    %v3353 = vld [vmem:[#allocation13 + $0xd4] sm:$0xf]
    %v3354 = vld [vmem:[#allocation13 + $0xd8] sm:$0xf]
    %v3355 = vld [vmem:[#allocation13 + $0xdc] sm:$0xf]
    %v3356 = vld [vmem:[#allocation13 + $0xe0] sm:$0xf]
    %v3357 = vld [vmem:[#allocation13 + $0xe4] sm:$0xf]
    %v3358 = vld [vmem:[#allocation13 + $0xe8] sm:$0xf]
    %v3359 = vld [vmem:[#allocation13 + $0xec] sm:$0xf]
    %v3360 = vld [vmem:[#allocation13 + $0xf0] sm:$0xf]
    %v3361 = vld [vmem:[#allocation13 + $0xf4] sm:$0xf]
    %v3362 = vld [vmem:[#allocation13 + $0xf8] sm:$0xf]
    %v3363 = vld [vmem:[#allocation13 + $0xfc] sm:$0xf]
    %v3364 = vld [vmem:[#allocation13 + $0x100] sm:$0xf]
    %v3365 = vld [vmem:[#allocation13 + $0x104] sm:$0xf]
    %v3366 = vld [vmem:[#allocation13 + $0x108] sm:$0xf]
    %v3367 = vld [vmem:[#allocation13 + $0x10c] sm:$0xf]
    %v3368 = vld [vmem:[#allocation13 + $0x110] sm:$0xf]
    %v3369 = vld [vmem:[#allocation13 + $0x114] sm:$0xf]
    %v3370 = vld [vmem:[#allocation13 + $0x118] sm:$0xf]
    %v3371 = vld [vmem:[#allocation13 + $0x11c] sm:$0xf]
    %v3372 = vld [vmem:[#allocation13 + $0x120] sm:$0xf]
    %v3373 = vld [vmem:[#allocation13 + $0x124] sm:$0xf]
    %v3374 = vld [vmem:[#allocation13 + $0x128] sm:$0xf]
    %v3375 = vld [vmem:[#allocation13 + $0x12c] sm:$0xf]
    %v3376 = vld [vmem:[#allocation13 + $0x130] sm:$0xf]
    %v3377 = vld [vmem:[#allocation13 + $0x134] sm:$0xf]
    %v3378 = vld [vmem:[#allocation13 + $0x138] sm:$0xf]
    %v3379 = vld [vmem:[#allocation13 + $0x13c] sm:$0xf]
    %v3380 = vld [vmem:[#allocation13 + $0x140] sm:$0xf]
    %v3381 = vld [vmem:[#allocation13 + $0x144] sm:$0xf]
    %v3382 = vld [vmem:[#allocation13 + $0x148] sm:$0xf]
    %v3383 = vld [vmem:[#allocation13 + $0x14c] sm:$0xf]
    %v3384 = vld [vmem:[#allocation13 + $0x150] sm:$0xf]
    %v3385 = vld [vmem:[#allocation13 + $0x154] sm:$0xf]
    %v3386 = vld [vmem:[#allocation13 + $0x158] sm:$0xf]
    %v3387 = vld [vmem:[#allocation13 + $0x15c] sm:$0xf]
    %v3388 = vld [vmem:[#allocation13 + $0x160] sm:$0xf]
    %v3389 = vld [vmem:[#allocation13 + $0x164] sm:$0xf]
    %v3390 = vld [vmem:[#allocation13 + $0x168] sm:$0xf]
    %v3391 = vld [vmem:[#allocation13 + $0x16c] sm:$0xf]
    %v3392 = vld [vmem:[#allocation13 + $0x170] sm:$0xf]
    %v3393 = vld [vmem:[#allocation13 + $0x174] sm:$0xf]
    %v3394 = vld [vmem:[#allocation13 + $0x178] sm:$0xf]
    %v3395 = vld [vmem:[#allocation13 + $0x17c] sm:$0xf]
    %v3396 = vld [vmem:[#allocation13 + $0x180] sm:$0xf]
    %v3397 = vld [vmem:[#allocation13 + $0x184] sm:$0xf]
    %v3398 = vld [vmem:[#allocation13 + $0x188] sm:$0xf]
    %v3399 = vld [vmem:[#allocation13 + $0x18c] sm:$0xf]
    %v3400 = vld [vmem:[#allocation13 + $0x190] sm:$0xf]
    %v3401 = vld [vmem:[#allocation13 + $0x194] sm:$0xf]
    %v3402 = vld [vmem:[#allocation13 + $0x198] sm:$0xf]
    %v3403 = vld [vmem:[#allocation13 + $0x19c] sm:$0xf]
    %v3404 = vld [vmem:[#allocation13 + $0x1a0] sm:$0xf]
    %v3405 = vld [vmem:[#allocation13 + $0x1a4] sm:$0xf]
    %v3406 = vld [vmem:[#allocation13 + $0x1a8] sm:$0xf]
    %v3407 = vld [vmem:[#allocation13 + $0x1ac] sm:$0xf]
    %v3408 = vld [vmem:[#allocation13 + $0x1b0] sm:$0xf]
    %v3409 = vld [vmem:[#allocation13 + $0x1b4] sm:$0xf]
    %v3410 = vld [vmem:[#allocation13 + $0x1b8] sm:$0xf]
    %v3411 = vld [vmem:[#allocation13 + $0x1bc] sm:$0xf]
    %v3412 = vld [vmem:[#allocation13 + $0x1c0] sm:$0xf]
    %v3413 = vld [vmem:[#allocation13 + $0x1c4] sm:$0xf]
    %v3414 = vld [vmem:[#allocation13 + $0x1c8] sm:$0xf]
    %v3415 = vld [vmem:[#allocation13 + $0x1cc] sm:$0xf]
    %v3416 = vld [vmem:[#allocation13 + $0x1d0] sm:$0xf]
    %v3417 = vld [vmem:[#allocation13 + $0x1d4] sm:$0xf]
    %v3418 = vld [vmem:[#allocation13 + $0x1d8] sm:$0xf]
    %v3419 = vld [vmem:[#allocation13 + $0x1dc] sm:$0xf]
    %v3420 = vld [vmem:[#allocation13 + $0x1e0] sm:$0xf]
    %v3421 = vld [vmem:[#allocation13 + $0x1e4] sm:$0xf]
    %v3422 = vld [vmem:[#allocation13 + $0x1e8] sm:$0xf]
    %v3423 = vld [vmem:[#allocation13 + $0x1ec] sm:$0xf]
    %v3424 = vld [vmem:[#allocation13 + $0x1f0] sm:$0xf]
    %v3425 = vld [vmem:[#allocation13 + $0x1f4] sm:$0xf]
    %v3426 = vld [vmem:[#allocation13 + $0x1f8] sm:$0xf]
    %v3427 = vld [vmem:[#allocation13 + $0x1fc] sm:$0xf]
    %v3428 = vld [vmem:[#allocation13 + $0x200] sm:$0xf]
    %v3429 = vld [vmem:[#allocation13 + $0x204] sm:$0xf]
    %v3430 = vld [vmem:[#allocation13 + $0x208] sm:$0xf]
    %v3431 = vld [vmem:[#allocation13 + $0x20c] sm:$0xf]
    %v3432 = vld [vmem:[#allocation13 + $0x210] sm:$0xf]
    %v3433 = vld [vmem:[#allocation13 + $0x214] sm:$0xf]
    %v3434 = vld [vmem:[#allocation13 + $0x218] sm:$0xf]
    %v3435 = vld [vmem:[#allocation13 + $0x21c] sm:$0xf]
    %v3436 = vld [vmem:[#allocation13 + $0x220] sm:$0xf]
    %v3437 = vld [vmem:[#allocation13 + $0x224] sm:$0xf]
    %v3438 = vld [vmem:[#allocation13 + $0x228] sm:$0xf]
    %v3439 = vld [vmem:[#allocation13 + $0x22c] sm:$0xf]
    %v3440 = vld [vmem:[#allocation13 + $0x230] sm:$0xf]
    %v3441 = vld [vmem:[#allocation13 + $0x234] sm:$0xf]
    %v3442 = vld [vmem:[#allocation13 + $0x238] sm:$0xf]
    %v3443 = vld [vmem:[#allocation13 + $0x23c] sm:$0xf]
    %v3444 = vld [vmem:[#allocation13 + $0x240] sm:$0xf]
    %v3445 = vld [vmem:[#allocation13 + $0x244] sm:$0xf]
    %v3446 = vld [vmem:[#allocation13 + $0x248] sm:$0xf]
    %v3447 = vld [vmem:[#allocation13 + $0x24c] sm:$0xf]
    %v3448 = vld [vmem:[#allocation13 + $0x250] sm:$0xf]
    %v3449 = vld [vmem:[#allocation13 + $0x254] sm:$0xf]
    %v3450 = vld [vmem:[#allocation13 + $0x258] sm:$0xf]
    %v3451 = vld [vmem:[#allocation13 + $0x25c] sm:$0xf]
    %v3452 = vld [vmem:[#allocation13 + $0x260] sm:$0xf]
    %v3453 = vld [vmem:[#allocation13 + $0x264] sm:$0xf]
    %v3454 = vld [vmem:[#allocation13 + $0x268] sm:$0xf]
    %v3455 = vld [vmem:[#allocation13 + $0x26c] sm:$0xf]
    %v3456 = vld [vmem:[#allocation13 + $0x270] sm:$0xf]
    %v3457 = vld [vmem:[#allocation13 + $0x274] sm:$0xf]
    %v3458 = vld [vmem:[#allocation13 + $0x278] sm:$0xf]
    %v3459 = vld [vmem:[#allocation13 + $0x27c] sm:$0xf]
    %v3460 = vld [vmem:[#allocation13 + $0x280] sm:$0xf]
    %v3461 = vld [vmem:[#allocation13 + $0x284] sm:$0xf]
    %v3462 = vld [vmem:[#allocation13 + $0x288] sm:$0xf]
    %v3463 = vld [vmem:[#allocation13 + $0x28c] sm:$0xf]
    %v3464 = vld [vmem:[#allocation13 + $0x290] sm:$0xf]
    %v3465 = vld [vmem:[#allocation13 + $0x294] sm:$0xf]
    %v3466 = vld [vmem:[#allocation13 + $0x298] sm:$0xf]
    %v3467 = vld [vmem:[#allocation13 + $0x29c] sm:$0xf]
    %v3468 = vld [vmem:[#allocation13 + $0x2a0] sm:$0xf]
    %v3469 = vld [vmem:[#allocation13 + $0x2a4] sm:$0xf]
    %v3470 = vld [vmem:[#allocation13 + $0x2a8] sm:$0xf]
    %v3471 = vld [vmem:[#allocation13 + $0x2ac] sm:$0xf]
    %v3472 = vld [vmem:[#allocation13 + $0x2b0] sm:$0xf]
    %v3473 = vld [vmem:[#allocation13 + $0x2b4] sm:$0xf]
    %v3474 = vld [vmem:[#allocation13 + $0x2b8] sm:$0xf]
    %v3475 = vld [vmem:[#allocation13 + $0x2bc] sm:$0xf]
    %v3476 = vld [vmem:[#allocation13 + $0x2c0] sm:$0xf]
    %v3477 = vld [vmem:[#allocation13 + $0x2c4] sm:$0xf]
    %v3478 = vld [vmem:[#allocation13 + $0x2c8] sm:$0xf]
    %v3479 = vld [vmem:[#allocation13 + $0x2cc] sm:$0xf]
    %v3480 = vld [vmem:[#allocation13 + $0x2d0] sm:$0xf]
    %v3481 = vld [vmem:[#allocation13 + $0x2d4] sm:$0xf]
    %v3482 = vld [vmem:[#allocation13 + $0x2d8] sm:$0xf]
    %v3483 = vld [vmem:[#allocation13 + $0x2dc] sm:$0xf]
    %v3484 = vld [vmem:[#allocation13 + $0x2e0] sm:$0xf]
    %v3485 = vld [vmem:[#allocation13 + $0x2e4] sm:$0xf]
    %v3486 = vld [vmem:[#allocation13 + $0x2e8] sm:$0xf]
    %v3487 = vld [vmem:[#allocation13 + $0x2ec] sm:$0xf]
    %v3488 = vld [vmem:[#allocation13 + $0x2f0] sm:$0xf]
    %v3489 = vld [vmem:[#allocation13 + $0x2f4] sm:$0xf]
    %v3490 = vld [vmem:[#allocation13 + $0x2f8] sm:$0xf]
    %v3491 = vld [vmem:[#allocation13 + $0x2fc] sm:$0xf]
    %v3492 = vld [vmem:[#allocation13 + $0x300] sm:$0xf]
    %v3493 = vld [vmem:[#allocation13 + $0x304] sm:$0xf]
    %v3494 = vld [vmem:[#allocation13 + $0x308] sm:$0xf]
    %v3495 = vld [vmem:[#allocation13 + $0x30c] sm:$0xf]
    %v3496 = vld [vmem:[#allocation13 + $0x310] sm:$0xf]
    %v3497 = vld [vmem:[#allocation13 + $0x314] sm:$0xf]
    %v3498 = vld [vmem:[#allocation13 + $0x318] sm:$0xf]
    %v3499 = vld [vmem:[#allocation13 + $0x31c] sm:$0xf]
    %v3500 = vld [vmem:[#allocation13 + $0x320] sm:$0xf]
    %v3501 = vld [vmem:[#allocation13 + $0x324] sm:$0xf]
    %v3502 = vld [vmem:[#allocation13 + $0x328] sm:$0xf]
    %v3503 = vld [vmem:[#allocation13 + $0x32c] sm:$0xf]
    %v3504 = vld [vmem:[#allocation13 + $0x330] sm:$0xf]
    %v3505 = vld [vmem:[#allocation13 + $0x334] sm:$0xf]
    %v3506 = vld [vmem:[#allocation13 + $0x338] sm:$0xf]
    %v3507 = vld [vmem:[#allocation13 + $0x33c] sm:$0xf]
    %v3508 = vld [vmem:[#allocation13 + $0x340] sm:$0xf]
    %v3509 = vld [vmem:[#allocation13 + $0x344] sm:$0xf]
    %v3510 = vld [vmem:[#allocation13 + $0x348] sm:$0xf]
    %v3511 = vld [vmem:[#allocation13 + $0x34c] sm:$0xf]
    %v3512 = vld [vmem:[#allocation13 + $0x350] sm:$0xf]
    %v3513 = vld [vmem:[#allocation13 + $0x354] sm:$0xf]
    %v3514 = vld [vmem:[#allocation13 + $0x358] sm:$0xf]
    %v3515 = vld [vmem:[#allocation13 + $0x35c] sm:$0xf]
    %v3516 = vld [vmem:[#allocation13 + $0x360] sm:$0xf]
    %v3517 = vld [vmem:[#allocation13 + $0x364] sm:$0xf]
    %v3518 = vld [vmem:[#allocation13 + $0x368] sm:$0xf]
    %v3519 = vld [vmem:[#allocation13 + $0x36c] sm:$0xf]
    %v3520 = vld [vmem:[#allocation13 + $0x370] sm:$0xf]
    %v3521 = vld [vmem:[#allocation13 + $0x374] sm:$0xf]
    %v3522 = vld [vmem:[#allocation13 + $0x378] sm:$0xf]
    %v3523 = vld [vmem:[#allocation13 + $0x37c] sm:$0xf]
    %v3524 = vld [vmem:[#allocation13 + $0x380] sm:$0xf]
    %v3525 = vld [vmem:[#allocation13 + $0x384] sm:$0xf]
    %v3526 = vld [vmem:[#allocation13 + $0x388] sm:$0xf]
    %v3527 = vld [vmem:[#allocation13 + $0x38c] sm:$0xf]
    %v3528 = vld [vmem:[#allocation13 + $0x390] sm:$0xf]
    %v3529 = vld [vmem:[#allocation13 + $0x394] sm:$0xf]
    %v3530 = vld [vmem:[#allocation13 + $0x398] sm:$0xf]
    %v3531 = vld [vmem:[#allocation13 + $0x39c] sm:$0xf]
    %v3532 = vld [vmem:[#allocation13 + $0x3a0] sm:$0xf]
    %v3533 = vld [vmem:[#allocation13 + $0x3a4] sm:$0xf]
    %v3534 = vld [vmem:[#allocation13 + $0x3a8] sm:$0xf]
    %v3535 = vld [vmem:[#allocation13 + $0x3ac] sm:$0xf]
    %v3536 = vld [vmem:[#allocation13 + $0x3b0] sm:$0xf]
    %v3537 = vld [vmem:[#allocation13 + $0x3b4] sm:$0xf]
    %v3538 = vld [vmem:[#allocation13 + $0x3b8] sm:$0xf]
    %v3539 = vld [vmem:[#allocation13 + $0x3bc] sm:$0xf]
    %v3540 = vld [vmem:[#allocation13 + $0x3c0] sm:$0xf]
    %v3541 = vld [vmem:[#allocation13 + $0x3c4] sm:$0xf]
    %v3542 = vld [vmem:[#allocation13 + $0x3c8] sm:$0xf]
    %v3543 = vld [vmem:[#allocation13 + $0x3cc] sm:$0xf]
    %v3544 = vld [vmem:[#allocation13 + $0x3d0] sm:$0xf]
    %v3545 = vld [vmem:[#allocation13 + $0x3d4] sm:$0xf]
    %v3546 = vld [vmem:[#allocation13 + $0x3d8] sm:$0xf]
    %v3547 = vld [vmem:[#allocation13 + $0x3dc] sm:$0xf]
    %v3548 = vld [vmem:[#allocation13 + $0x3e0] sm:$0xf]
    %v3549 = vld [vmem:[#allocation13 + $0x3e4] sm:$0xf]
    %v3550 = vld [vmem:[#allocation13 + $0x3e8] sm:$0xf]
    %v3551 = vld [vmem:[#allocation13 + $0x3ec] sm:$0xf]
    %v3552 = vld [vmem:[#allocation13 + $0x3f0] sm:$0xf]
    %v3553 = vld [vmem:[#allocation13 + $0x3f4] sm:$0xf]
    %v3554 = vld [vmem:[#allocation13 + $0x3f8] sm:$0xf]
    %v3555 = vld [vmem:[#allocation13 + $0x3fc] sm:$0xf]
    %v3556 = vunpack.c.l.bf16 %v3300
    %v3557 = vunpack.c.l.bf16 %v3301
    %v3558 = vunpack.c.l.bf16 %v3302
    %v3559 = vunpack.c.l.bf16 %v3303
    %v3560 = vunpack.c.l.bf16 %v3304
    %v3561 = vunpack.c.l.bf16 %v3305
    %v3562 = vunpack.c.l.bf16 %v3306
    %v3563 = vunpack.c.l.bf16 %v3307
    %v3564 = vunpack.c.l.bf16 %v3308
    %v3565 = vunpack.c.l.bf16 %v3309
    %v3566 = vunpack.c.l.bf16 %v3310
    %v3567 = vunpack.c.l.bf16 %v3311
    %v3568 = vunpack.c.l.bf16 %v3312
    %v3569 = vunpack.c.l.bf16 %v3313
    %v3570 = vunpack.c.l.bf16 %v3314
    %v3571 = vunpack.c.l.bf16 %v3315
    %v3572 = vunpack.c.l.bf16 %v3316
    %v3573 = vunpack.c.l.bf16 %v3317
    %v3574 = vunpack.c.l.bf16 %v3318
    %v3575 = vunpack.c.l.bf16 %v3319
    %v3576 = vunpack.c.l.bf16 %v3320
    %v3577 = vunpack.c.l.bf16 %v3321
    %v3578 = vunpack.c.l.bf16 %v3322
    %v3579 = vunpack.c.l.bf16 %v3323
    %v3580 = vunpack.c.l.bf16 %v3324
    %v3581 = vunpack.c.l.bf16 %v3325
    %v3582 = vunpack.c.l.bf16 %v3326
    %v3583 = vunpack.c.l.bf16 %v3327
    %v3584 = vunpack.c.l.bf16 %v3328
    %v3585 = vunpack.c.l.bf16 %v3329
    %v3586 = vunpack.c.l.bf16 %v3330
    %v3587 = vunpack.c.l.bf16 %v3331
    %v3588 = vunpack.c.l.bf16 %v3332
    %v3589 = vunpack.c.l.bf16 %v3333
    %v3590 = vunpack.c.l.bf16 %v3334
    %v3591 = vunpack.c.l.bf16 %v3335
    %v3592 = vunpack.c.l.bf16 %v3336
    %v3593 = vunpack.c.l.bf16 %v3337
    %v3594 = vunpack.c.l.bf16 %v3338
    %v3595 = vunpack.c.l.bf16 %v3339
    %v3596 = vunpack.c.l.bf16 %v3340
    %v3597 = vunpack.c.l.bf16 %v3341
    %v3598 = vunpack.c.l.bf16 %v3342
    %v3599 = vunpack.c.l.bf16 %v3343
    %v3600 = vunpack.c.l.bf16 %v3344
    %v3601 = vunpack.c.l.bf16 %v3345
    %v3602 = vunpack.c.l.bf16 %v3346
    %v3603 = vunpack.c.l.bf16 %v3347
    %v3604 = vunpack.c.l.bf16 %v3348
    %v3605 = vunpack.c.l.bf16 %v3349
    %v3606 = vunpack.c.l.bf16 %v3350
    %v3607 = vunpack.c.l.bf16 %v3351
    %v3608 = vunpack.c.l.bf16 %v3352
    %v3609 = vunpack.c.l.bf16 %v3353
    %v3610 = vunpack.c.l.bf16 %v3354
    %v3611 = vunpack.c.l.bf16 %v3355
    %v3612 = vunpack.c.l.bf16 %v3356
    %v3613 = vunpack.c.l.bf16 %v3357
    %v3614 = vunpack.c.l.bf16 %v3358
    %v3615 = vunpack.c.l.bf16 %v3359
    %v3616 = vunpack.c.l.bf16 %v3360
    %v3617 = vunpack.c.l.bf16 %v3361
    %v3618 = vunpack.c.l.bf16 %v3362
    %v3619 = vunpack.c.l.bf16 %v3363
    %v3620 = vunpack.c.l.bf16 %v3364
    %v3621 = vunpack.c.l.bf16 %v3365
    %v3622 = vunpack.c.l.bf16 %v3366
    %v3623 = vunpack.c.l.bf16 %v3367
    %v3624 = vunpack.c.l.bf16 %v3368
    %v3625 = vunpack.c.l.bf16 %v3369
    %v3626 = vunpack.c.l.bf16 %v3370
    %v3627 = vunpack.c.l.bf16 %v3371
    %v3628 = vunpack.c.l.bf16 %v3372
    %v3629 = vunpack.c.l.bf16 %v3373
    %v3630 = vunpack.c.l.bf16 %v3374
    %v3631 = vunpack.c.l.bf16 %v3375
    %v3632 = vunpack.c.l.bf16 %v3376
    %v3633 = vunpack.c.l.bf16 %v3377
    %v3634 = vunpack.c.l.bf16 %v3378
    %v3635 = vunpack.c.l.bf16 %v3379
    %v3636 = vunpack.c.l.bf16 %v3380
    %v3637 = vunpack.c.l.bf16 %v3381
    %v3638 = vunpack.c.l.bf16 %v3382
    %v3639 = vunpack.c.l.bf16 %v3383
    %v3640 = vunpack.c.l.bf16 %v3384
    %v3641 = vunpack.c.l.bf16 %v3385
    %v3642 = vunpack.c.l.bf16 %v3386
    %v3643 = vunpack.c.l.bf16 %v3387
    %v3644 = vunpack.c.l.bf16 %v3388
    %v3645 = vunpack.c.l.bf16 %v3389
    %v3646 = vunpack.c.l.bf16 %v3390
    %v3647 = vunpack.c.l.bf16 %v3391
    %v3648 = vunpack.c.l.bf16 %v3392
    %v3649 = vunpack.c.l.bf16 %v3393
    %v3650 = vunpack.c.l.bf16 %v3394
    %v3651 = vunpack.c.l.bf16 %v3395
    %v3652 = vunpack.c.l.bf16 %v3396
    %v3653 = vunpack.c.l.bf16 %v3397
    %v3654 = vunpack.c.l.bf16 %v3398
    %v3655 = vunpack.c.l.bf16 %v3399
    %v3656 = vunpack.c.l.bf16 %v3400
    %v3657 = vunpack.c.l.bf16 %v3401
    %v3658 = vunpack.c.l.bf16 %v3402
    %v3659 = vunpack.c.l.bf16 %v3403
    %v3660 = vunpack.c.l.bf16 %v3404
    %v3661 = vunpack.c.l.bf16 %v3405
    %v3662 = vunpack.c.l.bf16 %v3406
    %v3663 = vunpack.c.l.bf16 %v3407
    %v3664 = vunpack.c.l.bf16 %v3408
    %v3665 = vunpack.c.l.bf16 %v3409
    %v3666 = vunpack.c.l.bf16 %v3410
    %v3667 = vunpack.c.l.bf16 %v3411
    %v3668 = vunpack.c.l.bf16 %v3412
    %v3669 = vunpack.c.l.bf16 %v3413
    %v3670 = vunpack.c.l.bf16 %v3414
    %v3671 = vunpack.c.l.bf16 %v3415
    %v3672 = vunpack.c.l.bf16 %v3416
    %v3673 = vunpack.c.l.bf16 %v3417
    %v3674 = vunpack.c.l.bf16 %v3418
    %v3675 = vunpack.c.l.bf16 %v3419
    %v3676 = vunpack.c.l.bf16 %v3420
    %v3677 = vunpack.c.l.bf16 %v3421
    %v3678 = vunpack.c.l.bf16 %v3422
    %v3679 = vunpack.c.l.bf16 %v3423
    %v3680 = vunpack.c.l.bf16 %v3424
    %v3681 = vunpack.c.l.bf16 %v3425
    %v3682 = vunpack.c.l.bf16 %v3426
    %v3683 = vunpack.c.l.bf16 %v3427
    %v3684 = vunpack.c.l.bf16 %v3428
    %v3685 = vunpack.c.l.bf16 %v3429
    %v3686 = vunpack.c.l.bf16 %v3430
    %v3687 = vunpack.c.l.bf16 %v3431
    %v3688 = vunpack.c.l.bf16 %v3432
    %v3689 = vunpack.c.l.bf16 %v3433
    %v3690 = vunpack.c.l.bf16 %v3434
    %v3691 = vunpack.c.l.bf16 %v3435
    %v3692 = vunpack.c.l.bf16 %v3436
    %v3693 = vunpack.c.l.bf16 %v3437
    %v3694 = vunpack.c.l.bf16 %v3438
    %v3695 = vunpack.c.l.bf16 %v3439
    %v3696 = vunpack.c.l.bf16 %v3440
    %v3697 = vunpack.c.l.bf16 %v3441
    %v3698 = vunpack.c.l.bf16 %v3442
    %v3699 = vunpack.c.l.bf16 %v3443
    %v3700 = vunpack.c.l.bf16 %v3444
    %v3701 = vunpack.c.l.bf16 %v3445
    %v3702 = vunpack.c.l.bf16 %v3446
    %v3703 = vunpack.c.l.bf16 %v3447
    %v3704 = vunpack.c.l.bf16 %v3448
    %v3705 = vunpack.c.l.bf16 %v3449
    %v3706 = vunpack.c.l.bf16 %v3450
    %v3707 = vunpack.c.l.bf16 %v3451
    %v3708 = vunpack.c.l.bf16 %v3452
    %v3709 = vunpack.c.l.bf16 %v3453
    %v3710 = vunpack.c.l.bf16 %v3454
    %v3711 = vunpack.c.l.bf16 %v3455
    %v3712 = vunpack.c.l.bf16 %v3456
    %v3713 = vunpack.c.l.bf16 %v3457
    %v3714 = vunpack.c.l.bf16 %v3458
    %v3715 = vunpack.c.l.bf16 %v3459
    %v3716 = vunpack.c.l.bf16 %v3460
    %v3717 = vunpack.c.l.bf16 %v3461
    %v3718 = vunpack.c.l.bf16 %v3462
    %v3719 = vunpack.c.l.bf16 %v3463
    %v3720 = vunpack.c.l.bf16 %v3464
    %v3721 = vunpack.c.l.bf16 %v3465
    %v3722 = vunpack.c.l.bf16 %v3466
    %v3723 = vunpack.c.l.bf16 %v3467
    %v3724 = vunpack.c.l.bf16 %v3468
    %v3725 = vunpack.c.l.bf16 %v3469
    %v3726 = vunpack.c.l.bf16 %v3470
    %v3727 = vunpack.c.l.bf16 %v3471
    %v3728 = vunpack.c.l.bf16 %v3472
    %v3729 = vunpack.c.l.bf16 %v3473
    %v3730 = vunpack.c.l.bf16 %v3474
    %v3731 = vunpack.c.l.bf16 %v3475
    %v3732 = vunpack.c.l.bf16 %v3476
    %v3733 = vunpack.c.l.bf16 %v3477
    %v3734 = vunpack.c.l.bf16 %v3478
    %v3735 = vunpack.c.l.bf16 %v3479
    %v3736 = vunpack.c.l.bf16 %v3480
    %v3737 = vunpack.c.l.bf16 %v3481
    %v3738 = vunpack.c.l.bf16 %v3482
    %v3739 = vunpack.c.l.bf16 %v3483
    %v3740 = vunpack.c.l.bf16 %v3484
    %v3741 = vunpack.c.l.bf16 %v3485
    %v3742 = vunpack.c.l.bf16 %v3486
    %v3743 = vunpack.c.l.bf16 %v3487
    %v3744 = vunpack.c.l.bf16 %v3488
    %v3745 = vunpack.c.l.bf16 %v3489
    %v3746 = vunpack.c.l.bf16 %v3490
    %v3747 = vunpack.c.l.bf16 %v3491
    %v3748 = vunpack.c.l.bf16 %v3492
    %v3749 = vunpack.c.l.bf16 %v3493
    %v3750 = vunpack.c.l.bf16 %v3494
    %v3751 = vunpack.c.l.bf16 %v3495
    %v3752 = vunpack.c.l.bf16 %v3496
    %v3753 = vunpack.c.l.bf16 %v3497
    %v3754 = vunpack.c.l.bf16 %v3498
    %v3755 = vunpack.c.l.bf16 %v3499
    %v3756 = vunpack.c.l.bf16 %v3500
    %v3757 = vunpack.c.l.bf16 %v3501
    %v3758 = vunpack.c.l.bf16 %v3502
    %v3759 = vunpack.c.l.bf16 %v3503
    %v3760 = vunpack.c.l.bf16 %v3504
    %v3761 = vunpack.c.l.bf16 %v3505
    %v3762 = vunpack.c.l.bf16 %v3506
    %v3763 = vunpack.c.l.bf16 %v3507
    %v3764 = vunpack.c.l.bf16 %v3508
    %v3765 = vunpack.c.l.bf16 %v3509
    %v3766 = vunpack.c.l.bf16 %v3510
    %v3767 = vunpack.c.l.bf16 %v3511
    %v3768 = vunpack.c.l.bf16 %v3512
    %v3769 = vunpack.c.l.bf16 %v3513
    %v3770 = vunpack.c.l.bf16 %v3514
    %v3771 = vunpack.c.l.bf16 %v3515
    %v3772 = vunpack.c.l.bf16 %v3516
    %v3773 = vunpack.c.l.bf16 %v3517
    %v3774 = vunpack.c.l.bf16 %v3518
    %v3775 = vunpack.c.l.bf16 %v3519
    %v3776 = vunpack.c.l.bf16 %v3520
    %v3777 = vunpack.c.l.bf16 %v3521
    %v3778 = vunpack.c.l.bf16 %v3522
    %v3779 = vunpack.c.l.bf16 %v3523
    %v3780 = vunpack.c.l.bf16 %v3524
    %v3781 = vunpack.c.l.bf16 %v3525
    %v3782 = vunpack.c.l.bf16 %v3526
    %v3783 = vunpack.c.l.bf16 %v3527
    %v3784 = vunpack.c.l.bf16 %v3528
    %v3785 = vunpack.c.l.bf16 %v3529
    %v3786 = vunpack.c.l.bf16 %v3530
    %v3787 = vunpack.c.l.bf16 %v3531
    %v3788 = vunpack.c.l.bf16 %v3532
    %v3789 = vunpack.c.l.bf16 %v3533
    %v3790 = vunpack.c.l.bf16 %v3534
    %v3791 = vunpack.c.l.bf16 %v3535
    %v3792 = vunpack.c.l.bf16 %v3536
    %v3793 = vunpack.c.l.bf16 %v3537
    %v3794 = vunpack.c.l.bf16 %v3538
    %v3795 = vunpack.c.l.bf16 %v3539
    %v3796 = vunpack.c.l.bf16 %v3540
    %v3797 = vunpack.c.l.bf16 %v3541
    %v3798 = vunpack.c.l.bf16 %v3542
    %v3799 = vunpack.c.l.bf16 %v3543
    %v3800 = vunpack.c.l.bf16 %v3544
    %v3801 = vunpack.c.l.bf16 %v3545
    %v3802 = vunpack.c.l.bf16 %v3546
    %v3803 = vunpack.c.l.bf16 %v3547
    %v3804 = vunpack.c.l.bf16 %v3548
    %v3805 = vunpack.c.l.bf16 %v3549
    %v3806 = vunpack.c.l.bf16 %v3550
    %v3807 = vunpack.c.l.bf16 %v3551
    %v3808 = vunpack.c.l.bf16 %v3552
    %v3809 = vunpack.c.l.bf16 %v3553
    %v3810 = vunpack.c.l.bf16 %v3554
    %v3811 = vunpack.c.l.bf16 %v3555
    %v3812 = vlaneseq
    %v3813 = vshrl.u32 %v3812, 7
    %v3814 = vsub.s32 7, %v3813
    %v3815 = vrot.slane %v155, %v3814
    %3816 = vmatprep.subr.mxu0 0.0
    %3817 = vmatpush1.msra.mxu0 %v3571
    %3818 = vmatprep.subr.mxu0 0.0
    %3819 = vmatpush1.msra.mxu0 %v3570
    %3820 = vmatprep.subr.mxu0 0.0
    %3821 = vmatpush1.msra.mxu0 %v3569
    %3822 = vmatprep.subr.mxu0 0.0
    %3823 = vmatpush1.msra.mxu0 %v3568
    %3824 = vmatprep.subr.mxu0 0.0
    %3825 = vmatpush1.msra.mxu0 %v3567
    %3826 = vmatprep.subr.mxu0 0.0
    %3827 = vmatpush1.msra.mxu0 %v3566
    %3828 = vmatprep.subr.mxu0 0.0
    %3829 = vmatpush1.msra.mxu0 %v3565
    %3830 = vmatprep.subr.mxu0 0.0
    %3831 = vmatpush1.msra.mxu0 %v3564
    %3832 = vmatprep.subr.mxu0 0.0
    %3833 = vmatpush1.msra.mxu0 %v3563
    %3834 = vmatprep.subr.mxu0 0.0
    %3835 = vmatpush1.msra.mxu0 %v3562
    %3836 = vmatprep.subr.mxu0 0.0
    %3837 = vmatpush1.msra.mxu0 %v3561
    %3838 = vmatprep.subr.mxu0 0.0
    %3839 = vmatpush1.msra.mxu0 %v3560
    %3840 = vmatprep.subr.mxu0 0.0
    %3841 = vmatpush1.msra.mxu0 %v3559
    %3842 = vmatprep.subr.mxu0 0.0
    %3843 = vmatpush1.msra.mxu0 %v3558
    %3844 = vmatprep.subr.mxu0 0.0
    %3845 = vmatpush1.msra.mxu0 %v3557
    %3846 = vmatprep.subr.mxu0 0.0
    %3847 = vmatpush1.msra.mxu0 %v3556
    %3848 = vmatprep.subr.mxu0 0.0
    %3849 = vmatpush2.msra.mxu0 %v3587
    %3850 = vmatprep.subr.mxu0 0.0
    %3851 = vmatpush2.msra.mxu0 %v3586
    %3852 = vmatprep.subr.mxu0 0.0
    %3853 = vmatpush2.msra.mxu0 %v3585
    %3854 = vmatprep.subr.mxu0 0.0
    %3855 = vmatpush2.msra.mxu0 %v3584
    %3856 = vmatprep.subr.mxu0 0.0
    %3857 = vmatpush2.msra.mxu0 %v3583
    %3858 = vmatprep.subr.mxu0 0.0
    %3859 = vmatpush2.msra.mxu0 %v3582
    %3860 = vmatprep.subr.mxu0 0.0
    %3861 = vmatpush2.msra.mxu0 %v3581
    %3862 = vmatprep.subr.mxu0 0.0
    %3863 = vmatpush2.msra.mxu0 %v3580
    %3864 = vmatprep.subr.mxu0 0.0
    %3865 = vmatpush2.msra.mxu0 %v3579
    %3866 = vmatprep.subr.mxu0 0.0
    %3867 = vmatpush2.msra.mxu0 %v3578
    %3868 = vmatprep.subr.mxu0 0.0
    %3869 = vmatpush2.msra.mxu0 %v3577
    %3870 = vmatprep.subr.mxu0 0.0
    %3871 = vmatpush2.msra.mxu0 %v3576
    %3872 = vmatprep.subr.mxu0 0.0
    %3873 = vmatpush2.msra.mxu0 %v3575
    %3874 = vmatprep.subr.mxu0 0.0
    %3875 = vmatpush2.msra.mxu0 %v3574
    %3876 = vmatprep.subr.mxu0 0.0
    %3877 = vmatpush2.msra.mxu0 %v3573
    %3878 = vmatprep.subr.mxu0 0.0
    %3879 = vmatpush2.msra.mxu0 %v3572
    %3880 = vmatprep.mubr.f32.mxu0 %v3269
    %3881 = vmatmul.mubr.f32.gmra.mxu0 %v3268
    %v3882 = vpop.f32.mrf.mxu0
    %v3883 = vadd.f32 %v3815, %v3882
    %v3884 = vpop.f32.mrf.mxu0
    %3885 = vmatprep.mubr.f32.mxu0 %v3285
    %3886 = vmatmul.mubr.f32.gmra.mxu0 %v3284
    %v3887 = vpop.f32.mrf.mxu0
    %v3888 = vadd.f32 %v3815, %v3887
    %v3889 = vpop.f32.mrf.mxu0
    %3890 = vdwg.mxu0
    %3891 = vmatprep.subr.mxu0 0.0
    %3892 = vmatpush1.msra.mxu0 %v3603
    %3893 = vmatprep.subr.mxu0 0.0
    %3894 = vmatpush1.msra.mxu0 %v3602
    %3895 = vmatprep.subr.mxu0 0.0
    %3896 = vmatpush1.msra.mxu0 %v3601
    %3897 = vmatprep.subr.mxu0 0.0
    %3898 = vmatpush1.msra.mxu0 %v3600
    %3899 = vmatprep.subr.mxu0 0.0
    %3900 = vmatpush1.msra.mxu0 %v3599
    %3901 = vmatprep.subr.mxu0 0.0
    %3902 = vmatpush1.msra.mxu0 %v3598
    %3903 = vmatprep.subr.mxu0 0.0
    %3904 = vmatpush1.msra.mxu0 %v3597
    %3905 = vmatprep.subr.mxu0 0.0
    %3906 = vmatpush1.msra.mxu0 %v3596
    %3907 = vmatprep.subr.mxu0 0.0
    %3908 = vmatpush1.msra.mxu0 %v3595
    %3909 = vmatprep.subr.mxu0 0.0
    %3910 = vmatpush1.msra.mxu0 %v3594
    %3911 = vmatprep.subr.mxu0 0.0
    %3912 = vmatpush1.msra.mxu0 %v3593
    %3913 = vmatprep.subr.mxu0 0.0
    %3914 = vmatpush1.msra.mxu0 %v3592
    %3915 = vmatprep.subr.mxu0 0.0
    %3916 = vmatpush1.msra.mxu0 %v3591
    %3917 = vmatprep.subr.mxu0 0.0
    %3918 = vmatpush1.msra.mxu0 %v3590
    %3919 = vmatprep.subr.mxu0 0.0
    %3920 = vmatpush1.msra.mxu0 %v3589
    %3921 = vmatprep.subr.mxu0 0.0
    %3922 = vmatpush1.msra.mxu0 %v3588
    %3923 = vmatprep.subr.mxu0 0.0
    %3924 = vmatpush2.msra.mxu0 %v3619
    %3925 = vmatprep.subr.mxu0 0.0
    %3926 = vmatpush2.msra.mxu0 %v3618
    %3927 = vmatprep.subr.mxu0 0.0
    %3928 = vmatpush2.msra.mxu0 %v3617
    %3929 = vmatprep.subr.mxu0 0.0
    %3930 = vmatpush2.msra.mxu0 %v3616
    %3931 = vmatprep.subr.mxu0 0.0
    %3932 = vmatpush2.msra.mxu0 %v3615
    %3933 = vmatprep.subr.mxu0 0.0
    %3934 = vmatpush2.msra.mxu0 %v3614
    %3935 = vmatprep.subr.mxu0 0.0
    %3936 = vmatpush2.msra.mxu0 %v3613
    %3937 = vmatprep.subr.mxu0 0.0
    %3938 = vmatpush2.msra.mxu0 %v3612
    %3939 = vmatprep.subr.mxu0 0.0
    %3940 = vmatpush2.msra.mxu0 %v3611
    %3941 = vmatprep.subr.mxu0 0.0
    %3942 = vmatpush2.msra.mxu0 %v3610
    %3943 = vmatprep.subr.mxu0 0.0
    %3944 = vmatpush2.msra.mxu0 %v3609
    %3945 = vmatprep.subr.mxu0 0.0
    %3946 = vmatpush2.msra.mxu0 %v3608
    %3947 = vmatprep.subr.mxu0 0.0
    %3948 = vmatpush2.msra.mxu0 %v3607
    %3949 = vmatprep.subr.mxu0 0.0
    %3950 = vmatpush2.msra.mxu0 %v3606
    %3951 = vmatprep.subr.mxu0 0.0
    %3952 = vmatpush2.msra.mxu0 %v3605
    %3953 = vmatprep.subr.mxu0 0.0
    %3954 = vmatpush2.msra.mxu0 %v3604
    %3955 = vmatprep.mubr.f32.mxu0 %v3271
    %3956 = vmatmul.mubr.f32.gmra.mxu0 %v3270
    %v3957 = vpop.f32.mrf.mxu0
    %v3958 = vadd.f32 %v3883, %v3957
    %v3959 = vpop.f32.mrf.mxu0
    %3960 = vmatprep.mubr.f32.mxu0 %v3287
    %3961 = vmatmul.mubr.f32.gmra.mxu0 %v3286
    %v3962 = vpop.f32.mrf.mxu0
    %v3963 = vadd.f32 %v3888, %v3962
    %v3964 = vpop.f32.mrf.mxu0
    %3965 = vdwg.mxu0
    %3966 = vmatprep.subr.mxu0 0.0
    %3967 = vmatpush1.msra.mxu0 %v3635
    %3968 = vmatprep.subr.mxu0 0.0
    %3969 = vmatpush1.msra.mxu0 %v3634
    %3970 = vmatprep.subr.mxu0 0.0
    %3971 = vmatpush1.msra.mxu0 %v3633
    %3972 = vmatprep.subr.mxu0 0.0
    %3973 = vmatpush1.msra.mxu0 %v3632
    %3974 = vmatprep.subr.mxu0 0.0
    %3975 = vmatpush1.msra.mxu0 %v3631
    %3976 = vmatprep.subr.mxu0 0.0
    %3977 = vmatpush1.msra.mxu0 %v3630
    %3978 = vmatprep.subr.mxu0 0.0
    %3979 = vmatpush1.msra.mxu0 %v3629
    %3980 = vmatprep.subr.mxu0 0.0
    %3981 = vmatpush1.msra.mxu0 %v3628
    %3982 = vmatprep.subr.mxu0 0.0
    %3983 = vmatpush1.msra.mxu0 %v3627
    %3984 = vmatprep.subr.mxu0 0.0
    %3985 = vmatpush1.msra.mxu0 %v3626
    %3986 = vmatprep.subr.mxu0 0.0
    %3987 = vmatpush1.msra.mxu0 %v3625
    %3988 = vmatprep.subr.mxu0 0.0
    %3989 = vmatpush1.msra.mxu0 %v3624
    %3990 = vmatprep.subr.mxu0 0.0
    %3991 = vmatpush1.msra.mxu0 %v3623
    %3992 = vmatprep.subr.mxu0 0.0
    %3993 = vmatpush1.msra.mxu0 %v3622
    %3994 = vmatprep.subr.mxu0 0.0
    %3995 = vmatpush1.msra.mxu0 %v3621
    %3996 = vmatprep.subr.mxu0 0.0
    %3997 = vmatpush1.msra.mxu0 %v3620
    %3998 = vmatprep.subr.mxu0 0.0
    %3999 = vmatpush2.msra.mxu0 %v3651
    %4000 = vmatprep.subr.mxu0 0.0
    %4001 = vmatpush2.msra.mxu0 %v3650
    %4002 = vmatprep.subr.mxu0 0.0
    %4003 = vmatpush2.msra.mxu0 %v3649
    %4004 = vmatprep.subr.mxu0 0.0
    %4005 = vmatpush2.msra.mxu0 %v3648
    %4006 = vmatprep.subr.mxu0 0.0
    %4007 = vmatpush2.msra.mxu0 %v3647
    %4008 = vmatprep.subr.mxu0 0.0
    %4009 = vmatpush2.msra.mxu0 %v3646
    %4010 = vmatprep.subr.mxu0 0.0
    %4011 = vmatpush2.msra.mxu0 %v3645
    %4012 = vmatprep.subr.mxu0 0.0
    %4013 = vmatpush2.msra.mxu0 %v3644
    %4014 = vmatprep.subr.mxu0 0.0
    %4015 = vmatpush2.msra.mxu0 %v3643
    %4016 = vmatprep.subr.mxu0 0.0
    %4017 = vmatpush2.msra.mxu0 %v3642
    %4018 = vmatprep.subr.mxu0 0.0
    %4019 = vmatpush2.msra.mxu0 %v3641
    %4020 = vmatprep.subr.mxu0 0.0
    %4021 = vmatpush2.msra.mxu0 %v3640
    %4022 = vmatprep.subr.mxu0 0.0
    %4023 = vmatpush2.msra.mxu0 %v3639
    %4024 = vmatprep.subr.mxu0 0.0
    %4025 = vmatpush2.msra.mxu0 %v3638
    %4026 = vmatprep.subr.mxu0 0.0
    %4027 = vmatpush2.msra.mxu0 %v3637
    %4028 = vmatprep.subr.mxu0 0.0
    %4029 = vmatpush2.msra.mxu0 %v3636
    %4030 = vmatprep.mubr.f32.mxu0 %v3273
    %4031 = vmatmul.mubr.f32.gmra.mxu0 %v3272
    %v4032 = vpop.f32.mrf.mxu0
    %v4033 = vadd.f32 %v3958, %v4032
    %v4034 = vpop.f32.mrf.mxu0
    %4035 = vmatprep.mubr.f32.mxu0 %v3289
    %4036 = vmatmul.mubr.f32.gmra.mxu0 %v3288
    %v4037 = vpop.f32.mrf.mxu0
    %v4038 = vadd.f32 %v3963, %v4037
    %v4039 = vpop.f32.mrf.mxu0
    %4040 = vdwg.mxu0
    %4041 = vmatprep.subr.mxu0 0.0
    %4042 = vmatpush1.msra.mxu0 %v3667
    %4043 = vmatprep.subr.mxu0 0.0
    %4044 = vmatpush1.msra.mxu0 %v3666
    %4045 = vmatprep.subr.mxu0 0.0
    %4046 = vmatpush1.msra.mxu0 %v3665
    %4047 = vmatprep.subr.mxu0 0.0
    %4048 = vmatpush1.msra.mxu0 %v3664
    %4049 = vmatprep.subr.mxu0 0.0
    %4050 = vmatpush1.msra.mxu0 %v3663
    %4051 = vmatprep.subr.mxu0 0.0
    %4052 = vmatpush1.msra.mxu0 %v3662
    %4053 = vmatprep.subr.mxu0 0.0
    %4054 = vmatpush1.msra.mxu0 %v3661
    %4055 = vmatprep.subr.mxu0 0.0
    %4056 = vmatpush1.msra.mxu0 %v3660
    %4057 = vmatprep.subr.mxu0 0.0
    %4058 = vmatpush1.msra.mxu0 %v3659
    %4059 = vmatprep.subr.mxu0 0.0
    %4060 = vmatpush1.msra.mxu0 %v3658
    %4061 = vmatprep.subr.mxu0 0.0
    %4062 = vmatpush1.msra.mxu0 %v3657
    %4063 = vmatprep.subr.mxu0 0.0
    %4064 = vmatpush1.msra.mxu0 %v3656
    %4065 = vmatprep.subr.mxu0 0.0
    %4066 = vmatpush1.msra.mxu0 %v3655
    %4067 = vmatprep.subr.mxu0 0.0
    %4068 = vmatpush1.msra.mxu0 %v3654
    %4069 = vmatprep.subr.mxu0 0.0
    %4070 = vmatpush1.msra.mxu0 %v3653
    %4071 = vmatprep.subr.mxu0 0.0
    %4072 = vmatpush1.msra.mxu0 %v3652
    %4073 = vmatprep.subr.mxu0 0.0
    %4074 = vmatpush2.msra.mxu0 %v3683
    %4075 = vmatprep.subr.mxu0 0.0
    %4076 = vmatpush2.msra.mxu0 %v3682
    %4077 = vmatprep.subr.mxu0 0.0
    %4078 = vmatpush2.msra.mxu0 %v3681
    %4079 = vmatprep.subr.mxu0 0.0
    %4080 = vmatpush2.msra.mxu0 %v3680
    %4081 = vmatprep.subr.mxu0 0.0
    %4082 = vmatpush2.msra.mxu0 %v3679
    %4083 = vmatprep.subr.mxu0 0.0
    %4084 = vmatpush2.msra.mxu0 %v3678
    %4085 = vmatprep.subr.mxu0 0.0
    %4086 = vmatpush2.msra.mxu0 %v3677
    %4087 = vmatprep.subr.mxu0 0.0
    %4088 = vmatpush2.msra.mxu0 %v3676
    %4089 = vmatprep.subr.mxu0 0.0
    %4090 = vmatpush2.msra.mxu0 %v3675
    %4091 = vmatprep.subr.mxu0 0.0
    %4092 = vmatpush2.msra.mxu0 %v3674
    %4093 = vmatprep.subr.mxu0 0.0
    %4094 = vmatpush2.msra.mxu0 %v3673
    %4095 = vmatprep.subr.mxu0 0.0
    %4096 = vmatpush2.msra.mxu0 %v3672
    %4097 = vmatprep.subr.mxu0 0.0
    %4098 = vmatpush2.msra.mxu0 %v3671
    %4099 = vmatprep.subr.mxu0 0.0
    %4100 = vmatpush2.msra.mxu0 %v3670
    %4101 = vmatprep.subr.mxu0 0.0
    %4102 = vmatpush2.msra.mxu0 %v3669
    %4103 = vmatprep.subr.mxu0 0.0
    %4104 = vmatpush2.msra.mxu0 %v3668
    %4105 = vmatprep.mubr.f32.mxu0 %v3275
    %4106 = vmatmul.mubr.f32.gmra.mxu0 %v3274
    %v4107 = vpop.f32.mrf.mxu0
    %v4108 = vadd.f32 %v4033, %v4107
    %v4109 = vpop.f32.mrf.mxu0
    %4110 = vmatprep.mubr.f32.mxu0 %v3291
    %4111 = vmatmul.mubr.f32.gmra.mxu0 %v3290
    %v4112 = vpop.f32.mrf.mxu0
    %v4113 = vadd.f32 %v4038, %v4112
    %v4114 = vpop.f32.mrf.mxu0
    %4115 = vdwg.mxu0
    %4116 = vmatprep.subr.mxu0 0.0
    %4117 = vmatpush1.msra.mxu0 %v3699
    %4118 = vmatprep.subr.mxu0 0.0
    %4119 = vmatpush1.msra.mxu0 %v3698
    %4120 = vmatprep.subr.mxu0 0.0
    %4121 = vmatpush1.msra.mxu0 %v3697
    %4122 = vmatprep.subr.mxu0 0.0
    %4123 = vmatpush1.msra.mxu0 %v3696
    %4124 = vmatprep.subr.mxu0 0.0
    %4125 = vmatpush1.msra.mxu0 %v3695
    %4126 = vmatprep.subr.mxu0 0.0
    %4127 = vmatpush1.msra.mxu0 %v3694
    %4128 = vmatprep.subr.mxu0 0.0
    %4129 = vmatpush1.msra.mxu0 %v3693
    %4130 = vmatprep.subr.mxu0 0.0
    %4131 = vmatpush1.msra.mxu0 %v3692
    %4132 = vmatprep.subr.mxu0 0.0
    %4133 = vmatpush1.msra.mxu0 %v3691
    %4134 = vmatprep.subr.mxu0 0.0
    %4135 = vmatpush1.msra.mxu0 %v3690
    %4136 = vmatprep.subr.mxu0 0.0
    %4137 = vmatpush1.msra.mxu0 %v3689
    %4138 = vmatprep.subr.mxu0 0.0
    %4139 = vmatpush1.msra.mxu0 %v3688
    %4140 = vmatprep.subr.mxu0 0.0
    %4141 = vmatpush1.msra.mxu0 %v3687
    %4142 = vmatprep.subr.mxu0 0.0
    %4143 = vmatpush1.msra.mxu0 %v3686
    %4144 = vmatprep.subr.mxu0 0.0
    %4145 = vmatpush1.msra.mxu0 %v3685
    %4146 = vmatprep.subr.mxu0 0.0
    %4147 = vmatpush1.msra.mxu0 %v3684
    %4148 = vmatprep.subr.mxu0 0.0
    %4149 = vmatpush2.msra.mxu0 %v3715
    %4150 = vmatprep.subr.mxu0 0.0
    %4151 = vmatpush2.msra.mxu0 %v3714
    %4152 = vmatprep.subr.mxu0 0.0
    %4153 = vmatpush2.msra.mxu0 %v3713
    %4154 = vmatprep.subr.mxu0 0.0
    %4155 = vmatpush2.msra.mxu0 %v3712
    %4156 = vmatprep.subr.mxu0 0.0
    %4157 = vmatpush2.msra.mxu0 %v3711
    %4158 = vmatprep.subr.mxu0 0.0
    %4159 = vmatpush2.msra.mxu0 %v3710
    %4160 = vmatprep.subr.mxu0 0.0
    %4161 = vmatpush2.msra.mxu0 %v3709
    %4162 = vmatprep.subr.mxu0 0.0
    %4163 = vmatpush2.msra.mxu0 %v3708
    %4164 = vmatprep.subr.mxu0 0.0
    %4165 = vmatpush2.msra.mxu0 %v3707
    %4166 = vmatprep.subr.mxu0 0.0
    %4167 = vmatpush2.msra.mxu0 %v3706
    %4168 = vmatprep.subr.mxu0 0.0
    %4169 = vmatpush2.msra.mxu0 %v3705
    %4170 = vmatprep.subr.mxu0 0.0
    %4171 = vmatpush2.msra.mxu0 %v3704
    %4172 = vmatprep.subr.mxu0 0.0
    %4173 = vmatpush2.msra.mxu0 %v3703
    %4174 = vmatprep.subr.mxu0 0.0
    %4175 = vmatpush2.msra.mxu0 %v3702
    %4176 = vmatprep.subr.mxu0 0.0
    %4177 = vmatpush2.msra.mxu0 %v3701
    %4178 = vmatprep.subr.mxu0 0.0
    %4179 = vmatpush2.msra.mxu0 %v3700
    %4180 = vmatprep.mubr.f32.mxu0 %v3277
    %4181 = vmatmul.mubr.f32.gmra.mxu0 %v3276
    %v4182 = vpop.f32.mrf.mxu0
    %v4183 = vadd.f32 %v4108, %v4182
    %v4184 = vpop.f32.mrf.mxu0
    %4185 = vmatprep.mubr.f32.mxu0 %v3293
    %4186 = vmatmul.mubr.f32.gmra.mxu0 %v3292
    %v4187 = vpop.f32.mrf.mxu0
    %v4188 = vadd.f32 %v4113, %v4187
    %v4189 = vpop.f32.mrf.mxu0
    %4190 = vdwg.mxu0
    %4191 = vmatprep.subr.mxu0 0.0
    %4192 = vmatpush1.msra.mxu0 %v3731
    %4193 = vmatprep.subr.mxu0 0.0
    %4194 = vmatpush1.msra.mxu0 %v3730
    %4195 = vmatprep.subr.mxu0 0.0
    %4196 = vmatpush1.msra.mxu0 %v3729
    %4197 = vmatprep.subr.mxu0 0.0
    %4198 = vmatpush1.msra.mxu0 %v3728
    %4199 = vmatprep.subr.mxu0 0.0
    %4200 = vmatpush1.msra.mxu0 %v3727
    %4201 = vmatprep.subr.mxu0 0.0
    %4202 = vmatpush1.msra.mxu0 %v3726
    %4203 = vmatprep.subr.mxu0 0.0
    %4204 = vmatpush1.msra.mxu0 %v3725
    %4205 = vmatprep.subr.mxu0 0.0
    %4206 = vmatpush1.msra.mxu0 %v3724
    %4207 = vmatprep.subr.mxu0 0.0
    %4208 = vmatpush1.msra.mxu0 %v3723
    %4209 = vmatprep.subr.mxu0 0.0
    %4210 = vmatpush1.msra.mxu0 %v3722
    %4211 = vmatprep.subr.mxu0 0.0
    %4212 = vmatpush1.msra.mxu0 %v3721
    %4213 = vmatprep.subr.mxu0 0.0
    %4214 = vmatpush1.msra.mxu0 %v3720
    %4215 = vmatprep.subr.mxu0 0.0
    %4216 = vmatpush1.msra.mxu0 %v3719
    %4217 = vmatprep.subr.mxu0 0.0
    %4218 = vmatpush1.msra.mxu0 %v3718
    %4219 = vmatprep.subr.mxu0 0.0
    %4220 = vmatpush1.msra.mxu0 %v3717
    %4221 = vmatprep.subr.mxu0 0.0
    %4222 = vmatpush1.msra.mxu0 %v3716
    %4223 = vmatprep.subr.mxu0 0.0
    %4224 = vmatpush2.msra.mxu0 %v3747
    %4225 = vmatprep.subr.mxu0 0.0
    %4226 = vmatpush2.msra.mxu0 %v3746
    %4227 = vmatprep.subr.mxu0 0.0
    %4228 = vmatpush2.msra.mxu0 %v3745
    %4229 = vmatprep.subr.mxu0 0.0
    %4230 = vmatpush2.msra.mxu0 %v3744
    %4231 = vmatprep.subr.mxu0 0.0
    %4232 = vmatpush2.msra.mxu0 %v3743
    %4233 = vmatprep.subr.mxu0 0.0
    %4234 = vmatpush2.msra.mxu0 %v3742
    %4235 = vmatprep.subr.mxu0 0.0
    %4236 = vmatpush2.msra.mxu0 %v3741
    %4237 = vmatprep.subr.mxu0 0.0
    %4238 = vmatpush2.msra.mxu0 %v3740
    %4239 = vmatprep.subr.mxu0 0.0
    %4240 = vmatpush2.msra.mxu0 %v3739
    %4241 = vmatprep.subr.mxu0 0.0
    %4242 = vmatpush2.msra.mxu0 %v3738
    %4243 = vmatprep.subr.mxu0 0.0
    %4244 = vmatpush2.msra.mxu0 %v3737
    %4245 = vmatprep.subr.mxu0 0.0
    %4246 = vmatpush2.msra.mxu0 %v3736
    %4247 = vmatprep.subr.mxu0 0.0
    %4248 = vmatpush2.msra.mxu0 %v3735
    %4249 = vmatprep.subr.mxu0 0.0
    %4250 = vmatpush2.msra.mxu0 %v3734
    %4251 = vmatprep.subr.mxu0 0.0
    %4252 = vmatpush2.msra.mxu0 %v3733
    %4253 = vmatprep.subr.mxu0 0.0
    %4254 = vmatpush2.msra.mxu0 %v3732
    %4255 = vmatprep.mubr.f32.mxu0 %v3279
    %4256 = vmatmul.mubr.f32.gmra.mxu0 %v3278
    %v4257 = vpop.f32.mrf.mxu0
    %v4258 = vadd.f32 %v4183, %v4257
    %v4259 = vpop.f32.mrf.mxu0
    %4260 = vmatprep.mubr.f32.mxu0 %v3295
    %4261 = vmatmul.mubr.f32.gmra.mxu0 %v3294
    %v4262 = vpop.f32.mrf.mxu0
    %v4263 = vadd.f32 %v4188, %v4262
    %v4264 = vpop.f32.mrf.mxu0
    %4265 = vdwg.mxu0
    %4266 = vmatprep.subr.mxu0 0.0
    %4267 = vmatpush1.msra.mxu0 %v3763
    %4268 = vmatprep.subr.mxu0 0.0
    %4269 = vmatpush1.msra.mxu0 %v3762
    %4270 = vmatprep.subr.mxu0 0.0
    %4271 = vmatpush1.msra.mxu0 %v3761
    %4272 = vmatprep.subr.mxu0 0.0
    %4273 = vmatpush1.msra.mxu0 %v3760
    %4274 = vmatprep.subr.mxu0 0.0
    %4275 = vmatpush1.msra.mxu0 %v3759
    %4276 = vmatprep.subr.mxu0 0.0
    %4277 = vmatpush1.msra.mxu0 %v3758
    %4278 = vmatprep.subr.mxu0 0.0
    %4279 = vmatpush1.msra.mxu0 %v3757
    %4280 = vmatprep.subr.mxu0 0.0
    %4281 = vmatpush1.msra.mxu0 %v3756
    %4282 = vmatprep.subr.mxu0 0.0
    %4283 = vmatpush1.msra.mxu0 %v3755
    %4284 = vmatprep.subr.mxu0 0.0
    %4285 = vmatpush1.msra.mxu0 %v3754
    %4286 = vmatprep.subr.mxu0 0.0
    %4287 = vmatpush1.msra.mxu0 %v3753
    %4288 = vmatprep.subr.mxu0 0.0
    %4289 = vmatpush1.msra.mxu0 %v3752
    %4290 = vmatprep.subr.mxu0 0.0
    %4291 = vmatpush1.msra.mxu0 %v3751
    %4292 = vmatprep.subr.mxu0 0.0
    %4293 = vmatpush1.msra.mxu0 %v3750
    %4294 = vmatprep.subr.mxu0 0.0
    %4295 = vmatpush1.msra.mxu0 %v3749
    %4296 = vmatprep.subr.mxu0 0.0
    %4297 = vmatpush1.msra.mxu0 %v3748
    %4298 = vmatprep.subr.mxu0 0.0
    %4299 = vmatpush2.msra.mxu0 %v3779
    %4300 = vmatprep.subr.mxu0 0.0
    %4301 = vmatpush2.msra.mxu0 %v3778
    %4302 = vmatprep.subr.mxu0 0.0
    %4303 = vmatpush2.msra.mxu0 %v3777
    %4304 = vmatprep.subr.mxu0 0.0
    %4305 = vmatpush2.msra.mxu0 %v3776
    %4306 = vmatprep.subr.mxu0 0.0
    %4307 = vmatpush2.msra.mxu0 %v3775
    %4308 = vmatprep.subr.mxu0 0.0
    %4309 = vmatpush2.msra.mxu0 %v3774
    %4310 = vmatprep.subr.mxu0 0.0
    %4311 = vmatpush2.msra.mxu0 %v3773
    %4312 = vmatprep.subr.mxu0 0.0
    %4313 = vmatpush2.msra.mxu0 %v3772
    %4314 = vmatprep.subr.mxu0 0.0
    %4315 = vmatpush2.msra.mxu0 %v3771
    %4316 = vmatprep.subr.mxu0 0.0
    %4317 = vmatpush2.msra.mxu0 %v3770
    %4318 = vmatprep.subr.mxu0 0.0
    %4319 = vmatpush2.msra.mxu0 %v3769
    %4320 = vmatprep.subr.mxu0 0.0
    %4321 = vmatpush2.msra.mxu0 %v3768
    %4322 = vmatprep.subr.mxu0 0.0
    %4323 = vmatpush2.msra.mxu0 %v3767
    %4324 = vmatprep.subr.mxu0 0.0
    %4325 = vmatpush2.msra.mxu0 %v3766
    %4326 = vmatprep.subr.mxu0 0.0
    %4327 = vmatpush2.msra.mxu0 %v3765
    %4328 = vmatprep.subr.mxu0 0.0
    %4329 = vmatpush2.msra.mxu0 %v3764
    %4330 = vmatprep.mubr.f32.mxu0 %v3281
    %4331 = vmatmul.mubr.f32.gmra.mxu0 %v3280
    %v4332 = vpop.f32.mrf.mxu0
    %v4333 = vadd.f32 %v4258, %v4332
    %v4334 = vpop.f32.mrf.mxu0
    %4335 = vmatprep.mubr.f32.mxu0 %v3297
    %4336 = vmatmul.mubr.f32.gmra.mxu0 %v3296
    %v4337 = vpop.f32.mrf.mxu0
    %v4338 = vadd.f32 %v4263, %v4337
    %v4339 = vpop.f32.mrf.mxu0
    %4340 = vdwg.mxu0
    %4341 = vmatprep.subr.mxu0 0.0
    %4342 = vmatpush1.msra.mxu0 %v3795
    %4343 = vmatprep.subr.mxu0 0.0
    %4344 = vmatpush1.msra.mxu0 %v3794
    %4345 = vmatprep.subr.mxu0 0.0
    %4346 = vmatpush1.msra.mxu0 %v3793
    %4347 = vmatprep.subr.mxu0 0.0
    %4348 = vmatpush1.msra.mxu0 %v3792
    %4349 = vmatprep.subr.mxu0 0.0
    %4350 = vmatpush1.msra.mxu0 %v3791
    %4351 = vmatprep.subr.mxu0 0.0
    %4352 = vmatpush1.msra.mxu0 %v3790
    %4353 = vmatprep.subr.mxu0 0.0
    %4354 = vmatpush1.msra.mxu0 %v3789
    %4355 = vmatprep.subr.mxu0 0.0
    %4356 = vmatpush1.msra.mxu0 %v3788
    %4357 = vmatprep.subr.mxu0 0.0
    %4358 = vmatpush1.msra.mxu0 %v3787
    %4359 = vmatprep.subr.mxu0 0.0
    %4360 = vmatpush1.msra.mxu0 %v3786
    %4361 = vmatprep.subr.mxu0 0.0
    %4362 = vmatpush1.msra.mxu0 %v3785
    %4363 = vmatprep.subr.mxu0 0.0
    %4364 = vmatpush1.msra.mxu0 %v3784
    %4365 = vmatprep.subr.mxu0 0.0
    %4366 = vmatpush1.msra.mxu0 %v3783
    %4367 = vmatprep.subr.mxu0 0.0
    %4368 = vmatpush1.msra.mxu0 %v3782
    %4369 = vmatprep.subr.mxu0 0.0
    %4370 = vmatpush1.msra.mxu0 %v3781
    %4371 = vmatprep.subr.mxu0 0.0
    %4372 = vmatpush1.msra.mxu0 %v3780
    %4373 = vmatprep.subr.mxu0 0.0
    %4374 = vmatpush2.msra.mxu0 %v3811
    %4375 = vmatprep.subr.mxu0 0.0
    %4376 = vmatpush2.msra.mxu0 %v3810
    %4377 = vmatprep.subr.mxu0 0.0
    %4378 = vmatpush2.msra.mxu0 %v3809
    %4379 = vmatprep.subr.mxu0 0.0
    %4380 = vmatpush2.msra.mxu0 %v3808
    %4381 = vmatprep.subr.mxu0 0.0
    %4382 = vmatpush2.msra.mxu0 %v3807
    %4383 = vmatprep.subr.mxu0 0.0
    %4384 = vmatpush2.msra.mxu0 %v3806
    %4385 = vmatprep.subr.mxu0 0.0
    %4386 = vmatpush2.msra.mxu0 %v3805
    %4387 = vmatprep.subr.mxu0 0.0
    %4388 = vmatpush2.msra.mxu0 %v3804
    %4389 = vmatprep.subr.mxu0 0.0
    %4390 = vmatpush2.msra.mxu0 %v3803
    %4391 = vmatprep.subr.mxu0 0.0
    %4392 = vmatpush2.msra.mxu0 %v3802
    %4393 = vmatprep.subr.mxu0 0.0
    %4394 = vmatpush2.msra.mxu0 %v3801
    %4395 = vmatprep.subr.mxu0 0.0
    %4396 = vmatpush2.msra.mxu0 %v3800
    %4397 = vmatprep.subr.mxu0 0.0
    %4398 = vmatpush2.msra.mxu0 %v3799
    %4399 = vmatprep.subr.mxu0 0.0
    %4400 = vmatpush2.msra.mxu0 %v3798
    %4401 = vmatprep.subr.mxu0 0.0
    %4402 = vmatpush2.msra.mxu0 %v3797
    %4403 = vmatprep.subr.mxu0 0.0
    %4404 = vmatpush2.msra.mxu0 %v3796
    %4405 = vmatprep.mubr.f32.mxu0 %v3283
    %4406 = vmatmul.mubr.f32.gmra.mxu0 %v3282
    %v4407 = vpop.f32.mrf.mxu0
    %v4408 = vadd.f32 %v4333, %v4407
    %v4409 = vpop.f32.mrf.mxu0
    %4410 = vmatprep.mubr.f32.mxu0 %v3299
    %4411 = vmatmul.mubr.f32.gmra.mxu0 %v3298
    %v4412 = vpop.f32.mrf.mxu0
    %v4413 = vadd.f32 %v4338, %v4412
    %v4414 = vpop.f32.mrf.mxu0
    %4415 = vdwg.mxu0
    %v4416 = vadd.f32 %v2182, %v4408
    %v4417 = vadd.f32 %v2183, %v4413
    %4418 = vadd.xlane.f32.xlu0 %v4416
    %v4419 = vpop.xlane.xlu0 %4418
    %4420 = vadd.xlane.f32.xlu0 %v4417
    %v4421 = vpop.xlane.xlu0 %4420
    %v4422 = vmul.f32 %v4419, 0.03125
    %v4423 = vmul.f32 %v4421, 0.03125
    %v4424 = vsub.f32 %v4416, %v4422
    %v4425 = vsub.f32 %v4417, %v4423
    %v4426 = vmul.f32 %v4424, %v2155
    %v4427 = vmul.f32 %v4425, %v2155
    %v4428 = vmul.f32 %v4426, %v4426
    %v4429 = vmul.f32 %v4427, %v4427
    %4430 = vadd.xlane.f32.xlu0 %v4428
    %v4431 = vpop.xlane.xlu0 %4430
    %4432 = vadd.xlane.f32.xlu0 %v4429
    %v4433 = vpop.xlane.xlu0 %4432
    %v4434 = vmul.f32 %v4431, 0.03125
    %v4435 = vmul.f32 %v4433, 0.03125
    %v4436 = vadd.f32 %v4434, 1e-05
    %v4437 = vadd.f32 %v4435, 1e-05
    %v4438 = vrsqrt.pop %v4436
    %v4439 = vrsqrt.pop %v4437
    %v4440 = vmul.f32 %v4426, %v4438
    %v4441 = vmul.f32 %v4427, %v4439
    %v4442 = vlaneseq
    %v4443 = vshrl.u32 %v4442, 7
    %v4444 = vsub.s32 0, %v4443
    %v4445 = vrot.slane %v156, %v4444
    %v4446 = vmul.f32 %v4440, %v4445
    %v4447 = vmul.f32 %v4441, %v4445
    %v4448 = vlaneseq
    %v4449 = vshrl.u32 %v4448, 7
    %v4450 = vsub.s32 1, %v4449
    %v4451 = vrot.slane %v156, %v4450
    %v4452 = vadd.f32 %v4446, %v4451
    %v4453 = vadd.f32 %v4447, %v4451
    %v4454 = vld [vmem:[#allocation14] sm:$0xff]
    %v4455 = vld [vmem:[#allocation14 + $0x8] sm:$0xff]
    %v4456 = vld [vmem:[#allocation14 + $0x10] sm:$0xff]
    %v4457 = vld [vmem:[#allocation14 + $0x18] sm:$0xff]
    %v4458 = vld [vmem:[#allocation14 + $0x20] sm:$0xff]
    %v4459 = vld [vmem:[#allocation14 + $0x28] sm:$0xff]
    %v4460 = vld [vmem:[#allocation14 + $0x30] sm:$0xff]
    %v4461 = vld [vmem:[#allocation14 + $0x38] sm:$0xff]
    %v4462 = vld [vmem:[#allocation14 + $0x40] sm:$0xff]
    %v4463 = vld [vmem:[#allocation14 + $0x48] sm:$0xff]
    %v4464 = vld [vmem:[#allocation14 + $0x50] sm:$0xff]
    %v4465 = vld [vmem:[#allocation14 + $0x58] sm:$0xff]
    %v4466 = vld [vmem:[#allocation14 + $0x60] sm:$0xff]
    %v4467 = vld [vmem:[#allocation14 + $0x68] sm:$0xff]
    %v4468 = vld [vmem:[#allocation14 + $0x70] sm:$0xff]
    %v4469 = vld [vmem:[#allocation14 + $0x78] sm:$0xff]
    %v4470 = vlaneseq
    %v4471 = vshrl.u32 %v4470, 7
    %v4472 = vsub.s32 2, %v4471
    %v4473 = vrot.slane %v156, %v4472
    %4474 = vmatprep.subr.mxu0 0.0
    %4475 = vmatpush1.msra.mxu0 %v4469
    %4476 = vmatprep.subr.mxu0 0.0
    %4477 = vmatpush1.msra.mxu0 %v4468
    %4478 = vmatprep.subr.mxu0 0.0
    %4479 = vmatpush1.msra.mxu0 %v4467
    %4480 = vmatprep.subr.mxu0 0.0
    %4481 = vmatpush1.msra.mxu0 %v4466
    %4482 = vmatprep.subr.mxu0 0.0
    %4483 = vmatpush1.msra.mxu0 %v4465
    %4484 = vmatprep.subr.mxu0 0.0
    %4485 = vmatpush1.msra.mxu0 %v4464
    %4486 = vmatprep.subr.mxu0 0.0
    %4487 = vmatpush1.msra.mxu0 %v4463
    %4488 = vmatprep.subr.mxu0 0.0
    %4489 = vmatpush1.msra.mxu0 %v4462
    %4490 = vmatprep.subr.mxu0 0.0
    %4491 = vmatpush1.msra.mxu0 %v4461
    %4492 = vmatprep.subr.mxu0 0.0
    %4493 = vmatpush1.msra.mxu0 %v4460
    %4494 = vmatprep.subr.mxu0 0.0
    %4495 = vmatpush1.msra.mxu0 %v4459
    %4496 = vmatprep.subr.mxu0 0.0
    %4497 = vmatpush1.msra.mxu0 %v4458
    %4498 = vmatprep.subr.mxu0 0.0
    %4499 = vmatpush1.msra.mxu0 %v4457
    %4500 = vmatprep.subr.mxu0 0.0
    %4501 = vmatpush1.msra.mxu0 %v4456
    %4502 = vmatprep.subr.mxu0 0.0
    %4503 = vmatpush1.msra.mxu0 %v4455
    %4504 = vmatprep.subr.mxu0 0.0
    %4505 = vmatpush1.msra.mxu0 %v4454
    %4506 = vmatprep.subr.mxu0 0.0
    %4507 = vmatpush2.msra.mxu0 0.0
    %4508 = vmatprep.subr.mxu0 0.0
    %4509 = vmatpush2.msra.mxu0 0.0
    %4510 = vmatprep.subr.mxu0 0.0
    %4511 = vmatpush2.msra.mxu0 0.0
    %4512 = vmatprep.subr.mxu0 0.0
    %4513 = vmatpush2.msra.mxu0 0.0
    %4514 = vmatprep.subr.mxu0 0.0
    %4515 = vmatpush2.msra.mxu0 0.0
    %4516 = vmatprep.subr.mxu0 0.0
    %4517 = vmatpush2.msra.mxu0 0.0
    %4518 = vmatprep.subr.mxu0 0.0
    %4519 = vmatpush2.msra.mxu0 0.0
    %4520 = vmatprep.subr.mxu0 0.0
    %4521 = vmatpush2.msra.mxu0 0.0
    %4522 = vmatprep.subr.mxu0 0.0
    %4523 = vmatpush2.msra.mxu0 0.0
    %4524 = vmatprep.subr.mxu0 0.0
    %4525 = vmatpush2.msra.mxu0 0.0
    %4526 = vmatprep.subr.mxu0 0.0
    %4527 = vmatpush2.msra.mxu0 0.0
    %4528 = vmatprep.subr.mxu0 0.0
    %4529 = vmatpush2.msra.mxu0 0.0
    %4530 = vmatprep.subr.mxu0 0.0
    %4531 = vmatpush2.msra.mxu0 0.0
    %4532 = vmatprep.subr.mxu0 0.0
    %4533 = vmatpush2.msra.mxu0 0.0
    %4534 = vmatprep.subr.mxu0 0.0
    %4535 = vmatpush2.msra.mxu0 0.0
    %4536 = vmatprep.subr.mxu0 0.0
    %4537 = vmatpush2.msra.mxu0 0.0
    %4538 = vmatprep.mubr.f32.mxu0 0.0
    %4539 = vmatmul.mubr.f32.gmra.mxu0 %v4452
    %v4540 = vpop.f32.mrf.mxu0
    %v4541 = vadd.f32 %v4473, %v4540
    %v4542 = vpop.f32.mrf.mxu0
    %4543 = vmatprep.mubr.f32.mxu0 0.0
    %4544 = vmatmul.mubr.f32.gmra.mxu0 %v4453
    %v4545 = vpop.f32.mrf.mxu0
    %v4546 = vadd.f32 %v4473, %v4545
    %v4547 = vpop.f32.mrf.mxu0
    %4548 = vdwg.mxu0
    %4549 = vst [vmem:[#allocation17] sm:$0xff] %v4541
    %4550 = vst [vmem:[#allocation17 + $0x8] sm:$0xff] %v4546
    // Predicated region
    $region74: #{tpu_custom_call.1} parent=1 // pred_check
      _
    $region75: #{tpu_custom_call.1} parent=1 // pred_check_branch
      %4552 = sbr.rel (0) target = $region77
    $region76: #{tpu_custom_call.1} parent=1 // pred_region
      %s4554 = ssub.s32 256, 256
      %4555 = vsyncadd [#allocation4], %s4554
      %s4556 = sshll.u32 [#allocation17], 4
      %s4557 = int_to_ptr.vmem [resolvable:$true] %s4556
      %4562 = dma.vmem_to_hbm [thread:$0]  %s4557, 256, %s9, [#allocation4], 128, 128, 8
    $region77: #{tpu_custom_call.1} parent=1 // pred_fallthru
      _
    // Predicated region
    $region78: #{tpu_custom_call.1} parent=1 // pred_check
      _
    $region79: #{tpu_custom_call.1} parent=1 // pred_check_branch
      %4564 = sbr.rel (0) target = $region81
    $region80: #{tpu_custom_call.1} parent=1 // pred_region
      %4565 = dma.done [#allocation4], 256
    $region81: #{tpu_custom_call.1} parent=1 // pred_fallthru
      _
    %4566 = vsyncpa [#allocation3], 1
    %4567 = vsyncpa [#allocation6], 1
    %4568 = vsyncpa [#allocation9], 1
    %4569 = vsyncpa [#allocation12], 1
    %4570 = vsyncpa [#allocation15], 1
    %4571 = vsyncpa [#allocation4], 1

</llo_original>
